<compile_context>
chip_gen: v6e
topology: v6e:2x2x1
jax: 0.10.0
libtpu: 0.0.40
codegen_flags: <defaults>
</compile_context>

<pallas_src>
import jax
import jax.numpy as jnp
from jax import lax
from jax.experimental import pallas as pl
from jax.experimental.pallas import tpu as pltpu

BN_EPS = 1e-5
LANES = 128


# --------------------------------------------------------------------------
# small helpers
# --------------------------------------------------------------------------
def _round_up(x, m):
    return (x + m - 1) // m * m


def _choose_tile_m(M, K, Np):
    """Largest M-tile whose double-buffered working set fits a conservative
    VMEM budget (safe on v5e/v6e 128MiB and v7x 64MiB/32MiB-scoped)."""
    budget = 8 * 1024 * 1024
    tm = 1024
    while tm > 64:
        working = 2 * tm * K * 2          # bf16 input tile, double buffered
        working += 2 * tm * Np * 4        # f32 output tile, double buffered
        working += K * Np * 2             # resident bf16 weights
        if working <= budget:
            break
        tm //= 2
    return min(tm, _round_up(M, 8))


# --------------------------------------------------------------------------
# Pallas kernels
# --------------------------------------------------------------------------
def _matmul_bias_kernel(x_ref, w_ref, b_ref, o_ref):
    # ConvTranspose2d(k=2, s=2) expressed as a row-tiled matmul:  out = x@w + b
    o_ref[...] = (
        jnp.dot(x_ref[...], w_ref[...], preferred_element_type=jnp.float32)
        + b_ref[...]
    )


def _conv_stats_kernel(x_ref, w_ref, y_ref, psum_ref, psumsq_ref):
    # pass 1 of conv+BN: tiled im2col matmul (no bias) + per-tile BN partials.
    y = jnp.dot(x_ref[...], w_ref[...], preferred_element_type=jnp.float32)
    y_ref[...] = y
    s = jnp.sum(y, axis=0, keepdims=True)          # (1, Np)
    sq = jnp.sum(y * y, axis=0, keepdims=True)     # (1, Np)
    psum_ref[...] = jnp.broadcast_to(s, psum_ref.shape)      # (8, Np) slab
    psumsq_ref[...] = jnp.broadcast_to(sq, psumsq_ref.shape)


def _scale_offset_relu_kernel(y_ref, s_ref, o_ref, out_ref):
    # pass 2 of conv+BN: one FMA + ReLU per element (scale/offset precomputed).
    out_ref[...] = jnp.maximum(y_ref[...] * s_ref[...] + o_ref[...], 0.0)


# --------------------------------------------------------------------------
# tiled pallas_call wrappers
# --------------------------------------------------------------------------
def matmul_bias(x_f32, w_f32, b_f32):
    """(M,K) @ (K,N) + b ; M tiled & padded, N padded to 128, bf16 operands."""
    M, K = x_f32.shape
    N = w_f32.shape[1]
    Np = _round_up(N, LANES)
    tm = _choose_tile_m(M, K, Np)
    Mp = _round_up(M, tm)
    nm = Mp // tm

    x = x_f32.astype(jnp.bfloat16)
    if Mp > M:
        x = jnp.pad(x, ((0, Mp - M), (0, 0)))
    w = jnp.pad(w_f32, ((0, 0), (0, Np - N))).astype(jnp.bfloat16)
    b = jnp.pad(b_f32, (0, Np - N)).reshape(1, Np).astype(jnp.float32)

    y = pl.pallas_call(
        _matmul_bias_kernel,
        out_shape=jax.ShapeDtypeStruct((Mp, Np), jnp.float32),
        grid=(nm,),
        in_specs=[
            pl.BlockSpec((tm, K), lambda i: (i, 0)),
            pl.BlockSpec((K, Np), lambda i: (0, 0)),
            pl.BlockSpec((1, Np), lambda i: (0, 0)),
        ],
        out_specs=pl.BlockSpec((tm, Np), lambda i: (i, 0)),
        compiler_params=pltpu.CompilerParams(dimension_semantics=("parallel",)),
        cost_estimate=pl.CostEstimate(
            flops=2 * Mp * K * Np, transcendentals=0,
            bytes_accessed=Mp * K * 2 + K * Np * 2 + Mp * Np * 4),
    )(x, w, b)
    return y[:M, :N]


def conv3x3_bn_relu_nhwc(x_nhwc, w_oihw, gamma, beta):
    """3x3/pad=1 conv + train-mode BatchNorm + ReLU, NHWC in / NHWC out.
    (The conv bias cancels exactly under train-mode BN and is omitted.)"""
    B, H, W, C = x_nhwc.shape
    Cout = w_oihw.shape[0]
    K = C * 9
    Np = _round_up(Cout, LANES)
    M = B * H * W
    tm = _choose_tile_m(M, K, Np)
    Mp = _round_up(M, tm)
    nm = Mp // tm

    patches = _im2col_3x3_nhwc(x_nhwc)                     # (M, C*9) bf16
    if Mp > M:
        patches = jnp.pad(patches, ((0, Mp - M), (0, 0)))  # zero rows -> exact stats
    wk = jnp.pad(w_oihw.reshape(Cout, K).T,
                 ((0, 0), (0, Np - Cout))).astype(jnp.bfloat16)

    # ---- pass 1: tiled conv matmul + per-tile BN partial sums --------------
    y0, psum, psumsq = pl.pallas_call(
        _conv_stats_kernel,
        out_shape=(
            jax.ShapeDtypeStruct((Mp, Np), jnp.float32),
            jax.ShapeDtypeStruct((nm * 8, Np), jnp.float32),
            jax.ShapeDtypeStruct((nm * 8, Np), jnp.float32),
        ),
        grid=(nm,),
        in_specs=[
            pl.BlockSpec((tm, K), lambda i: (i, 0)),
            pl.BlockSpec((K, Np), lambda i: (0, 0)),
        ],
        out_specs=(
            pl.BlockSpec((tm, Np), lambda i: (i, 0)),
            pl.BlockSpec((8, Np), lambda i: (i, 0)),
            pl.BlockSpec((8, Np), lambda i: (i, 0)),
        ),
        compiler_params=pltpu.CompilerParams(dimension_semantics=("parallel",)),
        cost_estimate=pl.CostEstimate(
            flops=2 * Mp * K * Np, transcendentals=0,
            bytes_accessed=Mp * K * 2 + K * Np * 2 + Mp * Np * 4),
    )(patches, wk)

    # ---- glue: exact batch statistics over the M real rows -----------------
    sums = jnp.sum(psum.reshape(nm, 8, Np)[:, 0, :], axis=0)      # (Np,)
    sqs = jnp.sum(psumsq.reshape(nm, 8, Np)[:, 0, :], axis=0)     # (Np,)
    mean = sums / M
    var = jnp.maximum(sqs / M - mean * mean, 0.0)
    gamma_p = jnp.pad(gamma, (0, Np - Cout))
    beta_p = jnp.pad(beta, (0, Np - Cout))
    scale = gamma_p * lax.rsqrt(var + BN_EPS)
    offset = beta_p - mean * scale
    scale = scale.reshape(1, Np).astype(jnp.float32)
    offset = offset.reshape(1, Np).astype(jnp.float32)

    # ---- pass 2: tiled normalize (one FMA) + ReLU ---------------------------
    out = pl.pallas_call(
        _scale_offset_relu_kernel,
        out_shape=jax.ShapeDtypeStruct((Mp, Np), jnp.float32),
        grid=(nm,),
        in_specs=[
            pl.BlockSpec((tm, Np), lambda i: (i, 0)),
            pl.BlockSpec((1, Np), lambda i: (0, 0)),
            pl.BlockSpec((1, Np), lambda i: (0, 0)),
        ],
        out_specs=pl.BlockSpec((tm, Np), lambda i: (i, 0)),
        compiler_params=pltpu.CompilerParams(dimension_semantics=("parallel",)),
        cost_estimate=pl.CostEstimate(
            flops=2 * Mp * Np, transcendentals=0,
            bytes_accessed=2 * Mp * Np * 4),
    )(y0, scale, offset)

    return out[:M, :Cout].reshape(B, H, W, Cout)


# --------------------------------------------------------------------------
# JAX glue (layout / indexing only; no heavy compute)
# --------------------------------------------------------------------------
def _im2col_3x3_nhwc(x_nhwc):
    """NHWC -> (B*H*W, C*9) bf16 patches for a 3x3/pad=1 conv, ordering (c,ky,kx)
    which matches PyTorch weight.reshape(Cout, Cin*9)."""
    B, H, W, C = x_nhwc.shape
    xb = x_nhwc.astype(jnp.bfloat16)
    xp = jnp.pad(xb, ((0, 0), (1, 1), (1, 1), (0, 0)))
    cols = [xp[:, ky:ky + H, kx:kx + W, :] for ky in range(3) for kx in range(3)]
    p = jnp.stack(cols, axis=-1)                   # (B, H, W, C, 9)
    return p.reshape(B * H * W, C * 9)


def bilinear_resize_nhwc(x, out_h, out_w):
    """PyTorch F.interpolate(mode='bilinear', align_corners=False), NHWC.
    Identity in canonical UNet shapes (low == 2x high)."""
    B, H, W, C = x.shape
    if (H, W) == (out_h, out_w):
        return x
    ys = jnp.maximum((jnp.arange(out_h, dtype=jnp.float32) + 0.5) * (H / out_h) - 0.5, 0.0)
    xs = jnp.maximum((jnp.arange(out_w, dtype=jnp.float32) + 0.5) * (W / out_w) - 0.5, 0.0)
    y0 = jnp.floor(ys).astype(jnp.int32)
    x0 = jnp.floor(xs).astype(jnp.int32)
    y1 = jnp.minimum(y0 + 1, H - 1)
    x1 = jnp.minimum(x0 + 1, W - 1)
    wy = (ys - y0.astype(jnp.float32))[None, :, None, None]
    wx = (xs - x0.astype(jnp.float32))[None, None, :, None]
    g = lambda yi, xi: x[:, yi][:, :, xi]          # (B, out_h, out_w, C)
    top = g(y0, x0) * (1.0 - wx) + g(y0, x1) * wx
    bot = g(y1, x0) * (1.0 - wx) + g(y1, x1) * wx
    return top * (1.0 - wy) + bot * wy


# --------------------------------------------------------------------------
# Decoder parameters + forward
# --------------------------------------------------------------------------
def init_decoder_params(key, in_channels, out_channels):
    ks = jax.random.split(key, 6)
    return {
        # ConvTranspose2d weight: (in_ch, out_ch, 2, 2), bias: (out_ch,)
        "up_w": 0.1 * jax.random.normal(ks[0], (in_channels, out_channels, 2, 2), jnp.float32),
        "up_b": 0.1 * jax.random.normal(ks[1], (out_channels,), jnp.float32),
        # Conv2d #1: (out_ch, in_ch, 3, 3)
        "c1_w": 0.1 * jax.random.normal(ks[2], (out_channels, in_channels, 3, 3), jnp.float32),
        "c1_b": 0.1 * jax.random.normal(ks[3], (out_channels,), jnp.float32),
        "bn1_g": jnp.ones((out_channels,), jnp.float32),
        "bn1_b": jnp.zeros((out_channels,), jnp.float32),
        # Conv2d #2: (out_ch, out_ch, 3, 3)
        "c2_w": 0.1 * jax.random.normal(ks[4], (out_channels, out_channels, 3, 3), jnp.float32),
        "c2_b": 0.1 * jax.random.normal(ks[5], (out_channels,), jnp.float32),
        "bn2_g": jnp.ones((out_channels,), jnp.float32),
        "bn2_b": jnp.zeros((out_channels,), jnp.float32),
    }


def decoder_forward(params, high, low):
    B, Cin, H, W = high.shape
    _, Clow, Hl, Wl = low.shape
    Cout = params["up_w"].shape[1]

    # ---- ConvTranspose2d(k=2, s=2) as a tiled Pallas matmul (NHWC) ----------
    x_flat = high.transpose(0, 2, 3, 1).reshape(B * H * W, Cin)       # (BHW, Cin)
    w_up = params["up_w"].reshape(Cin, Cout * 4)                      # cols: (co,ky,kx)
    b_up = jnp.repeat(params["up_b"], 4)                              # bias per (co,ky,kx)
    y = matmul_bias(x_flat, w_up, b_up)                               # (BHW, Cout*4)
    y = y.reshape(B, H, W, Cout, 2, 2).transpose(0, 1, 4, 2, 5, 3)
    up = y.reshape(B, 2 * H, 2 * W, Cout)                             # NHWC

    # ---- bilinear resize to low's spatial size + channel concat (NHWC) ------
    up = bilinear_resize_nhwc(up, Hl, Wl)
    low_nhwc = low.transpose(0, 2, 3, 1)
    x1 = jnp.concatenate([up, low_nhwc], axis=-1)                     # (B,Hl,Wl,Cout+Clow)

    # ---- conv3x3 + BN + ReLU, twice, NHWC end-to-end -------------------------
    # (c1_b / c2_b cancel exactly under train-mode BatchNorm.)
    h1 = conv3x3_bn_relu_nhwc(x1, params["c1_w"], params["bn1_g"], params["bn1_b"])
    h2 = conv3x3_bn_relu_nhwc(h1, params["c2_w"], params["bn2_g"], params["bn2_b"])
    return h2.transpose(0, 3, 1, 2)                                   # single exit transpose


# --------------------------------------------------------------------------
# pure-JAX/XLA reference of the PyTorch forward (for numerical validation)
# --------------------------------------------------------------------------
def decoder_reference(params, high, low):
    B, Cin, H, W = high.shape
    Hl, Wl = low.shape[2], low.shape[3]
    Cout = params["up_w"].shape[1]
    # ConvTranspose2d k=2 s=2: out[b,o,2h+d,2w+c] = sum_i x[b,i,h,w]*W[i,o,d,c] + b[o]
    y = jnp.einsum("bihw,iodc->bohdwc", high, params["up_w"],
                   precision=lax.Precision.HIGHEST)
    y = y.reshape(B, Cout, 2 * H, 2 * W) + params["up_b"][None, :, None, None]
    if y.shape[2:] != (Hl, Wl):
        y = bilinear_resize_nhwc(y.transpose(0, 2, 3, 1), Hl, Wl).transpose(0, 3, 1, 2)
    x = jnp.concatenate([y, low], axis=1)

    def block(x, w, b, g, be):
        y = lax.conv_general_dilated(x, w, (1, 1), ((1, 1), (1, 1)),
                                     dimension_numbers=("NCHW", "OIHW", "NCHW"),
                                     precision=lax.Precision.HIGHEST)
        y = y + b[None, :, None, None]
        m = jnp.mean(y, axis=(0, 2, 3), keepdims=True)
        v = jnp.mean((y - m) ** 2, axis=(0, 2, 3), keepdims=True)
        y = (y - m) * lax.rsqrt(v + BN_EPS)
        y = y * g[None, :, None, None] + be[None, :, None, None]
        return jnp.maximum(y, 0.0)

    x = block(x, params["c1_w"], params["c1_b"], params["bn1_g"], params["bn1_b"])
    x = block(x, params["c2_w"], params["c2_b"], params["bn2_g"], params["bn2_b"])
    return x


if __name__ == "__main__":
    key = jax.random.PRNGKey(0)
    k_high, k_low, k_par = jax.random.split(key, 3)

    in_channels, out_channels = 8, 4
    B, H, W = 2, 16, 16
    # high: (B, in_ch, 16, 16); low: (B, in_ch - out_ch, 32, 32) -> concat = in_ch
    high = jax.random.normal(k_high, (B, in_channels, H, W), jnp.float32)
    low = jax.random.normal(k_low, (B, in_channels - out_channels, 2 * H, 2 * W), jnp.float32)

    params = init_decoder_params(k_par, in_channels, out_channels)

    fwd = jax.jit(decoder_forward)
    out = jax.block_until_ready(fwd(params, high, low))

    assert out.shape == (B, out_channels, 2 * H, 2 * W), out.shape
    assert bool(jnp.all(jnp.isfinite(out)))

    # numerical check vs. an f32 XLA reference (tolerance covers bf16 MXU inputs)
    ref = jax.block_until_ready(jax.jit(decoder_reference)(params, high, low))
    max_err = float(jnp.max(jnp.abs(out - ref)))
    assert max_err < 1e-1, f"max abs error vs reference: {max_err}"

    print("KERNEL_OK")
</pallas_src>

<mosaic_0001>
module attributes {stable_mosaic.version = 11 : i64} {
  func.func @_matmul_bias_kernel(%arg0: i32, %arg1: memref<512x8xbf16, #tpu.memory_space<vmem>>, %arg2: memref<8x128xbf16, #tpu.memory_space<vmem>>, %arg3: memref<1x128xf32, #tpu.memory_space<vmem>>, %arg4: memref<512x128xf32, #tpu.memory_space<vmem>>) attributes {dimension_semantics = [#tpu.dimension_semantics<parallel>], iteration_bounds = array<i64: 1>, scalar_prefetch = 0 : i64, scratch_operands = 0 : i64, tpu.core_type = #tpu.core_type<tc>, window_params = [{transform_indices = @transform_0, window_bounds = array<i64: 512, 8>}, {pipeline_mode = #tpu.pipeline_mode<synchronous>, transform_indices = @transform_1, window_bounds = array<i64: 8, 128>}, {pipeline_mode = #tpu.pipeline_mode<synchronous>, transform_indices = @transform_2, window_bounds = array<i64: 1, 128>}, {transform_indices = @transform_3, window_bounds = array<i64: 512, 128>}]} {
    %c0 = arith.constant 0 : index
    %c0_0 = arith.constant 0 : index
    %0 = vector.load %arg1[%c0, %c0_0] : memref<512x8xbf16, #tpu.memory_space<vmem>>, vector<512x8xbf16>
    %c0_1 = arith.constant 0 : index
    %c0_2 = arith.constant 0 : index
    %1 = vector.load %arg2[%c0_1, %c0_2] : memref<8x128xbf16, #tpu.memory_space<vmem>>, vector<8x128xbf16>
    %cst = arith.constant dense<0.000000e+00> : vector<512x128xf32>
    %2 = tpu.matmul %0, %1, %cst {dimension_numbers = #tpu.dot_dimension_numbers<[1], [0], [0], [1], [0, 0, 1, 1], [], []>} : vector<512x8xbf16>, vector<8x128xbf16>, vector<512x128xf32> -> vector<512x128xf32>
    %c0_3 = arith.constant 0 : index
    %c0_4 = arith.constant 0 : index
    %3 = vector.load %arg3[%c0_3, %c0_4] : memref<1x128xf32, #tpu.memory_space<vmem>>, vector<1x128xf32>
    %4 = vector.broadcast %3 : vector<1x128xf32> to vector<512x128xf32>
    %5 = arith.addf %2, %4 : vector<512x128xf32>
    %c0_5 = arith.constant 0 : index
    %c0_6 = arith.constant 0 : index
    %6 = vector.load %arg4[%c0_5, %c0_6] : memref<512x128xf32, #tpu.memory_space<vmem>>, vector<512x128xf32>
    tpu.vector_store %arg4[%c0_5, %c0_6], %5 {strides = array<i32>} : memref<512x128xf32, #tpu.memory_space<vmem>>, vector<512x128xf32>,
    return
  }
  func.func @transform_0(%arg0: i32) -> (i32, i32) {
    %c0_i32 = arith.constant 0 : i32
    %c0_i32_0 = arith.constant 0 : i32
    return %arg0, %c0_i32 : i32, i32
  }
  func.func @transform_1(%arg0: i32) -> (i32, i32) {
    %c0_i32 = arith.constant 0 : i32
    %c0_i32_0 = arith.constant 0 : i32
    %c0_i32_1 = arith.constant 0 : i32
    return %c0_i32, %c0_i32_0 : i32, i32
  }
  func.func @transform_2(%arg0: i32) -> (i32, i32) {
    %c0_i32 = arith.constant 0 : i32
    %c0_i32_0 = arith.constant 0 : i32
    %c0_i32_1 = arith.constant 0 : i32
    return %c0_i32, %c0_i32_0 : i32, i32
  }
  func.func @transform_3(%arg0: i32) -> (i32, i32) {
    %c0_i32 = arith.constant 0 : i32
    %c0_i32_0 = arith.constant 0 : i32
    return %arg0, %c0_i32 : i32, i32
  }
}

module attributes {stable_mosaic.version = 11 : i64} {
  func.func @_conv_stats_kernel(%arg0: i32, %arg1: memref<1024x72xbf16, #tpu.memory_space<vmem>>, %arg2: memref<72x128xbf16, #tpu.memory_space<vmem>>, %arg3: memref<1024x128xf32, #tpu.memory_space<vmem>>, %arg4: memref<8x128xf32, #tpu.memory_space<vmem>>, %arg5: memref<8x128xf32, #tpu.memory_space<vmem>>) attributes {dimension_semantics = [#tpu.dimension_semantics<parallel>], iteration_bounds = array<i64: 2>, scalar_prefetch = 0 : i64, scratch_operands = 0 : i64, tpu.core_type = #tpu.core_type<tc>, window_params = [{transform_indices = @transform_0, window_bounds = array<i64: 1024, 72>}, {pipeline_mode = #tpu.pipeline_mode<synchronous>, transform_indices = @transform_1, window_bounds = array<i64: 72, 128>}, {transform_indices = @transform_2, window_bounds = array<i64: 1024, 128>}, {transform_indices = @transform_3, window_bounds = array<i64: 8, 128>}, {transform_indices = @transform_4, window_bounds = array<i64: 8, 128>}]} {
    %c0 = arith.constant 0 : index
    %c0_0 = arith.constant 0 : index
    %0 = vector.load %arg1[%c0, %c0_0] : memref<1024x72xbf16, #tpu.memory_space<vmem>>, vector<1024x72xbf16>
    %c0_1 = arith.constant 0 : index
    %c0_2 = arith.constant 0 : index
    %1 = vector.load %arg2[%c0_1, %c0_2] : memref<72x128xbf16, #tpu.memory_space<vmem>>, vector<72x128xbf16>
    %cst = arith.constant dense<0.000000e+00> : vector<1024x128xf32>
    %2 = tpu.matmul %0, %1, %cst {dimension_numbers = #tpu.dot_dimension_numbers<[1], [0], [0], [1], [0, 0, 1, 1], [], []>} : vector<1024x72xbf16>, vector<72x128xbf16>, vector<1024x128xf32> -> vector<1024x128xf32>
    %c0_3 = arith.constant 0 : index
    %c0_4 = arith.constant 0 : index
    %3 = vector.load %arg3[%c0_3, %c0_4] : memref<1024x128xf32, #tpu.memory_space<vmem>>, vector<1024x128xf32>
    tpu.vector_store %arg3[%c0_3, %c0_4], %2 {strides = array<i32>} : memref<1024x128xf32, #tpu.memory_space<vmem>>, vector<1024x128xf32>,
    %cst_5 = arith.constant dense<0.000000e+00> : vector<128xf32>
    %4 = vector.multi_reduction <add>, %2, %cst_5 [0] : vector<1024x128xf32> to vector<128xf32>
    %5 = vector.shape_cast %4 : vector<128xf32> to vector<1x128xf32>
    %6 = arith.mulf %2, %2 : vector<1024x128xf32>
    %cst_6 = arith.constant dense<0.000000e+00> : vector<128xf32>
    %7 = vector.multi_reduction <add>, %6, %cst_6 [0] : vector<1024x128xf32> to vector<128xf32>
    %8 = vector.shape_cast %7 : vector<128xf32> to vector<1x128xf32>
    %9 = vector.shape_cast %5 : vector<1x128xf32> to vector<1x128xf32>
    %10 = vector.broadcast %9 : vector<1x128xf32> to vector<8x128xf32>
    %c0_7 = arith.constant 0 : index
    %c0_8 = arith.constant 0 : index
    %11 = vector.load %arg4[%c0_7, %c0_8] : memref<8x128xf32, #tpu.memory_space<vmem>>, vector<8x128xf32>
    tpu.vector_store %arg4[%c0_7, %c0_8], %10 {strides = array<i32>} : memref<8x128xf32, #tpu.memory_space<vmem>>, vector<8x128xf32>,
    %12 = vector.shape_cast %8 : vector<1x128xf32> to vector<1x128xf32>
    %13 = vector.broadcast %12 : vector<1x128xf32> to vector<8x128xf32>
    %c0_9 = arith.constant 0 : index
    %c0_10 = arith.constant 0 : index
    %14 = vector.load %arg5[%c0_9, %c0_10] : memref<8x128xf32, #tpu.memory_space<vmem>>, vector<8x128xf32>
    tpu.vector_store %arg5[%c0_9, %c0_10], %13 {strides = array<i32>} : memref<8x128xf32, #tpu.memory_space<vmem>>, vector<8x128xf32>,
    return
  }
  func.func @transform_0(%arg0: i32) -> (i32, i32) {
    %c0_i32 = arith.constant 0 : i32
    %c0_i32_0 = arith.constant 0 : i32
    return %arg0, %c0_i32 : i32, i32
  }
  func.func @transform_1(%arg0: i32) -> (i32, i32) {
    %c0_i32 = arith.constant 0 : i32
    %c0_i32_0 = arith.constant 0 : i32
    %c0_i32_1 = arith.constant 0 : i32
    return %c0_i32, %c0_i32_0 : i32, i32
  }
  func.func @transform_2(%arg0: i32) -> (i32, i32) {
    %c0_i32 = arith.constant 0 : i32
    %c0_i32_0 = arith.constant 0 : i32
    return %arg0, %c0_i32 : i32, i32
  }
  func.func @transform_3(%arg0: i32) -> (i32, i32) {
    %c0_i32 = arith.constant 0 : i32
    %c0_i32_0 = arith.constant 0 : i32
    return %arg0, %c0_i32 : i32, i32
  }
  func.func @transform_4(%arg0: i32) -> (i32, i32) {
    %c0_i32 = arith.constant 0 : i32
    %c0_i32_0 = arith.constant 0 : i32
    return %arg0, %c0_i32 : i32, i32
  }
}

module attributes {stable_mosaic.version = 11 : i64} {
  func.func @_scale_offset_relu_kernel(%arg0: i32, %arg1: memref<1024x128xf32, #tpu.memory_space<vmem>>, %arg2: memref<1x128xf32, #tpu.memory_space<vmem>>, %arg3: memref<1x128xf32, #tpu.memory_space<vmem>>, %arg4: memref<1024x128xf32, #tpu.memory_space<vmem>>) attributes {dimension_semantics = [#tpu.dimension_semantics<parallel>], iteration_bounds = array<i64: 2>, scalar_prefetch = 0 : i64, scratch_operands = 0 : i64, tpu.core_type = #tpu.core_type<tc>, window_params = [{transform_indices = @transform_0, window_bounds = array<i64: 1024, 128>}, {pipeline_mode = #tpu.pipeline_mode<synchronous>, transform_indices = @transform_1, window_bounds = array<i64: 1, 128>}, {pipeline_mode = #tpu.pipeline_mode<synchronous>, transform_indices = @transform_2, window_bounds = array<i64: 1, 128>}, {transform_indices = @transform_3, window_bounds = array<i64: 1024, 128>}]} {
    %c0 = arith.constant 0 : index
    %c0_0 = arith.constant 0 : index
    %0 = vector.load %arg1[%c0, %c0_0] : memref<1024x128xf32, #tpu.memory_space<vmem>>, vector<1024x128xf32>
    %c0_1 = arith.constant 0 : index
    %c0_2 = arith.constant 0 : index
    %1 = vector.load %arg2[%c0_1, %c0_2] : memref<1x128xf32, #tpu.memory_space<vmem>>, vector<1x128xf32>
    %2 = vector.broadcast %1 : vector<1x128xf32> to vector<1024x128xf32>
    %3 = arith.mulf %0, %2 : vector<1024x128xf32>
    %c0_3 = arith.constant 0 : index
    %c0_4 = arith.constant 0 : index
    %4 = vector.load %arg3[%c0_3, %c0_4] : memref<1x128xf32, #tpu.memory_space<vmem>>, vector<1x128xf32>
    %5 = vector.broadcast %4 : vector<1x128xf32> to vector<1024x128xf32>
    %6 = arith.addf %3, %5 : vector<1024x128xf32>
    %cst = arith.constant 0.000000e+00 : f32
    %7 = vector.broadcast %cst : f32 to vector<1024x128xf32>
    %8 = arith.maximumf %6, %7 : vector<1024x128xf32>
    %c0_5 = arith.constant 0 : index
    %c0_6 = arith.constant 0 : index
    %9 = vector.load %arg4[%c0_5, %c0_6] : memref<1024x128xf32, #tpu.memory_space<vmem>>, vector<1024x128xf32>
    tpu.vector_store %arg4[%c0_5, %c0_6], %8 {strides = array<i32>} : memref<1024x128xf32, #tpu.memory_space<vmem>>, vector<1024x128xf32>,
    return
  }
  func.func @transform_0(%arg0: i32) -> (i32, i32) {
    %c0_i32 = arith.constant 0 : i32
    %c0_i32_0 = arith.constant 0 : i32
    return %arg0, %c0_i32 : i32, i32
  }
  func.func @transform_1(%arg0: i32) -> (i32, i32) {
    %c0_i32 = arith.constant 0 : i32
    %c0_i32_0 = arith.constant 0 : i32
    %c0_i32_1 = arith.constant 0 : i32
    return %c0_i32, %c0_i32_0 : i32, i32
  }
  func.func @transform_2(%arg0: i32) -> (i32, i32) {
    %c0_i32 = arith.constant 0 : i32
    %c0_i32_0 = arith.constant 0 : i32
    %c0_i32_1 = arith.constant 0 : i32
    return %c0_i32, %c0_i32_0 : i32, i32
  }
  func.func @transform_3(%arg0: i32) -> (i32, i32) {
    %c0_i32 = arith.constant 0 : i32
    %c0_i32_0 = arith.constant 0 : i32
    return %arg0, %c0_i32 : i32, i32
  }
}

module attributes {stable_mosaic.version = 11 : i64} {
  func.func @_conv_stats_kernel(%arg0: i32, %arg1: memref<1024x36xbf16, #tpu.memory_space<vmem>>, %arg2: memref<36x128xbf16, #tpu.memory_space<vmem>>, %arg3: memref<1024x128xf32, #tpu.memory_space<vmem>>, %arg4: memref<8x128xf32, #tpu.memory_space<vmem>>, %arg5: memref<8x128xf32, #tpu.memory_space<vmem>>) attributes {dimension_semantics = [#tpu.dimension_semantics<parallel>], iteration_bounds = array<i64: 2>, scalar_prefetch = 0 : i64, scratch_operands = 0 : i64, tpu.core_type = #tpu.core_type<tc>, window_params = [{transform_indices = @transform_0, window_bounds = array<i64: 1024, 36>}, {pipeline_mode = #tpu.pipeline_mode<synchronous>, transform_indices = @transform_1, window_bounds = array<i64: 36, 128>}, {transform_indices = @transform_2, window_bounds = array<i64: 1024, 128>}, {transform_indices = @transform_3, window_bounds = array<i64: 8, 128>}, {transform_indices = @transform_4, window_bounds = array<i64: 8, 128>}]} {
    %c0 = arith.constant 0 : index
    %c0_0 = arith.constant 0 : index
    %0 = vector.load %arg1[%c0, %c0_0] : memref<1024x36xbf16, #tpu.memory_space<vmem>>, vector<1024x36xbf16>
    %c0_1 = arith.constant 0 : index
    %c0_2 = arith.constant 0 : index
    %1 = vector.load %arg2[%c0_1, %c0_2] : memref<36x128xbf16, #tpu.memory_space<vmem>>, vector<36x128xbf16>
    %cst = arith.constant dense<0.000000e+00> : vector<1024x128xf32>
    %2 = tpu.matmul %0, %1, %cst {dimension_numbers = #tpu.dot_dimension_numbers<[1], [0], [0], [1], [0, 0, 1, 1], [], []>} : vector<1024x36xbf16>, vector<36x128xbf16>, vector<1024x128xf32> -> vector<1024x128xf32>
    %c0_3 = arith.constant 0 : index
    %c0_4 = arith.constant 0 : index
    %3 = vector.load %arg3[%c0_3, %c0_4] : memref<1024x128xf32, #tpu.memory_space<vmem>>, vector<1024x128xf32>
    tpu.vector_store %arg3[%c0_3, %c0_4], %2 {strides = array<i32>} : memref<1024x128xf32, #tpu.memory_space<vmem>>, vector<1024x128xf32>,
    %cst_5 = arith.constant dense<0.000000e+00> : vector<128xf32>
    %4 = vector.multi_reduction <add>, %2, %cst_5 [0] : vector<1024x128xf32> to vector<128xf32>
    %5 = vector.shape_cast %4 : vector<128xf32> to vector<1x128xf32>
    %6 = arith.mulf %2, %2 : vector<1024x128xf32>
    %cst_6 = arith.constant dense<0.000000e+00> : vector<128xf32>
    %7 = vector.multi_reduction <add>, %6, %cst_6 [0] : vector<1024x128xf32> to vector<128xf32>
    %8 = vector.shape_cast %7 : vector<128xf32> to vector<1x128xf32>
    %9 = vector.shape_cast %5 : vector<1x128xf32> to vector<1x128xf32>
    %10 = vector.broadcast %9 : vector<1x128xf32> to vector<8x128xf32>
    %c0_7 = arith.constant 0 : index
    %c0_8 = arith.constant 0 : index
    %11 = vector.load %arg4[%c0_7, %c0_8] : memref<8x128xf32, #tpu.memory_space<vmem>>, vector<8x128xf32>
    tpu.vector_store %arg4[%c0_7, %c0_8], %10 {strides = array<i32>} : memref<8x128xf32, #tpu.memory_space<vmem>>, vector<8x128xf32>,
    %12 = vector.shape_cast %8 : vector<1x128xf32> to vector<1x128xf32>
    %13 = vector.broadcast %12 : vector<1x128xf32> to vector<8x128xf32>
    %c0_9 = arith.constant 0 : index
    %c0_10 = arith.constant 0 : index
    %14 = vector.load %arg5[%c0_9, %c0_10] : memref<8x128xf32, #tpu.memory_space<vmem>>, vector<8x128xf32>
    tpu.vector_store %arg5[%c0_9, %c0_10], %13 {strides = array<i32>} : memref<8x128xf32, #tpu.memory_space<vmem>>, vector<8x128xf32>,
    return
  }
  func.func @transform_0(%arg0: i32) -> (i32, i32) {
    %c0_i32 = arith.constant 0 : i32
    %c0_i32_0 = arith.constant 0 : i32
    return %arg0, %c0_i32 : i32, i32
  }
  func.func @transform_1(%arg0: i32) -> (i32, i32) {
    %c0_i32 = arith.constant 0 : i32
    %c0_i32_0 = arith.constant 0 : i32
    %c0_i32_1 = arith.constant 0 : i32
    return %c0_i32, %c0_i32_0 : i32, i32
  }
  func.func @transform_2(%arg0: i32) -> (i32, i32) {
    %c0_i32 = arith.constant 0 : i32
    %c0_i32_0 = arith.constant 0 : i32
    return %arg0, %c0_i32 : i32, i32
  }
  func.func @transform_3(%arg0: i32) -> (i32, i32) {
    %c0_i32 = arith.constant 0 : i32
    %c0_i32_0 = arith.constant 0 : i32
    return %arg0, %c0_i32 : i32, i32
  }
  func.func @transform_4(%arg0: i32) -> (i32, i32) {
    %c0_i32 = arith.constant 0 : i32
    %c0_i32_0 = arith.constant 0 : i32
    return %arg0, %c0_i32 : i32, i32
  }
}

</mosaic_0001>

<llo_original>
// kernel: decoder_forward.5
$region0: #{decoder_forward.5}
  #allocation0 [shape = 'u32[]', space=smem, size = 0x4, offset = 0x4, fixed_abs, tag = 'smem constant byte address 0x4 - core index']
  #allocation1 [shape = 'u32[144,128]{1,0:T(1,128)}', space=vmem, size = 0x12000, scoped, tag = 'internal scratch']
  %s0 = inlined_call_operand.vmem [shape: bf16[512,8], index: 0, kind: input, shape index: {}]
  %s1 = inlined_call_operand.vmem [shape: bf16[8,128], index: 1, kind: input, shape index: {}]
  %s2 = inlined_call_operand.vmem [shape: f32[1,128], index: 2, kind: input, shape index: {}]
  %s3 = inlined_call_operand.vmem [shape: f32[512,128], index: 3, kind: output, shape index: {}]
  %s4 = sld [smem:[#allocation0]]
  $region22: #{decoder_forward.5} parent=0
    _
  %s6 = ssub.s32 1, %s4
  %s7 = scalar_select 0, %s6, %s4
  // Predicated region
  $region2: #{decoder_forward.5} parent=0 // pred_check
    _
  $region3: #{decoder_forward.5} parent=0 // pred_check_branch
    %9 = sbr.rel (0) target = $region5
  $region4: #{decoder_forward.5} parent=0 // pred_region
    _
  $region5: #{decoder_forward.5} parent=0 // pred_fallthru
    _
  // Predicated region
  $region6: #{decoder_forward.5} parent=0 // pred_check
    _
  $region7: #{decoder_forward.5} parent=0 // pred_check_branch
    %11 = sbr.rel (0) target = $region9
  $region8: #{decoder_forward.5} parent=0 // pred_region
    _
  $region9: #{decoder_forward.5} parent=0 // pred_fallthru
    _
  // Predicated region
  $region10: #{decoder_forward.5} parent=0 // pred_check
    _
  $region11: #{decoder_forward.5} parent=0 // pred_check_branch
    %13 = sbr.rel (0) target = $region13
  $region12: #{decoder_forward.5} parent=0 // pred_region
    _
  $region13: #{decoder_forward.5} parent=0 // pred_fallthru
    _
  %v15 = vld [vmem:[%s0] sm:$0xf]
  %v16 = vld [vmem:[%s0 + $0x4] sm:$0xf]
  %v17 = vld [vmem:[%s0 + $0x8] sm:$0xf]
  %v18 = vld [vmem:[%s0 + $0xc] sm:$0xf]
  %v19 = vld [vmem:[%s0 + $0x10] sm:$0xf]
  %v20 = vld [vmem:[%s0 + $0x14] sm:$0xf]
  %v21 = vld [vmem:[%s0 + $0x18] sm:$0xf]
  %v22 = vld [vmem:[%s0 + $0x1c] sm:$0xf]
  %v23 = vld [vmem:[%s0 + $0x20] sm:$0xf]
  %v24 = vld [vmem:[%s0 + $0x24] sm:$0xf]
  %v25 = vld [vmem:[%s0 + $0x28] sm:$0xf]
  %v26 = vld [vmem:[%s0 + $0x2c] sm:$0xf]
  %v27 = vld [vmem:[%s0 + $0x30] sm:$0xf]
  %v28 = vld [vmem:[%s0 + $0x34] sm:$0xf]
  %v29 = vld [vmem:[%s0 + $0x38] sm:$0xf]
  %v30 = vld [vmem:[%s0 + $0x3c] sm:$0xf]
  %v31 = vld [vmem:[%s0 + $0x40] sm:$0xf]
  %v32 = vld [vmem:[%s0 + $0x44] sm:$0xf]
  %v33 = vld [vmem:[%s0 + $0x48] sm:$0xf]
  %v34 = vld [vmem:[%s0 + $0x4c] sm:$0xf]
  %v35 = vld [vmem:[%s0 + $0x50] sm:$0xf]
  %v36 = vld [vmem:[%s0 + $0x54] sm:$0xf]
  %v37 = vld [vmem:[%s0 + $0x58] sm:$0xf]
  %v38 = vld [vmem:[%s0 + $0x5c] sm:$0xf]
  %v39 = vld [vmem:[%s0 + $0x60] sm:$0xf]
  %v40 = vld [vmem:[%s0 + $0x64] sm:$0xf]
  %v41 = vld [vmem:[%s0 + $0x68] sm:$0xf]
  %v42 = vld [vmem:[%s0 + $0x6c] sm:$0xf]
  %v43 = vld [vmem:[%s0 + $0x70] sm:$0xf]
  %v44 = vld [vmem:[%s0 + $0x74] sm:$0xf]
  %v45 = vld [vmem:[%s0 + $0x78] sm:$0xf]
  %v46 = vld [vmem:[%s0 + $0x7c] sm:$0xf]
  %v47 = vld [vmem:[%s0 + $0x80] sm:$0xf]
  %v48 = vld [vmem:[%s0 + $0x84] sm:$0xf]
  %v49 = vld [vmem:[%s0 + $0x88] sm:$0xf]
  %v50 = vld [vmem:[%s0 + $0x8c] sm:$0xf]
  %v51 = vld [vmem:[%s0 + $0x90] sm:$0xf]
  %v52 = vld [vmem:[%s0 + $0x94] sm:$0xf]
  %v53 = vld [vmem:[%s0 + $0x98] sm:$0xf]
  %v54 = vld [vmem:[%s0 + $0x9c] sm:$0xf]
  %v55 = vld [vmem:[%s0 + $0xa0] sm:$0xf]
  %v56 = vld [vmem:[%s0 + $0xa4] sm:$0xf]
  %v57 = vld [vmem:[%s0 + $0xa8] sm:$0xf]
  %v58 = vld [vmem:[%s0 + $0xac] sm:$0xf]
  %v59 = vld [vmem:[%s0 + $0xb0] sm:$0xf]
  %v60 = vld [vmem:[%s0 + $0xb4] sm:$0xf]
  %v61 = vld [vmem:[%s0 + $0xb8] sm:$0xf]
  %v62 = vld [vmem:[%s0 + $0xbc] sm:$0xf]
  %v63 = vld [vmem:[%s0 + $0xc0] sm:$0xf]
  %v64 = vld [vmem:[%s0 + $0xc4] sm:$0xf]
  %v65 = vld [vmem:[%s0 + $0xc8] sm:$0xf]
  %v66 = vld [vmem:[%s0 + $0xcc] sm:$0xf]
  %v67 = vld [vmem:[%s0 + $0xd0] sm:$0xf]
  %v68 = vld [vmem:[%s0 + $0xd4] sm:$0xf]
  %v69 = vld [vmem:[%s0 + $0xd8] sm:$0xf]
  %v70 = vld [vmem:[%s0 + $0xdc] sm:$0xf]
  %v71 = vld [vmem:[%s0 + $0xe0] sm:$0xf]
  %v72 = vld [vmem:[%s0 + $0xe4] sm:$0xf]
  %v73 = vld [vmem:[%s0 + $0xe8] sm:$0xf]
  %v74 = vld [vmem:[%s0 + $0xec] sm:$0xf]
  %v75 = vld [vmem:[%s0 + $0xf0] sm:$0xf]
  %v76 = vld [vmem:[%s0 + $0xf4] sm:$0xf]
  %v77 = vld [vmem:[%s0 + $0xf8] sm:$0xf]
  %v78 = vld [vmem:[%s0 + $0xfc] sm:$0xf]
  %v79 = vld [vmem:[%s1] sm:$0xf]
  %v80 = vld [vmem:[%s2] sm:$0x1]
  %v82 = vlaneseq
  %v83 = vshrl.u32 %v82, 7
  %v84 = vsub.s32 0, %v83
  %v85 = vrot.slane %v80, %v84
  %v151 = vunpack.c.l.b16 %v15
  %v152 = vunpack.c.l.b16 %v16
  %v153 = vunpack.c.l.b16 %v17
  %v154 = vunpack.c.l.b16 %v18
  %v155 = vunpack.c.l.b16 %v19
  %v156 = vunpack.c.l.b16 %v20
  %v157 = vunpack.c.l.b16 %v21
  %v158 = vunpack.c.l.b16 %v22
  %v159 = vunpack.c.l.b16 %v23
  %v160 = vunpack.c.l.b16 %v24
  %v161 = vunpack.c.l.b16 %v25
  %v162 = vunpack.c.l.b16 %v26
  %v163 = vunpack.c.l.b16 %v27
  %v164 = vunpack.c.l.b16 %v28
  %v165 = vunpack.c.l.b16 %v29
  %v166 = vunpack.c.l.b16 %v30
  %v167 = vunpack.c.l.b16 %v31
  %v168 = vunpack.c.l.b16 %v32
  %v169 = vunpack.c.l.b16 %v33
  %v170 = vunpack.c.l.b16 %v34
  %v171 = vunpack.c.l.b16 %v35
  %v172 = vunpack.c.l.b16 %v36
  %v173 = vunpack.c.l.b16 %v37
  %v174 = vunpack.c.l.b16 %v38
  %v175 = vunpack.c.l.b16 %v39
  %v176 = vunpack.c.l.b16 %v40
  %v177 = vunpack.c.l.b16 %v41
  %v178 = vunpack.c.l.b16 %v42
  %v179 = vunpack.c.l.b16 %v43
  %v180 = vunpack.c.l.b16 %v44
  %v181 = vunpack.c.l.b16 %v45
  %v182 = vunpack.c.l.b16 %v46
  %v183 = vunpack.c.l.b16 %v47
  %v184 = vunpack.c.l.b16 %v48
  %v185 = vunpack.c.l.b16 %v49
  %v186 = vunpack.c.l.b16 %v50
  %v187 = vunpack.c.l.b16 %v51
  %v188 = vunpack.c.l.b16 %v52
  %v189 = vunpack.c.l.b16 %v53
  %v190 = vunpack.c.l.b16 %v54
  %v191 = vunpack.c.l.b16 %v55
  %v192 = vunpack.c.l.b16 %v56
  %v193 = vunpack.c.l.b16 %v57
  %v194 = vunpack.c.l.b16 %v58
  %v195 = vunpack.c.l.b16 %v59
  %v196 = vunpack.c.l.b16 %v60
  %v197 = vunpack.c.l.b16 %v61
  %v198 = vunpack.c.l.b16 %v62
  %v199 = vunpack.c.l.b16 %v63
  %v200 = vunpack.c.l.b16 %v64
  %v201 = vunpack.c.l.b16 %v65
  %v202 = vunpack.c.l.b16 %v66
  %v203 = vunpack.c.l.b16 %v67
  %v204 = vunpack.c.l.b16 %v68
  %v205 = vunpack.c.l.b16 %v69
  %v206 = vunpack.c.l.b16 %v70
  %v207 = vunpack.c.l.b16 %v71
  %v208 = vunpack.c.l.b16 %v72
  %v209 = vunpack.c.l.b16 %v73
  %v210 = vunpack.c.l.b16 %v74
  %v211 = vunpack.c.l.b16 %v75
  %v212 = vunpack.c.l.b16 %v76
  %v213 = vunpack.c.l.b16 %v77
  %v214 = vunpack.c.l.b16 %v78
  %v215 = vpack.c.b16 %v152, %v151
  %v216 = vpack.c.b16 %v154, %v153
  %v217 = vpack.c.b16 %v156, %v155
  %v218 = vpack.c.b16 %v158, %v157
  %v219 = vpack.c.b16 %v160, %v159
  %v220 = vpack.c.b16 %v162, %v161
  %v221 = vpack.c.b16 %v164, %v163
  %v222 = vpack.c.b16 %v166, %v165
  %v223 = vpack.c.b16 %v168, %v167
  %v224 = vpack.c.b16 %v170, %v169
  %v225 = vpack.c.b16 %v172, %v171
  %v226 = vpack.c.b16 %v174, %v173
  %v227 = vpack.c.b16 %v176, %v175
  %v228 = vpack.c.b16 %v178, %v177
  %v229 = vpack.c.b16 %v180, %v179
  %v230 = vpack.c.b16 %v182, %v181
  %v231 = vpack.c.b16 %v184, %v183
  %v232 = vpack.c.b16 %v186, %v185
  %v233 = vpack.c.b16 %v188, %v187
  %v234 = vpack.c.b16 %v190, %v189
  %v235 = vpack.c.b16 %v192, %v191
  %v236 = vpack.c.b16 %v194, %v193
  %v237 = vpack.c.b16 %v196, %v195
  %v238 = vpack.c.b16 %v198, %v197
  %v239 = vpack.c.b16 %v200, %v199
  %v240 = vpack.c.b16 %v202, %v201
  %v241 = vpack.c.b16 %v204, %v203
  %v242 = vpack.c.b16 %v206, %v205
  %v243 = vpack.c.b16 %v208, %v207
  %v244 = vpack.c.b16 %v210, %v209
  %v245 = vpack.c.b16 %v212, %v211
  %v246 = vpack.c.b16 %v214, %v213
  %vm247 = vcmask 64512
  %v249 = vsel %vm247, %v215, 0
  %v252 = vsel %vm247, %v216, 0
  %v255 = vsel %vm247, %v217, 0
  %v258 = vsel %vm247, %v218, 0
  %v261 = vsel %vm247, %v219, 0
  %v264 = vsel %vm247, %v220, 0
  %v267 = vsel %vm247, %v221, 0
  %v270 = vsel %vm247, %v222, 0
  %v273 = vsel %vm247, %v223, 0
  %v276 = vsel %vm247, %v224, 0
  %v279 = vsel %vm247, %v225, 0
  %v282 = vsel %vm247, %v226, 0
  %v285 = vsel %vm247, %v227, 0
  %v288 = vsel %vm247, %v228, 0
  %v291 = vsel %vm247, %v229, 0
  %v294 = vsel %vm247, %v230, 0
  %v297 = vsel %vm247, %v231, 0
  %v300 = vsel %vm247, %v232, 0
  %v303 = vsel %vm247, %v233, 0
  %v306 = vsel %vm247, %v234, 0
  %v309 = vsel %vm247, %v235, 0
  %v312 = vsel %vm247, %v236, 0
  %v315 = vsel %vm247, %v237, 0
  %v318 = vsel %vm247, %v238, 0
  %v321 = vsel %vm247, %v239, 0
  %v324 = vsel %vm247, %v240, 0
  %v327 = vsel %vm247, %v241, 0
  %v330 = vsel %vm247, %v242, 0
  %v333 = vsel %vm247, %v243, 0
  %v336 = vsel %vm247, %v244, 0
  %v339 = vsel %vm247, %v245, 0
  %v342 = vsel %vm247, %v246, 0
  %vm344 = vcmask 1043456
  %v346 = vsel %vm344, %v79, 0
  %348 = vmatprep.subr.bf16.mxu0 0
  %349 = vmatpush1.bf16.msra.mxu0 0
  %350 = vmatprep.subr.bf16.mxu0 0
  %351 = vmatpush1.bf16.msra.mxu0 0
  %352 = vmatprep.subr.bf16.mxu0 0
  %353 = vmatpush1.bf16.msra.mxu0 0
  %354 = vmatprep.subr.bf16.mxu0 0
  %355 = vmatpush1.bf16.msra.mxu0 0
  %356 = vmatprep.subr.bf16.mxu0 0
  %357 = vmatpush1.bf16.msra.mxu0 0
  %358 = vmatprep.subr.bf16.mxu0 0
  %359 = vmatpush1.bf16.msra.mxu0 0
  %360 = vmatprep.subr.bf16.mxu0 0
  %361 = vmatpush1.bf16.msra.mxu0 0
  %362 = vmatprep.subr.bf16.mxu0 0
  %363 = vmatpush1.bf16.msra.mxu0 %v346
  %364 = vmatprep.subr.bf16.mxu0 0
  %365 = vmatpush2.bf16.msra.mxu0 0
  %366 = vmatprep.subr.bf16.mxu0 0
  %367 = vmatpush2.bf16.msra.mxu0 0
  %368 = vmatprep.subr.bf16.mxu0 0
  %369 = vmatpush2.bf16.msra.mxu0 0
  %370 = vmatprep.subr.bf16.mxu0 0
  %371 = vmatpush2.bf16.msra.mxu0 0
  %372 = vmatprep.subr.bf16.mxu0 0
  %373 = vmatpush2.bf16.msra.mxu0 0
  %374 = vmatprep.subr.bf16.mxu0 0
  %375 = vmatpush2.bf16.msra.mxu0 0
  %376 = vmatprep.subr.bf16.mxu0 0
  %377 = vmatpush2.bf16.msra.mxu0 0
  %378 = vmatprep.subr.bf16.mxu0 0
  %379 = vmatpush2.bf16.msra.mxu0 0
  %380 = vmatprep.mubr.bf16.mxu0 0
  %381 = vmatmul.mubr.bf16.gmra.mxu0 %v249
  %v382 = vpop.f32.mrf.mxu0
  %v383 = vadd.f32 %v85, %v382
  %v384 = vpop.f32.mrf.mxu0
  %v385 = vpop.f32.mrf.mxu0
  %v386 = vadd.f32 %v85, %v385
  %v387 = vpop.f32.mrf.mxu0
  %388 = vmatprep.mubr.bf16.mxu0 0
  %389 = vmatmul.mubr.bf16.gmra.mxu0 %v252
  %v390 = vpop.f32.mrf.mxu0
  %v391 = vadd.f32 %v85, %v390
  %v392 = vpop.f32.mrf.mxu0
  %v393 = vpop.f32.mrf.mxu0
  %v394 = vadd.f32 %v85, %v393
  %v395 = vpop.f32.mrf.mxu0
  %396 = vmatprep.mubr.bf16.mxu0 0
  %397 = vmatmul.mubr.bf16.gmra.mxu0 %v255
  %v398 = vpop.f32.mrf.mxu0
  %v399 = vadd.f32 %v85, %v398
  %v400 = vpop.f32.mrf.mxu0
  %v401 = vpop.f32.mrf.mxu0
  %v402 = vadd.f32 %v85, %v401
  %v403 = vpop.f32.mrf.mxu0
  %404 = vmatprep.mubr.bf16.mxu0 0
  %405 = vmatmul.mubr.bf16.gmra.mxu0 %v258
  %v406 = vpop.f32.mrf.mxu0
  %v407 = vadd.f32 %v85, %v406
  %v408 = vpop.f32.mrf.mxu0
  %v409 = vpop.f32.mrf.mxu0
  %v410 = vadd.f32 %v85, %v409
  %v411 = vpop.f32.mrf.mxu0
  %412 = vmatprep.mubr.bf16.mxu0 0
  %413 = vmatmul.mubr.bf16.gmra.mxu0 %v261
  %v414 = vpop.f32.mrf.mxu0
  %v415 = vadd.f32 %v85, %v414
  %v416 = vpop.f32.mrf.mxu0
  %v417 = vpop.f32.mrf.mxu0
  %v418 = vadd.f32 %v85, %v417
  %v419 = vpop.f32.mrf.mxu0
  %420 = vmatprep.mubr.bf16.mxu0 0
  %421 = vmatmul.mubr.bf16.gmra.mxu0 %v264
  %v422 = vpop.f32.mrf.mxu0
  %v423 = vadd.f32 %v85, %v422
  %v424 = vpop.f32.mrf.mxu0
  %v425 = vpop.f32.mrf.mxu0
  %v426 = vadd.f32 %v85, %v425
  %v427 = vpop.f32.mrf.mxu0
  %428 = vmatprep.mubr.bf16.mxu0 0
  %429 = vmatmul.mubr.bf16.gmra.mxu0 %v267
  %v430 = vpop.f32.mrf.mxu0
  %v431 = vadd.f32 %v85, %v430
  %v432 = vpop.f32.mrf.mxu0
  %v433 = vpop.f32.mrf.mxu0
  %v434 = vadd.f32 %v85, %v433
  %v435 = vpop.f32.mrf.mxu0
  %436 = vmatprep.mubr.bf16.mxu0 0
  %437 = vmatmul.mubr.bf16.gmra.mxu0 %v270
  %v438 = vpop.f32.mrf.mxu0
  %v439 = vadd.f32 %v85, %v438
  %v440 = vpop.f32.mrf.mxu0
  %v441 = vpop.f32.mrf.mxu0
  %v442 = vadd.f32 %v85, %v441
  %v443 = vpop.f32.mrf.mxu0
  %444 = vmatprep.mubr.bf16.mxu0 0
  %445 = vmatmul.mubr.bf16.gmra.mxu0 %v273
  %v446 = vpop.f32.mrf.mxu0
  %v447 = vadd.f32 %v85, %v446
  %v448 = vpop.f32.mrf.mxu0
  %v449 = vpop.f32.mrf.mxu0
  %v450 = vadd.f32 %v85, %v449
  %v451 = vpop.f32.mrf.mxu0
  %452 = vmatprep.mubr.bf16.mxu0 0
  %453 = vmatmul.mubr.bf16.gmra.mxu0 %v276
  %v454 = vpop.f32.mrf.mxu0
  %v455 = vadd.f32 %v85, %v454
  %v456 = vpop.f32.mrf.mxu0
  %v457 = vpop.f32.mrf.mxu0
  %v458 = vadd.f32 %v85, %v457
  %v459 = vpop.f32.mrf.mxu0
  %460 = vmatprep.mubr.bf16.mxu0 0
  %461 = vmatmul.mubr.bf16.gmra.mxu0 %v279
  %v462 = vpop.f32.mrf.mxu0
  %v463 = vadd.f32 %v85, %v462
  %v464 = vpop.f32.mrf.mxu0
  %v465 = vpop.f32.mrf.mxu0
  %v466 = vadd.f32 %v85, %v465
  %v467 = vpop.f32.mrf.mxu0
  %468 = vmatprep.mubr.bf16.mxu0 0
  %469 = vmatmul.mubr.bf16.gmra.mxu0 %v282
  %v470 = vpop.f32.mrf.mxu0
  %v471 = vadd.f32 %v85, %v470
  %v472 = vpop.f32.mrf.mxu0
  %v473 = vpop.f32.mrf.mxu0
  %v474 = vadd.f32 %v85, %v473
  %v475 = vpop.f32.mrf.mxu0
  %476 = vmatprep.mubr.bf16.mxu0 0
  %477 = vmatmul.mubr.bf16.gmra.mxu0 %v285
  %v478 = vpop.f32.mrf.mxu0
  %v479 = vadd.f32 %v85, %v478
  %v480 = vpop.f32.mrf.mxu0
  %v481 = vpop.f32.mrf.mxu0
  %v482 = vadd.f32 %v85, %v481
  %v483 = vpop.f32.mrf.mxu0
  %484 = vmatprep.mubr.bf16.mxu0 0
  %485 = vmatmul.mubr.bf16.gmra.mxu0 %v288
  %v486 = vpop.f32.mrf.mxu0
  %v487 = vadd.f32 %v85, %v486
  %v488 = vpop.f32.mrf.mxu0
  %v489 = vpop.f32.mrf.mxu0
  %v490 = vadd.f32 %v85, %v489
  %v491 = vpop.f32.mrf.mxu0
  %492 = vmatprep.mubr.bf16.mxu0 0
  %493 = vmatmul.mubr.bf16.gmra.mxu0 %v291
  %v494 = vpop.f32.mrf.mxu0
  %v495 = vadd.f32 %v85, %v494
  %v496 = vpop.f32.mrf.mxu0
  %v497 = vpop.f32.mrf.mxu0
  %v498 = vadd.f32 %v85, %v497
  %v499 = vpop.f32.mrf.mxu0
  %500 = vmatprep.mubr.bf16.mxu0 0
  %501 = vmatmul.mubr.bf16.gmra.mxu0 %v294
  %v502 = vpop.f32.mrf.mxu0
  %v503 = vadd.f32 %v85, %v502
  %v504 = vpop.f32.mrf.mxu0
  %v505 = vpop.f32.mrf.mxu0
  %v506 = vadd.f32 %v85, %v505
  %v507 = vpop.f32.mrf.mxu0
  %508 = vmatprep.mubr.bf16.mxu0 0
  %509 = vmatmul.mubr.bf16.gmra.mxu0 %v297
  %v510 = vpop.f32.mrf.mxu0
  %v511 = vadd.f32 %v85, %v510
  %v512 = vpop.f32.mrf.mxu0
  %v513 = vpop.f32.mrf.mxu0
  %v514 = vadd.f32 %v85, %v513
  %v515 = vpop.f32.mrf.mxu0
  %516 = vmatprep.mubr.bf16.mxu0 0
  %517 = vmatmul.mubr.bf16.gmra.mxu0 %v300
  %v518 = vpop.f32.mrf.mxu0
  %v519 = vadd.f32 %v85, %v518
  %v520 = vpop.f32.mrf.mxu0
  %v521 = vpop.f32.mrf.mxu0
  %v522 = vadd.f32 %v85, %v521
  %v523 = vpop.f32.mrf.mxu0
  %524 = vmatprep.mubr.bf16.mxu0 0
  %525 = vmatmul.mubr.bf16.gmra.mxu0 %v303
  %v526 = vpop.f32.mrf.mxu0
  %v527 = vadd.f32 %v85, %v526
  %v528 = vpop.f32.mrf.mxu0
  %v529 = vpop.f32.mrf.mxu0
  %v530 = vadd.f32 %v85, %v529
  %v531 = vpop.f32.mrf.mxu0
  %532 = vmatprep.mubr.bf16.mxu0 0
  %533 = vmatmul.mubr.bf16.gmra.mxu0 %v306
  %v534 = vpop.f32.mrf.mxu0
  %v535 = vadd.f32 %v85, %v534
  %v536 = vpop.f32.mrf.mxu0
  %v537 = vpop.f32.mrf.mxu0
  %v538 = vadd.f32 %v85, %v537
  %v539 = vpop.f32.mrf.mxu0
  %540 = vmatprep.mubr.bf16.mxu0 0
  %541 = vmatmul.mubr.bf16.gmra.mxu0 %v309
  %v542 = vpop.f32.mrf.mxu0
  %v543 = vadd.f32 %v85, %v542
  %v544 = vpop.f32.mrf.mxu0
  %v545 = vpop.f32.mrf.mxu0
  %v546 = vadd.f32 %v85, %v545
  %v547 = vpop.f32.mrf.mxu0
  %548 = vmatprep.mubr.bf16.mxu0 0
  %549 = vmatmul.mubr.bf16.gmra.mxu0 %v312
  %v550 = vpop.f32.mrf.mxu0
  %v551 = vadd.f32 %v85, %v550
  %v552 = vpop.f32.mrf.mxu0
  %v553 = vpop.f32.mrf.mxu0
  %v554 = vadd.f32 %v85, %v553
  %v555 = vpop.f32.mrf.mxu0
  %556 = vmatprep.mubr.bf16.mxu0 0
  %557 = vmatmul.mubr.bf16.gmra.mxu0 %v315
  %v558 = vpop.f32.mrf.mxu0
  %v559 = vadd.f32 %v85, %v558
  %v560 = vpop.f32.mrf.mxu0
  %v561 = vpop.f32.mrf.mxu0
  %v562 = vadd.f32 %v85, %v561
  %v563 = vpop.f32.mrf.mxu0
  %564 = vmatprep.mubr.bf16.mxu0 0
  %565 = vmatmul.mubr.bf16.gmra.mxu0 %v318
  %v566 = vpop.f32.mrf.mxu0
  %v567 = vadd.f32 %v85, %v566
  %v568 = vpop.f32.mrf.mxu0
  %v569 = vpop.f32.mrf.mxu0
  %v570 = vadd.f32 %v85, %v569
  %v571 = vpop.f32.mrf.mxu0
  %572 = vmatprep.mubr.bf16.mxu0 0
  %573 = vmatmul.mubr.bf16.gmra.mxu0 %v321
  %v574 = vpop.f32.mrf.mxu0
  %v575 = vadd.f32 %v85, %v574
  %v576 = vpop.f32.mrf.mxu0
  %v577 = vpop.f32.mrf.mxu0
  %v578 = vadd.f32 %v85, %v577
  %v579 = vpop.f32.mrf.mxu0
  %580 = vmatprep.mubr.bf16.mxu0 0
  %581 = vmatmul.mubr.bf16.gmra.mxu0 %v324
  %v582 = vpop.f32.mrf.mxu0
  %v583 = vadd.f32 %v85, %v582
  %v584 = vpop.f32.mrf.mxu0
  %v585 = vpop.f32.mrf.mxu0
  %v586 = vadd.f32 %v85, %v585
  %v587 = vpop.f32.mrf.mxu0
  %588 = vmatprep.mubr.bf16.mxu0 0
  %589 = vmatmul.mubr.bf16.gmra.mxu0 %v327
  %v590 = vpop.f32.mrf.mxu0
  %v591 = vadd.f32 %v85, %v590
  %v592 = vpop.f32.mrf.mxu0
  %v593 = vpop.f32.mrf.mxu0
  %v594 = vadd.f32 %v85, %v593
  %v595 = vpop.f32.mrf.mxu0
  %596 = vmatprep.mubr.bf16.mxu0 0
  %597 = vmatmul.mubr.bf16.gmra.mxu0 %v330
  %v598 = vpop.f32.mrf.mxu0
  %v599 = vadd.f32 %v85, %v598
  %v600 = vpop.f32.mrf.mxu0
  %v601 = vpop.f32.mrf.mxu0
  %v602 = vadd.f32 %v85, %v601
  %v603 = vpop.f32.mrf.mxu0
  %604 = vmatprep.mubr.bf16.mxu0 0
  %605 = vmatmul.mubr.bf16.gmra.mxu0 %v333
  %v606 = vpop.f32.mrf.mxu0
  %v607 = vadd.f32 %v85, %v606
  %v608 = vpop.f32.mrf.mxu0
  %v609 = vpop.f32.mrf.mxu0
  %v610 = vadd.f32 %v85, %v609
  %v611 = vpop.f32.mrf.mxu0
  %612 = vmatprep.mubr.bf16.mxu0 0
  %613 = vmatmul.mubr.bf16.gmra.mxu0 %v336
  %v614 = vpop.f32.mrf.mxu0
  %v615 = vadd.f32 %v85, %v614
  %v616 = vpop.f32.mrf.mxu0
  %v617 = vpop.f32.mrf.mxu0
  %v618 = vadd.f32 %v85, %v617
  %v619 = vpop.f32.mrf.mxu0
  %620 = vmatprep.mubr.bf16.mxu0 0
  %621 = vmatmul.mubr.bf16.gmra.mxu0 %v339
  %v622 = vpop.f32.mrf.mxu0
  %v623 = vadd.f32 %v85, %v622
  %v624 = vpop.f32.mrf.mxu0
  %v625 = vpop.f32.mrf.mxu0
  %v626 = vadd.f32 %v85, %v625
  %v627 = vpop.f32.mrf.mxu0
  %628 = vmatprep.mubr.bf16.mxu0 0
  %629 = vmatmul.mubr.bf16.gmra.mxu0 %v342
  %v630 = vpop.f32.mrf.mxu0
  %v631 = vadd.f32 %v85, %v630
  %v632 = vpop.f32.mrf.mxu0
  %v633 = vpop.f32.mrf.mxu0
  %v634 = vadd.f32 %v85, %v633
  %v635 = vpop.f32.mrf.mxu0
  %636 = vdwg.mxu0
  %637 = vst [vmem:[%s3] sm:$0xff] %v383
  %638 = vst [vmem:[%s3 + $0x8] sm:$0xff] %v386
  %639 = vst [vmem:[%s3 + $0x10] sm:$0xff] %v391
  %640 = vst [vmem:[%s3 + $0x18] sm:$0xff] %v394
  %641 = vst [vmem:[%s3 + $0x20] sm:$0xff] %v399
  %642 = vst [vmem:[%s3 + $0x28] sm:$0xff] %v402
  %643 = vst [vmem:[%s3 + $0x30] sm:$0xff] %v407
  %644 = vst [vmem:[%s3 + $0x38] sm:$0xff] %v410
  %645 = vst [vmem:[%s3 + $0x40] sm:$0xff] %v415
  %646 = vst [vmem:[%s3 + $0x48] sm:$0xff] %v418
  %647 = vst [vmem:[%s3 + $0x50] sm:$0xff] %v423
  %648 = vst [vmem:[%s3 + $0x58] sm:$0xff] %v426
  %649 = vst [vmem:[%s3 + $0x60] sm:$0xff] %v431
  %650 = vst [vmem:[%s3 + $0x68] sm:$0xff] %v434
  %651 = vst [vmem:[%s3 + $0x70] sm:$0xff] %v439
  %652 = vst [vmem:[%s3 + $0x78] sm:$0xff] %v442
  %653 = vst [vmem:[%s3 + $0x80] sm:$0xff] %v447
  %654 = vst [vmem:[%s3 + $0x88] sm:$0xff] %v450
  %655 = vst [vmem:[%s3 + $0x90] sm:$0xff] %v455
  %656 = vst [vmem:[%s3 + $0x98] sm:$0xff] %v458
  %657 = vst [vmem:[%s3 + $0xa0] sm:$0xff] %v463
  %658 = vst [vmem:[%s3 + $0xa8] sm:$0xff] %v466
  %659 = vst [vmem:[%s3 + $0xb0] sm:$0xff] %v471
  %660 = vst [vmem:[%s3 + $0xb8] sm:$0xff] %v474
  %661 = vst [vmem:[%s3 + $0xc0] sm:$0xff] %v479
  %662 = vst [vmem:[%s3 + $0xc8] sm:$0xff] %v482
  %663 = vst [vmem:[%s3 + $0xd0] sm:$0xff] %v487
  %664 = vst [vmem:[%s3 + $0xd8] sm:$0xff] %v490
  %665 = vst [vmem:[%s3 + $0xe0] sm:$0xff] %v495
  %666 = vst [vmem:[%s3 + $0xe8] sm:$0xff] %v498
  %667 = vst [vmem:[%s3 + $0xf0] sm:$0xff] %v503
  %668 = vst [vmem:[%s3 + $0xf8] sm:$0xff] %v506
  %669 = vst [vmem:[%s3 + $0x100] sm:$0xff] %v511
  %670 = vst [vmem:[%s3 + $0x108] sm:$0xff] %v514
  %671 = vst [vmem:[%s3 + $0x110] sm:$0xff] %v519
  %672 = vst [vmem:[%s3 + $0x118] sm:$0xff] %v522
  %673 = vst [vmem:[%s3 + $0x120] sm:$0xff] %v527
  %674 = vst [vmem:[%s3 + $0x128] sm:$0xff] %v530
  %675 = vst [vmem:[%s3 + $0x130] sm:$0xff] %v535
  %676 = vst [vmem:[%s3 + $0x138] sm:$0xff] %v538
  %677 = vst [vmem:[%s3 + $0x140] sm:$0xff] %v543
  %678 = vst [vmem:[%s3 + $0x148] sm:$0xff] %v546
  %679 = vst [vmem:[%s3 + $0x150] sm:$0xff] %v551
  %680 = vst [vmem:[%s3 + $0x158] sm:$0xff] %v554
  %681 = vst [vmem:[%s3 + $0x160] sm:$0xff] %v559
  %682 = vst [vmem:[%s3 + $0x168] sm:$0xff] %v562
  %683 = vst [vmem:[%s3 + $0x170] sm:$0xff] %v567
  %684 = vst [vmem:[%s3 + $0x178] sm:$0xff] %v570
  %685 = vst [vmem:[%s3 + $0x180] sm:$0xff] %v575
  %686 = vst [vmem:[%s3 + $0x188] sm:$0xff] %v578
  %687 = vst [vmem:[%s3 + $0x190] sm:$0xff] %v583
  %688 = vst [vmem:[%s3 + $0x198] sm:$0xff] %v586
  %689 = vst [vmem:[%s3 + $0x1a0] sm:$0xff] %v591
  %690 = vst [vmem:[%s3 + $0x1a8] sm:$0xff] %v594
  %691 = vst [vmem:[%s3 + $0x1b0] sm:$0xff] %v599
  %692 = vst [vmem:[%s3 + $0x1b8] sm:$0xff] %v602
  %693 = vst [vmem:[%s3 + $0x1c0] sm:$0xff] %v607
  %694 = vst [vmem:[%s3 + $0x1c8] sm:$0xff] %v610
  %695 = vst [vmem:[%s3 + $0x1d0] sm:$0xff] %v615
  %696 = vst [vmem:[%s3 + $0x1d8] sm:$0xff] %v618
  %697 = vst [vmem:[%s3 + $0x1e0] sm:$0xff] %v623
  %698 = vst [vmem:[%s3 + $0x1e8] sm:$0xff] %v626
  %699 = vst [vmem:[%s3 + $0x1f0] sm:$0xff] %v631
  %700 = vst [vmem:[%s3 + $0x1f8] sm:$0xff] %v634
  // Predicated region
  $region14: #{decoder_forward.5} parent=0 // pred_check
    _
  $region15: #{decoder_forward.5} parent=0 // pred_check_branch
    %702 = sbr.rel (0) target = $region17
  $region16: #{decoder_forward.5} parent=0 // pred_region
    _
  $region17: #{decoder_forward.5} parent=0 // pred_fallthru
    _
  // Predicated region
  $region18: #{decoder_forward.5} parent=0 // pred_check
    _
  $region19: #{decoder_forward.5} parent=0 // pred_check_branch
    %704 = sbr.rel (0) target = $region21
  $region20: #{decoder_forward.5} parent=0 // pred_region
    _
  $region21: #{decoder_forward.5} parent=0 // pred_fallthru
    _

// kernel: decoder_forward.7
$region0: #{decoder_forward.7}
  #allocation0 [shape = 'u32[]', space=smem, size = 0x4, offset = 0x4, fixed_abs, tag = 'smem constant byte address 0x4 - core index']
  #allocation1 [shape = 'u32[144,128]{1,0:T(1,128)}', space=vmem, size = 0x12000, scoped, tag = 'internal scratch']
  %s0 = inlined_call_operand.vmem [shape: f32[2048,128], index: 0, kind: input, shape index: {}]
  %s1 = inlined_call_operand.vmem [shape: f32[1,128], index: 1, kind: input, shape index: {}]
  %s2 = inlined_call_operand.vmem [shape: f32[1,128], index: 2, kind: input, shape index: {}]
  %s3 = inlined_call_operand.vmem [shape: f32[2048,128], index: 3, kind: output, shape index: {}]
  %s4 = sld [smem:[#allocation0]]
  $region45: #{decoder_forward.7} parent=0
    _
  %s6 = ssub.s32 1, %s4
  %s7 = scalar_select 0, %s6, %s4
  loop: start=0, step=1, limit=4
  $region2: #{decoder_forward.7} parent=0 // loop_pre_header
    _
  $region3: #{decoder_forward.7} parent=0 // loop_header
    %s9 = sphi 0, %s13
    %p10 = scmp.ge.s32.totalorder %s9, 4
    %s19 = sphi 0, %s21
    %s22 = sphi 0, %s19
    %s23 = sphi 0, %s22
    %s39 = sphi 0, %s23
    %s43 = sphi 0, %s43
    %s45 = sphi 0, %s43
    %s46 = sphi 0, %s45
    %s60 = sphi 0, %s46
    %s64 = sphi 0, %s64
    %s66 = sphi 0, %s64
    %s67 = sphi 0, %s66
    %s81 = sphi 0, %s67
    %s87 = sphi 0, %s89
    %s90 = sphi 0, %s87
    %s91 = sphi 0, %s90
    %s107 = sphi 0, %s91
  $region4: #{decoder_forward.7} parent=0 // loop_header_branch
    %12 = sbr.rel (%p10) target = $region8
  $region5: #{decoder_forward.7} parent=0 // loop_body
    %s14 = ssub.s32 %s9, 1
    %s15 = ssub.s32 %s9, 2
    %s16 = sadd.s32 %s9, 1
    %s17 = ssub.s32 %s9, %s16
    %p18 = scmp.eq.s32.totalorder %s17, 0
    %s20 = sadd.s32 %s19, 1
    %s21 = scalar_select %p18, %s19, %s20
    %p24 = pneg %p18
    %p25 = scmp.eq.s32.totalorder %s9, 1
    %p26 = por %p24, %p25
    %p27 = scmp.ne.s32.totalorder %s19, %s22
    %p28 = scmp.eq.s32.totalorder %s9, 0
    %p29 = por %p27, %p28
    %p30 = scmp.ne.s32.totalorder %s19, %s22
    %p31 = scmp.eq.s32.totalorder %s14, 1
    %p32 = por %p30, %p31
    %p33 = scmp.ne.s32.totalorder %s22, %s23
    %p34 = scmp.eq.s32.totalorder %s14, 0
    %p35 = por %p33, %p34
    %p36 = scmp.ne.s32.totalorder %s22, %s23
    %p37 = scmp.eq.s32.totalorder %s15, 1
    %p38 = por %p36, %p37
    %p40 = scmp.ne.s32.totalorder %s23, %s39
    %p41 = scmp.eq.s32.totalorder %s15, 0
    %p42 = por %p40, %p41
    %s44 = sadd.s32 %s43, 1
    %p47 = scmp.eq.s32.totalorder %s9, 1
    %p48 = scmp.ne.s32.totalorder %s43, %s45
    %p49 = scmp.eq.s32.totalorder %s9, 0
    %p50 = por %p48, %p49
    %p51 = scmp.ne.s32.totalorder %s43, %s45
    %p52 = scmp.eq.s32.totalorder %s14, 1
    %p53 = por %p51, %p52
    %p54 = scmp.ne.s32.totalorder %s45, %s46
    %p55 = scmp.eq.s32.totalorder %s14, 0
    %p56 = por %p54, %p55
    %p57 = scmp.ne.s32.totalorder %s45, %s46
    %p58 = scmp.eq.s32.totalorder %s15, 1
    %p59 = por %p57, %p58
    %p61 = scmp.ne.s32.totalorder %s46, %s60
    %p62 = scmp.eq.s32.totalorder %s15, 0
    %p63 = por %p61, %p62
    %s65 = sadd.s32 %s64, 1
    %p68 = scmp.eq.s32.totalorder %s9, 1
    %p69 = scmp.ne.s32.totalorder %s64, %s66
    %p70 = scmp.eq.s32.totalorder %s9, 0
    %p71 = por %p69, %p70
    %p72 = scmp.ne.s32.totalorder %s64, %s66
    %p73 = scmp.eq.s32.totalorder %s14, 1
    %p74 = por %p72, %p73
    %p75 = scmp.ne.s32.totalorder %s66, %s67
    %p76 = scmp.eq.s32.totalorder %s14, 0
    %p77 = por %p75, %p76
    %p78 = scmp.ne.s32.totalorder %s66, %s67
    %p79 = scmp.eq.s32.totalorder %s15, 1
    %p80 = por %p78, %p79
    %p82 = scmp.ne.s32.totalorder %s67, %s81
    %p83 = scmp.eq.s32.totalorder %s15, 0
    %p84 = por %p82, %p83
    %s85 = ssub.s32 %s9, %s16
    %p86 = scmp.eq.s32.totalorder %s85, 0
    %s88 = sadd.s32 %s87, 1
    %s89 = scalar_select %p86, %s87, %s88
    %p92 = pneg %p86
    %p93 = scmp.eq.s32.totalorder %s9, 1
    %p94 = por %p92, %p93
    %p95 = scmp.ne.s32.totalorder %s87, %s90
    %p96 = scmp.eq.s32.totalorder %s9, 0
    %p97 = por %p95, %p96
    %p98 = scmp.ne.s32.totalorder %s87, %s90
    %p99 = scmp.eq.s32.totalorder %s14, 1
    %p100 = por %p98, %p99
    %p101 = scmp.ne.s32.totalorder %s90, %s91
    %p102 = scmp.eq.s32.totalorder %s14, 0
    %p103 = por %p101, %p102
    %p104 = scmp.ne.s32.totalorder %s90, %s91
    %p105 = scmp.eq.s32.totalorder %s15, 1
    %p106 = por %p104, %p105
    %p108 = scmp.ne.s32.totalorder %s91, %s107
    %p109 = scmp.eq.s32.totalorder %s15, 0
    %p110 = por %p108, %p109
    %p111 = scmp.le.s32.totalorder 1, %s9
    %p112 = scmp.lt.s32.totalorder %s9, 3
    %p113 = pnand %p111, %p112
    %p114 = pneg %p113
    // Predicated region
    $region9: #{decoder_forward.7} parent=5 // pred_check
      _
    $region10: #{decoder_forward.7} parent=5 // pred_check_branch
      %116 = sbr.rel (%p113) target = $region12
    $region11: #{decoder_forward.7} parent=5 // pred_region
      %s117 = ssub.s32 %s9, 1
      // Predicated region
      $region13: #{decoder_forward.7} parent=11 // pred_check
        %p118 = pneg %p56
      $region14: #{decoder_forward.7} parent=11 // pred_check_branch
        %120 = sbr.rel (%p118) target = $region16
      $region15: #{decoder_forward.7} parent=11 // pred_region
        _
      $region16: #{decoder_forward.7} parent=11 // pred_fallthru
        _
      // Predicated region
      $region17: #{decoder_forward.7} parent=11 // pred_check
        %p121 = pneg %p77
      $region18: #{decoder_forward.7} parent=11 // pred_check_branch
        %123 = sbr.rel (%p121) target = $region20
      $region19: #{decoder_forward.7} parent=11 // pred_region
        _
      $region20: #{decoder_forward.7} parent=11 // pred_fallthru
        _
    $region12: #{decoder_forward.7} parent=5 // pred_fallthru
      _
    %p124 = scmp.lt.s32.totalorder %s9, 2
    // Predicated region
    $region21: #{decoder_forward.7} parent=5 // pred_check
      %p125 = pneg %p124
    $region22: #{decoder_forward.7} parent=5 // pred_check_branch
      %127 = sbr.rel (%p125) target = $region24
    $region23: #{decoder_forward.7} parent=5 // pred_region
      // Predicated region
      $region25: #{decoder_forward.7} parent=23 // pred_check
        %p128 = pneg %p29
      $region26: #{decoder_forward.7} parent=23 // pred_check_branch
        %130 = sbr.rel (%p128) target = $region28
      $region27: #{decoder_forward.7} parent=23 // pred_region
        %s131 = smul.u32 128, %s9
        %p132 = scmp.lt.s32.totalorder %s131, 255
        %s133 = scalar_select %p132, %s131, 255
        %s134 = smul.addr %s133, 8
        %s135 = scalar_lea.vmem %s0, %s134
        %s136 = smul.u32 128, %s9
      $region28: #{decoder_forward.7} parent=23 // pred_fallthru
        _
    $region24: #{decoder_forward.7} parent=5 // pred_fallthru
      _
    %p137 = scmp.le.s32.totalorder 1, %s9
    %p138 = scmp.lt.s32.totalorder %s9, 3
    %p139 = pnand %p137, %p138
    %p140 = pneg %p139
    // Predicated region
    $region29: #{decoder_forward.7} parent=5 // pred_check
      _
    $region30: #{decoder_forward.7} parent=5 // pred_check_branch
      %142 = sbr.rel (%p139) target = $region32
    $region31: #{decoder_forward.7} parent=5 // pred_region
      %s143 = ssub.s32 %s9, 1
      %s144 = smul.u32 128, %s14
      %p145 = scmp.lt.s32.totalorder %s144, 255
      %s146 = scalar_select %p145, %s144, 255
      %s147 = smul.addr %s146, 8
      %s148 = scalar_lea.vmem %s0, %s147
      %p149 = pneg %p35
      %p150 = pneg %p32
      %p151 = pneg %p56
      %p152 = pneg %p53
      %p153 = pneg %p77
      %p154 = pneg %p74
      %p155 = pneg %p103
      %p156 = pneg %p100
      %s157 = smul.u32 128, %s14
      %p158 = scmp.lt.s32.totalorder %s157, 255
      %s159 = scalar_select %p158, %s157, 255
      %s160 = smul.addr %s159, 8
      %s161 = scalar_lea.vmem %s3, %s160
      %s162 = smul.u32 128, %s14
      %p163 = scmp.lt.s32.totalorder %s162, 255
      %s164 = scalar_select %p163, %s162, 255
      %s165 = smul.addr %s164, 8
      %s166 = scalar_lea.vmem %s0, %s165
      %s167 = smul.u32 128, %s14
      %s168 = smul.u32 128, %s14
      %p169 = scmp.lt.s32.totalorder %s168, 255
      %s170 = scalar_select %p169, %s168, 255
      %s171 = smul.addr %s170, 8
      %s172 = scalar_lea.vmem %s3, %s171
      %s173 = smul.u32 128, %s14
      %v174 = vld [vmem:[%s166] sm:$0xff]
      %v175 = vld [vmem:[%s166 + $0x8] sm:$0xff]
      %v176 = vld [vmem:[%s166 + $0x10] sm:$0xff]
      %v177 = vld [vmem:[%s166 + $0x18] sm:$0xff]
      %v178 = vld [vmem:[%s166 + $0x20] sm:$0xff]
      %v179 = vld [vmem:[%s166 + $0x28] sm:$0xff]
      %v180 = vld [vmem:[%s166 + $0x30] sm:$0xff]
      %v181 = vld [vmem:[%s166 + $0x38] sm:$0xff]
      %v182 = vld [vmem:[%s166 + $0x40] sm:$0xff]
      %v183 = vld [vmem:[%s166 + $0x48] sm:$0xff]
      %v184 = vld [vmem:[%s166 + $0x50] sm:$0xff]
      %v185 = vld [vmem:[%s166 + $0x58] sm:$0xff]
      %v186 = vld [vmem:[%s166 + $0x60] sm:$0xff]
      %v187 = vld [vmem:[%s166 + $0x68] sm:$0xff]
      %v188 = vld [vmem:[%s166 + $0x70] sm:$0xff]
      %v189 = vld [vmem:[%s166 + $0x78] sm:$0xff]
      %v190 = vld [vmem:[%s166 + $0x80] sm:$0xff]
      %v191 = vld [vmem:[%s166 + $0x88] sm:$0xff]
      %v192 = vld [vmem:[%s166 + $0x90] sm:$0xff]
      %v193 = vld [vmem:[%s166 + $0x98] sm:$0xff]
      %v194 = vld [vmem:[%s166 + $0xa0] sm:$0xff]
      %v195 = vld [vmem:[%s166 + $0xa8] sm:$0xff]
      %v196 = vld [vmem:[%s166 + $0xb0] sm:$0xff]
      %v197 = vld [vmem:[%s166 + $0xb8] sm:$0xff]
      %v198 = vld [vmem:[%s166 + $0xc0] sm:$0xff]
      %v199 = vld [vmem:[%s166 + $0xc8] sm:$0xff]
      %v200 = vld [vmem:[%s166 + $0xd0] sm:$0xff]
      %v201 = vld [vmem:[%s166 + $0xd8] sm:$0xff]
      %v202 = vld [vmem:[%s166 + $0xe0] sm:$0xff]
      %v203 = vld [vmem:[%s166 + $0xe8] sm:$0xff]
      %v204 = vld [vmem:[%s166 + $0xf0] sm:$0xff]
      %v205 = vld [vmem:[%s166 + $0xf8] sm:$0xff]
      %v206 = vld [vmem:[%s166 + $0x100] sm:$0xff]
      %v207 = vld [vmem:[%s166 + $0x108] sm:$0xff]
      %v208 = vld [vmem:[%s166 + $0x110] sm:$0xff]
      %v209 = vld [vmem:[%s166 + $0x118] sm:$0xff]
      %v210 = vld [vmem:[%s166 + $0x120] sm:$0xff]
      %v211 = vld [vmem:[%s166 + $0x128] sm:$0xff]
      %v212 = vld [vmem:[%s166 + $0x130] sm:$0xff]
      %v213 = vld [vmem:[%s166 + $0x138] sm:$0xff]
      %v214 = vld [vmem:[%s166 + $0x140] sm:$0xff]
      %v215 = vld [vmem:[%s166 + $0x148] sm:$0xff]
      %v216 = vld [vmem:[%s166 + $0x150] sm:$0xff]
      %v217 = vld [vmem:[%s166 + $0x158] sm:$0xff]
      %v218 = vld [vmem:[%s166 + $0x160] sm:$0xff]
      %v219 = vld [vmem:[%s166 + $0x168] sm:$0xff]
      %v220 = vld [vmem:[%s166 + $0x170] sm:$0xff]
      %v221 = vld [vmem:[%s166 + $0x178] sm:$0xff]
      %v222 = vld [vmem:[%s166 + $0x180] sm:$0xff]
      %v223 = vld [vmem:[%s166 + $0x188] sm:$0xff]
      %v224 = vld [vmem:[%s166 + $0x190] sm:$0xff]
      %v225 = vld [vmem:[%s166 + $0x198] sm:$0xff]
      %v226 = vld [vmem:[%s166 + $0x1a0] sm:$0xff]
      %v227 = vld [vmem:[%s166 + $0x1a8] sm:$0xff]
      %v228 = vld [vmem:[%s166 + $0x1b0] sm:$0xff]
      %v229 = vld [vmem:[%s166 + $0x1b8] sm:$0xff]
      %v230 = vld [vmem:[%s166 + $0x1c0] sm:$0xff]
      %v231 = vld [vmem:[%s166 + $0x1c8] sm:$0xff]
      %v232 = vld [vmem:[%s166 + $0x1d0] sm:$0xff]
      %v233 = vld [vmem:[%s166 + $0x1d8] sm:$0xff]
      %v234 = vld [vmem:[%s166 + $0x1e0] sm:$0xff]
      %v235 = vld [vmem:[%s166 + $0x1e8] sm:$0xff]
      %v236 = vld [vmem:[%s166 + $0x1f0] sm:$0xff]
      %v237 = vld [vmem:[%s166 + $0x1f8] sm:$0xff]
      %v238 = vld [vmem:[%s166 + $0x200] sm:$0xff]
      %v239 = vld [vmem:[%s166 + $0x208] sm:$0xff]
      %v240 = vld [vmem:[%s166 + $0x210] sm:$0xff]
      %v241 = vld [vmem:[%s166 + $0x218] sm:$0xff]
      %v242 = vld [vmem:[%s166 + $0x220] sm:$0xff]
      %v243 = vld [vmem:[%s166 + $0x228] sm:$0xff]
      %v244 = vld [vmem:[%s166 + $0x230] sm:$0xff]
      %v245 = vld [vmem:[%s166 + $0x238] sm:$0xff]
      %v246 = vld [vmem:[%s166 + $0x240] sm:$0xff]
      %v247 = vld [vmem:[%s166 + $0x248] sm:$0xff]
      %v248 = vld [vmem:[%s166 + $0x250] sm:$0xff]
      %v249 = vld [vmem:[%s166 + $0x258] sm:$0xff]
      %v250 = vld [vmem:[%s166 + $0x260] sm:$0xff]
      %v251 = vld [vmem:[%s166 + $0x268] sm:$0xff]
      %v252 = vld [vmem:[%s166 + $0x270] sm:$0xff]
      %v253 = vld [vmem:[%s166 + $0x278] sm:$0xff]
      %v254 = vld [vmem:[%s166 + $0x280] sm:$0xff]
      %v255 = vld [vmem:[%s166 + $0x288] sm:$0xff]
      %v256 = vld [vmem:[%s166 + $0x290] sm:$0xff]
      %v257 = vld [vmem:[%s166 + $0x298] sm:$0xff]
      %v258 = vld [vmem:[%s166 + $0x2a0] sm:$0xff]
      %v259 = vld [vmem:[%s166 + $0x2a8] sm:$0xff]
      %v260 = vld [vmem:[%s166 + $0x2b0] sm:$0xff]
      %v261 = vld [vmem:[%s166 + $0x2b8] sm:$0xff]
      %v262 = vld [vmem:[%s166 + $0x2c0] sm:$0xff]
      %v263 = vld [vmem:[%s166 + $0x2c8] sm:$0xff]
      %v264 = vld [vmem:[%s166 + $0x2d0] sm:$0xff]
      %v265 = vld [vmem:[%s166 + $0x2d8] sm:$0xff]
      %v266 = vld [vmem:[%s166 + $0x2e0] sm:$0xff]
      %v267 = vld [vmem:[%s166 + $0x2e8] sm:$0xff]
      %v268 = vld [vmem:[%s166 + $0x2f0] sm:$0xff]
      %v269 = vld [vmem:[%s166 + $0x2f8] sm:$0xff]
      %v270 = vld [vmem:[%s166 + $0x300] sm:$0xff]
      %v271 = vld [vmem:[%s166 + $0x308] sm:$0xff]
      %v272 = vld [vmem:[%s166 + $0x310] sm:$0xff]
      %v273 = vld [vmem:[%s166 + $0x318] sm:$0xff]
      %v274 = vld [vmem:[%s166 + $0x320] sm:$0xff]
      %v275 = vld [vmem:[%s166 + $0x328] sm:$0xff]
      %v276 = vld [vmem:[%s166 + $0x330] sm:$0xff]
      %v277 = vld [vmem:[%s166 + $0x338] sm:$0xff]
      %v278 = vld [vmem:[%s166 + $0x340] sm:$0xff]
      %v279 = vld [vmem:[%s166 + $0x348] sm:$0xff]
      %v280 = vld [vmem:[%s166 + $0x350] sm:$0xff]
      %v281 = vld [vmem:[%s166 + $0x358] sm:$0xff]
      %v282 = vld [vmem:[%s166 + $0x360] sm:$0xff]
      %v283 = vld [vmem:[%s166 + $0x368] sm:$0xff]
      %v284 = vld [vmem:[%s166 + $0x370] sm:$0xff]
      %v285 = vld [vmem:[%s166 + $0x378] sm:$0xff]
      %v286 = vld [vmem:[%s166 + $0x380] sm:$0xff]
      %v287 = vld [vmem:[%s166 + $0x388] sm:$0xff]
      %v288 = vld [vmem:[%s166 + $0x390] sm:$0xff]
      %v289 = vld [vmem:[%s166 + $0x398] sm:$0xff]
      %v290 = vld [vmem:[%s166 + $0x3a0] sm:$0xff]
      %v291 = vld [vmem:[%s166 + $0x3a8] sm:$0xff]
      %v292 = vld [vmem:[%s166 + $0x3b0] sm:$0xff]
      %v293 = vld [vmem:[%s166 + $0x3b8] sm:$0xff]
      %v294 = vld [vmem:[%s166 + $0x3c0] sm:$0xff]
      %v295 = vld [vmem:[%s166 + $0x3c8] sm:$0xff]
      %v296 = vld [vmem:[%s166 + $0x3d0] sm:$0xff]
      %v297 = vld [vmem:[%s166 + $0x3d8] sm:$0xff]
      %v298 = vld [vmem:[%s166 + $0x3e0] sm:$0xff]
      %v299 = vld [vmem:[%s166 + $0x3e8] sm:$0xff]
      %v300 = vld [vmem:[%s166 + $0x3f0] sm:$0xff]
      %v301 = vld [vmem:[%s166 + $0x3f8] sm:$0xff]
      %v302 = vld [vmem:[%s1] sm:$0x1]
      %v304 = vlaneseq
      %v305 = vshrl.u32 %v304, 7
      %v306 = vsub.s32 0, %v305
      %v307 = vrot.slane %v302, %v306
      %v309 = vmul.f32 %v174, %v307
      %v310 = vmul.f32 %v175, %v307
      %v311 = vmul.f32 %v176, %v307
      %v312 = vmul.f32 %v177, %v307
      %v313 = vmul.f32 %v178, %v307
      %v314 = vmul.f32 %v179, %v307
      %v315 = vmul.f32 %v180, %v307
      %v316 = vmul.f32 %v181, %v307
      %v317 = vmul.f32 %v182, %v307
      %v318 = vmul.f32 %v183, %v307
      %v319 = vmul.f32 %v184, %v307
      %v320 = vmul.f32 %v185, %v307
      %v321 = vmul.f32 %v186, %v307
      %v322 = vmul.f32 %v187, %v307
      %v323 = vmul.f32 %v188, %v307
      %v324 = vmul.f32 %v189, %v307
      %v325 = vmul.f32 %v190, %v307
      %v326 = vmul.f32 %v191, %v307
      %v327 = vmul.f32 %v192, %v307
      %v328 = vmul.f32 %v193, %v307
      %v329 = vmul.f32 %v194, %v307
      %v330 = vmul.f32 %v195, %v307
      %v331 = vmul.f32 %v196, %v307
      %v332 = vmul.f32 %v197, %v307
      %v333 = vmul.f32 %v198, %v307
      %v334 = vmul.f32 %v199, %v307
      %v335 = vmul.f32 %v200, %v307
      %v336 = vmul.f32 %v201, %v307
      %v337 = vmul.f32 %v202, %v307
      %v338 = vmul.f32 %v203, %v307
      %v339 = vmul.f32 %v204, %v307
      %v340 = vmul.f32 %v205, %v307
      %v341 = vmul.f32 %v206, %v307
      %v342 = vmul.f32 %v207, %v307
      %v343 = vmul.f32 %v208, %v307
      %v344 = vmul.f32 %v209, %v307
      %v345 = vmul.f32 %v210, %v307
      %v346 = vmul.f32 %v211, %v307
      %v347 = vmul.f32 %v212, %v307
      %v348 = vmul.f32 %v213, %v307
      %v349 = vmul.f32 %v214, %v307
      %v350 = vmul.f32 %v215, %v307
      %v351 = vmul.f32 %v216, %v307
      %v352 = vmul.f32 %v217, %v307
      %v353 = vmul.f32 %v218, %v307
      %v354 = vmul.f32 %v219, %v307
      %v355 = vmul.f32 %v220, %v307
      %v356 = vmul.f32 %v221, %v307
      %v357 = vmul.f32 %v222, %v307
      %v358 = vmul.f32 %v223, %v307
      %v359 = vmul.f32 %v224, %v307
      %v360 = vmul.f32 %v225, %v307
      %v361 = vmul.f32 %v226, %v307
      %v362 = vmul.f32 %v227, %v307
      %v363 = vmul.f32 %v228, %v307
      %v364 = vmul.f32 %v229, %v307
      %v365 = vmul.f32 %v230, %v307
      %v366 = vmul.f32 %v231, %v307
      %v367 = vmul.f32 %v232, %v307
      %v368 = vmul.f32 %v233, %v307
      %v369 = vmul.f32 %v234, %v307
      %v370 = vmul.f32 %v235, %v307
      %v371 = vmul.f32 %v236, %v307
      %v372 = vmul.f32 %v237, %v307
      %v373 = vmul.f32 %v238, %v307
      %v374 = vmul.f32 %v239, %v307
      %v375 = vmul.f32 %v240, %v307
      %v376 = vmul.f32 %v241, %v307
      %v377 = vmul.f32 %v242, %v307
      %v378 = vmul.f32 %v243, %v307
      %v379 = vmul.f32 %v244, %v307
      %v380 = vmul.f32 %v245, %v307
      %v381 = vmul.f32 %v246, %v307
      %v382 = vmul.f32 %v247, %v307
      %v383 = vmul.f32 %v248, %v307
      %v384 = vmul.f32 %v249, %v307
      %v385 = vmul.f32 %v250, %v307
      %v386 = vmul.f32 %v251, %v307
      %v387 = vmul.f32 %v252, %v307
      %v388 = vmul.f32 %v253, %v307
      %v389 = vmul.f32 %v254, %v307
      %v390 = vmul.f32 %v255, %v307
      %v391 = vmul.f32 %v256, %v307
      %v392 = vmul.f32 %v257, %v307
      %v393 = vmul.f32 %v258, %v307
      %v394 = vmul.f32 %v259, %v307
      %v395 = vmul.f32 %v260, %v307
      %v396 = vmul.f32 %v261, %v307
      %v397 = vmul.f32 %v262, %v307
      %v398 = vmul.f32 %v263, %v307
      %v399 = vmul.f32 %v264, %v307
      %v400 = vmul.f32 %v265, %v307
      %v401 = vmul.f32 %v266, %v307
      %v402 = vmul.f32 %v267, %v307
      %v403 = vmul.f32 %v268, %v307
      %v404 = vmul.f32 %v269, %v307
      %v405 = vmul.f32 %v270, %v307
      %v406 = vmul.f32 %v271, %v307
      %v407 = vmul.f32 %v272, %v307
      %v408 = vmul.f32 %v273, %v307
      %v409 = vmul.f32 %v274, %v307
      %v410 = vmul.f32 %v275, %v307
      %v411 = vmul.f32 %v276, %v307
      %v412 = vmul.f32 %v277, %v307
      %v413 = vmul.f32 %v278, %v307
      %v414 = vmul.f32 %v279, %v307
      %v415 = vmul.f32 %v280, %v307
      %v416 = vmul.f32 %v281, %v307
      %v417 = vmul.f32 %v282, %v307
      %v418 = vmul.f32 %v283, %v307
      %v419 = vmul.f32 %v284, %v307
      %v420 = vmul.f32 %v285, %v307
      %v421 = vmul.f32 %v286, %v307
      %v422 = vmul.f32 %v287, %v307
      %v423 = vmul.f32 %v288, %v307
      %v424 = vmul.f32 %v289, %v307
      %v425 = vmul.f32 %v290, %v307
      %v426 = vmul.f32 %v291, %v307
      %v427 = vmul.f32 %v292, %v307
      %v428 = vmul.f32 %v293, %v307
      %v429 = vmul.f32 %v294, %v307
      %v430 = vmul.f32 %v295, %v307
      %v431 = vmul.f32 %v296, %v307
      %v432 = vmul.f32 %v297, %v307
      %v433 = vmul.f32 %v298, %v307
      %v434 = vmul.f32 %v299, %v307
      %v435 = vmul.f32 %v300, %v307
      %v436 = vmul.f32 %v301, %v307
      %v437 = vld [vmem:[%s2] sm:$0x1]
      %v439 = vlaneseq
      %v440 = vshrl.u32 %v439, 7
      %v441 = vsub.s32 0, %v440
      %v442 = vrot.slane %v437, %v441
      %v444 = vadd.f32 %v309, %v442
      %v445 = vadd.f32 %v310, %v442
      %v446 = vadd.f32 %v311, %v442
      %v447 = vadd.f32 %v312, %v442
      %v448 = vadd.f32 %v313, %v442
      %v449 = vadd.f32 %v314, %v442
      %v450 = vadd.f32 %v315, %v442
      %v451 = vadd.f32 %v316, %v442
      %v452 = vadd.f32 %v317, %v442
      %v453 = vadd.f32 %v318, %v442
      %v454 = vadd.f32 %v319, %v442
      %v455 = vadd.f32 %v320, %v442
      %v456 = vadd.f32 %v321, %v442
      %v457 = vadd.f32 %v322, %v442
      %v458 = vadd.f32 %v323, %v442
      %v459 = vadd.f32 %v324, %v442
      %v460 = vadd.f32 %v325, %v442
      %v461 = vadd.f32 %v326, %v442
      %v462 = vadd.f32 %v327, %v442
      %v463 = vadd.f32 %v328, %v442
      %v464 = vadd.f32 %v329, %v442
      %v465 = vadd.f32 %v330, %v442
      %v466 = vadd.f32 %v331, %v442
      %v467 = vadd.f32 %v332, %v442
      %v468 = vadd.f32 %v333, %v442
      %v469 = vadd.f32 %v334, %v442
      %v470 = vadd.f32 %v335, %v442
      %v471 = vadd.f32 %v336, %v442
      %v472 = vadd.f32 %v337, %v442
      %v473 = vadd.f32 %v338, %v442
      %v474 = vadd.f32 %v339, %v442
      %v475 = vadd.f32 %v340, %v442
      %v476 = vadd.f32 %v341, %v442
      %v477 = vadd.f32 %v342, %v442
      %v478 = vadd.f32 %v343, %v442
      %v479 = vadd.f32 %v344, %v442
      %v480 = vadd.f32 %v345, %v442
      %v481 = vadd.f32 %v346, %v442
      %v482 = vadd.f32 %v347, %v442
      %v483 = vadd.f32 %v348, %v442
      %v484 = vadd.f32 %v349, %v442
      %v485 = vadd.f32 %v350, %v442
      %v486 = vadd.f32 %v351, %v442
      %v487 = vadd.f32 %v352, %v442
      %v488 = vadd.f32 %v353, %v442
      %v489 = vadd.f32 %v354, %v442
      %v490 = vadd.f32 %v355, %v442
      %v491 = vadd.f32 %v356, %v442
      %v492 = vadd.f32 %v357, %v442
      %v493 = vadd.f32 %v358, %v442
      %v494 = vadd.f32 %v359, %v442
      %v495 = vadd.f32 %v360, %v442
      %v496 = vadd.f32 %v361, %v442
      %v497 = vadd.f32 %v362, %v442
      %v498 = vadd.f32 %v363, %v442
      %v499 = vadd.f32 %v364, %v442
      %v500 = vadd.f32 %v365, %v442
      %v501 = vadd.f32 %v366, %v442
      %v502 = vadd.f32 %v367, %v442
      %v503 = vadd.f32 %v368, %v442
      %v504 = vadd.f32 %v369, %v442
      %v505 = vadd.f32 %v370, %v442
      %v506 = vadd.f32 %v371, %v442
      %v507 = vadd.f32 %v372, %v442
      %v508 = vadd.f32 %v373, %v442
      %v509 = vadd.f32 %v374, %v442
      %v510 = vadd.f32 %v375, %v442
      %v511 = vadd.f32 %v376, %v442
      %v512 = vadd.f32 %v377, %v442
      %v513 = vadd.f32 %v378, %v442
      %v514 = vadd.f32 %v379, %v442
      %v515 = vadd.f32 %v380, %v442
      %v516 = vadd.f32 %v381, %v442
      %v517 = vadd.f32 %v382, %v442
      %v518 = vadd.f32 %v383, %v442
      %v519 = vadd.f32 %v384, %v442
      %v520 = vadd.f32 %v385, %v442
      %v521 = vadd.f32 %v386, %v442
      %v522 = vadd.f32 %v387, %v442
      %v523 = vadd.f32 %v388, %v442
      %v524 = vadd.f32 %v389, %v442
      %v525 = vadd.f32 %v390, %v442
      %v526 = vadd.f32 %v391, %v442
      %v527 = vadd.f32 %v392, %v442
      %v528 = vadd.f32 %v393, %v442
      %v529 = vadd.f32 %v394, %v442
      %v530 = vadd.f32 %v395, %v442
      %v531 = vadd.f32 %v396, %v442
      %v532 = vadd.f32 %v397, %v442
      %v533 = vadd.f32 %v398, %v442
      %v534 = vadd.f32 %v399, %v442
      %v535 = vadd.f32 %v400, %v442
      %v536 = vadd.f32 %v401, %v442
      %v537 = vadd.f32 %v402, %v442
      %v538 = vadd.f32 %v403, %v442
      %v539 = vadd.f32 %v404, %v442
      %v540 = vadd.f32 %v405, %v442
      %v541 = vadd.f32 %v406, %v442
      %v542 = vadd.f32 %v407, %v442
      %v543 = vadd.f32 %v408, %v442
      %v544 = vadd.f32 %v409, %v442
      %v545 = vadd.f32 %v410, %v442
      %v546 = vadd.f32 %v411, %v442
      %v547 = vadd.f32 %v412, %v442
      %v548 = vadd.f32 %v413, %v442
      %v549 = vadd.f32 %v414, %v442
      %v550 = vadd.f32 %v415, %v442
      %v551 = vadd.f32 %v416, %v442
      %v552 = vadd.f32 %v417, %v442
      %v553 = vadd.f32 %v418, %v442
      %v554 = vadd.f32 %v419, %v442
      %v555 = vadd.f32 %v420, %v442
      %v556 = vadd.f32 %v421, %v442
      %v557 = vadd.f32 %v422, %v442
      %v558 = vadd.f32 %v423, %v442
      %v559 = vadd.f32 %v424, %v442
      %v560 = vadd.f32 %v425, %v442
      %v561 = vadd.f32 %v426, %v442
      %v562 = vadd.f32 %v427, %v442
      %v563 = vadd.f32 %v428, %v442
      %v564 = vadd.f32 %v429, %v442
      %v565 = vadd.f32 %v430, %v442
      %v566 = vadd.f32 %v431, %v442
      %v567 = vadd.f32 %v432, %v442
      %v568 = vadd.f32 %v433, %v442
      %v569 = vadd.f32 %v434, %v442
      %v570 = vadd.f32 %v435, %v442
      %v571 = vadd.f32 %v436, %v442
      %v572 = vmax.f32 %v444, 0.0
      %v573 = vmax.f32 %v445, 0.0
      %v574 = vmax.f32 %v446, 0.0
      %v575 = vmax.f32 %v447, 0.0
      %v576 = vmax.f32 %v448, 0.0
      %v577 = vmax.f32 %v449, 0.0
      %v578 = vmax.f32 %v450, 0.0
      %v579 = vmax.f32 %v451, 0.0
      %v580 = vmax.f32 %v452, 0.0
      %v581 = vmax.f32 %v453, 0.0
      %v582 = vmax.f32 %v454, 0.0
      %v583 = vmax.f32 %v455, 0.0
      %v584 = vmax.f32 %v456, 0.0
      %v585 = vmax.f32 %v457, 0.0
      %v586 = vmax.f32 %v458, 0.0
      %v587 = vmax.f32 %v459, 0.0
      %v588 = vmax.f32 %v460, 0.0
      %v589 = vmax.f32 %v461, 0.0
      %v590 = vmax.f32 %v462, 0.0
      %v591 = vmax.f32 %v463, 0.0
      %v592 = vmax.f32 %v464, 0.0
      %v593 = vmax.f32 %v465, 0.0
      %v594 = vmax.f32 %v466, 0.0
      %v595 = vmax.f32 %v467, 0.0
      %v596 = vmax.f32 %v468, 0.0
      %v597 = vmax.f32 %v469, 0.0
      %v598 = vmax.f32 %v470, 0.0
      %v599 = vmax.f32 %v471, 0.0
      %v600 = vmax.f32 %v472, 0.0
      %v601 = vmax.f32 %v473, 0.0
      %v602 = vmax.f32 %v474, 0.0
      %v603 = vmax.f32 %v475, 0.0
      %v604 = vmax.f32 %v476, 0.0
      %v605 = vmax.f32 %v477, 0.0
      %v606 = vmax.f32 %v478, 0.0
      %v607 = vmax.f32 %v479, 0.0
      %v608 = vmax.f32 %v480, 0.0
      %v609 = vmax.f32 %v481, 0.0
      %v610 = vmax.f32 %v482, 0.0
      %v611 = vmax.f32 %v483, 0.0
      %v612 = vmax.f32 %v484, 0.0
      %v613 = vmax.f32 %v485, 0.0
      %v614 = vmax.f32 %v486, 0.0
      %v615 = vmax.f32 %v487, 0.0
      %v616 = vmax.f32 %v488, 0.0
      %v617 = vmax.f32 %v489, 0.0
      %v618 = vmax.f32 %v490, 0.0
      %v619 = vmax.f32 %v491, 0.0
      %v620 = vmax.f32 %v492, 0.0
      %v621 = vmax.f32 %v493, 0.0
      %v622 = vmax.f32 %v494, 0.0
      %v623 = vmax.f32 %v495, 0.0
      %v624 = vmax.f32 %v496, 0.0
      %v625 = vmax.f32 %v497, 0.0
      %v626 = vmax.f32 %v498, 0.0
      %v627 = vmax.f32 %v499, 0.0
      %v628 = vmax.f32 %v500, 0.0
      %v629 = vmax.f32 %v501, 0.0
      %v630 = vmax.f32 %v502, 0.0
      %v631 = vmax.f32 %v503, 0.0
      %v632 = vmax.f32 %v504, 0.0
      %v633 = vmax.f32 %v505, 0.0
      %v634 = vmax.f32 %v506, 0.0
      %v635 = vmax.f32 %v507, 0.0
      %v636 = vmax.f32 %v508, 0.0
      %v637 = vmax.f32 %v509, 0.0
      %v638 = vmax.f32 %v510, 0.0
      %v639 = vmax.f32 %v511, 0.0
      %v640 = vmax.f32 %v512, 0.0
      %v641 = vmax.f32 %v513, 0.0
      %v642 = vmax.f32 %v514, 0.0
      %v643 = vmax.f32 %v515, 0.0
      %v644 = vmax.f32 %v516, 0.0
      %v645 = vmax.f32 %v517, 0.0
      %v646 = vmax.f32 %v518, 0.0
      %v647 = vmax.f32 %v519, 0.0
      %v648 = vmax.f32 %v520, 0.0
      %v649 = vmax.f32 %v521, 0.0
      %v650 = vmax.f32 %v522, 0.0
      %v651 = vmax.f32 %v523, 0.0
      %v652 = vmax.f32 %v524, 0.0
      %v653 = vmax.f32 %v525, 0.0
      %v654 = vmax.f32 %v526, 0.0
      %v655 = vmax.f32 %v527, 0.0
      %v656 = vmax.f32 %v528, 0.0
      %v657 = vmax.f32 %v529, 0.0
      %v658 = vmax.f32 %v530, 0.0
      %v659 = vmax.f32 %v531, 0.0
      %v660 = vmax.f32 %v532, 0.0
      %v661 = vmax.f32 %v533, 0.0
      %v662 = vmax.f32 %v534, 0.0
      %v663 = vmax.f32 %v535, 0.0
      %v664 = vmax.f32 %v536, 0.0
      %v665 = vmax.f32 %v537, 0.0
      %v666 = vmax.f32 %v538, 0.0
      %v667 = vmax.f32 %v539, 0.0
      %v668 = vmax.f32 %v540, 0.0
      %v669 = vmax.f32 %v541, 0.0
      %v670 = vmax.f32 %v542, 0.0
      %v671 = vmax.f32 %v543, 0.0
      %v672 = vmax.f32 %v544, 0.0
      %v673 = vmax.f32 %v545, 0.0
      %v674 = vmax.f32 %v546, 0.0
      %v675 = vmax.f32 %v547, 0.0
      %v676 = vmax.f32 %v548, 0.0
      %v677 = vmax.f32 %v549, 0.0
      %v678 = vmax.f32 %v550, 0.0
      %v679 = vmax.f32 %v551, 0.0
      %v680 = vmax.f32 %v552, 0.0
      %v681 = vmax.f32 %v553, 0.0
      %v682 = vmax.f32 %v554, 0.0
      %v683 = vmax.f32 %v555, 0.0
      %v684 = vmax.f32 %v556, 0.0
      %v685 = vmax.f32 %v557, 0.0
      %v686 = vmax.f32 %v558, 0.0
      %v687 = vmax.f32 %v559, 0.0
      %v688 = vmax.f32 %v560, 0.0
      %v689 = vmax.f32 %v561, 0.0
      %v690 = vmax.f32 %v562, 0.0
      %v691 = vmax.f32 %v563, 0.0
      %v692 = vmax.f32 %v564, 0.0
      %v693 = vmax.f32 %v565, 0.0
      %v694 = vmax.f32 %v566, 0.0
      %v695 = vmax.f32 %v567, 0.0
      %v696 = vmax.f32 %v568, 0.0
      %v697 = vmax.f32 %v569, 0.0
      %v698 = vmax.f32 %v570, 0.0
      %v699 = vmax.f32 %v571, 0.0
      %700 = vst [vmem:[%s172] sm:$0xff] %v572
      %701 = vst [vmem:[%s172 + $0x8] sm:$0xff] %v573
      %702 = vst [vmem:[%s172 + $0x10] sm:$0xff] %v574
      %703 = vst [vmem:[%s172 + $0x18] sm:$0xff] %v575
      %704 = vst [vmem:[%s172 + $0x20] sm:$0xff] %v576
      %705 = vst [vmem:[%s172 + $0x28] sm:$0xff] %v577
      %706 = vst [vmem:[%s172 + $0x30] sm:$0xff] %v578
      %707 = vst [vmem:[%s172 + $0x38] sm:$0xff] %v579
      %708 = vst [vmem:[%s172 + $0x40] sm:$0xff] %v580
      %709 = vst [vmem:[%s172 + $0x48] sm:$0xff] %v581
      %710 = vst [vmem:[%s172 + $0x50] sm:$0xff] %v582
      %711 = vst [vmem:[%s172 + $0x58] sm:$0xff] %v583
      %712 = vst [vmem:[%s172 + $0x60] sm:$0xff] %v584
      %713 = vst [vmem:[%s172 + $0x68] sm:$0xff] %v585
      %714 = vst [vmem:[%s172 + $0x70] sm:$0xff] %v586
      %715 = vst [vmem:[%s172 + $0x78] sm:$0xff] %v587
      %716 = vst [vmem:[%s172 + $0x80] sm:$0xff] %v588
      %717 = vst [vmem:[%s172 + $0x88] sm:$0xff] %v589
      %718 = vst [vmem:[%s172 + $0x90] sm:$0xff] %v590
      %719 = vst [vmem:[%s172 + $0x98] sm:$0xff] %v591
      %720 = vst [vmem:[%s172 + $0xa0] sm:$0xff] %v592
      %721 = vst [vmem:[%s172 + $0xa8] sm:$0xff] %v593
      %722 = vst [vmem:[%s172 + $0xb0] sm:$0xff] %v594
      %723 = vst [vmem:[%s172 + $0xb8] sm:$0xff] %v595
      %724 = vst [vmem:[%s172 + $0xc0] sm:$0xff] %v596
      %725 = vst [vmem:[%s172 + $0xc8] sm:$0xff] %v597
      %726 = vst [vmem:[%s172 + $0xd0] sm:$0xff] %v598
      %727 = vst [vmem:[%s172 + $0xd8] sm:$0xff] %v599
      %728 = vst [vmem:[%s172 + $0xe0] sm:$0xff] %v600
      %729 = vst [vmem:[%s172 + $0xe8] sm:$0xff] %v601
      %730 = vst [vmem:[%s172 + $0xf0] sm:$0xff] %v602
      %731 = vst [vmem:[%s172 + $0xf8] sm:$0xff] %v603
      %732 = vst [vmem:[%s172 + $0x100] sm:$0xff] %v604
      %733 = vst [vmem:[%s172 + $0x108] sm:$0xff] %v605
      %734 = vst [vmem:[%s172 + $0x110] sm:$0xff] %v606
      %735 = vst [vmem:[%s172 + $0x118] sm:$0xff] %v607
      %736 = vst [vmem:[%s172 + $0x120] sm:$0xff] %v608
      %737 = vst [vmem:[%s172 + $0x128] sm:$0xff] %v609
      %738 = vst [vmem:[%s172 + $0x130] sm:$0xff] %v610
      %739 = vst [vmem:[%s172 + $0x138] sm:$0xff] %v611
      %740 = vst [vmem:[%s172 + $0x140] sm:$0xff] %v612
      %741 = vst [vmem:[%s172 + $0x148] sm:$0xff] %v613
      %742 = vst [vmem:[%s172 + $0x150] sm:$0xff] %v614
      %743 = vst [vmem:[%s172 + $0x158] sm:$0xff] %v615
      %744 = vst [vmem:[%s172 + $0x160] sm:$0xff] %v616
      %745 = vst [vmem:[%s172 + $0x168] sm:$0xff] %v617
      %746 = vst [vmem:[%s172 + $0x170] sm:$0xff] %v618
      %747 = vst [vmem:[%s172 + $0x178] sm:$0xff] %v619
      %748 = vst [vmem:[%s172 + $0x180] sm:$0xff] %v620
      %749 = vst [vmem:[%s172 + $0x188] sm:$0xff] %v621
      %750 = vst [vmem:[%s172 + $0x190] sm:$0xff] %v622
      %751 = vst [vmem:[%s172 + $0x198] sm:$0xff] %v623
      %752 = vst [vmem:[%s172 + $0x1a0] sm:$0xff] %v624
      %753 = vst [vmem:[%s172 + $0x1a8] sm:$0xff] %v625
      %754 = vst [vmem:[%s172 + $0x1b0] sm:$0xff] %v626
      %755 = vst [vmem:[%s172 + $0x1b8] sm:$0xff] %v627
      %756 = vst [vmem:[%s172 + $0x1c0] sm:$0xff] %v628
      %757 = vst [vmem:[%s172 + $0x1c8] sm:$0xff] %v629
      %758 = vst [vmem:[%s172 + $0x1d0] sm:$0xff] %v630
      %759 = vst [vmem:[%s172 + $0x1d8] sm:$0xff] %v631
      %760 = vst [vmem:[%s172 + $0x1e0] sm:$0xff] %v632
      %761 = vst [vmem:[%s172 + $0x1e8] sm:$0xff] %v633
      %762 = vst [vmem:[%s172 + $0x1f0] sm:$0xff] %v634
      %763 = vst [vmem:[%s172 + $0x1f8] sm:$0xff] %v635
      %764 = vst [vmem:[%s172 + $0x200] sm:$0xff] %v636
      %765 = vst [vmem:[%s172 + $0x208] sm:$0xff] %v637
      %766 = vst [vmem:[%s172 + $0x210] sm:$0xff] %v638
      %767 = vst [vmem:[%s172 + $0x218] sm:$0xff] %v639
      %768 = vst [vmem:[%s172 + $0x220] sm:$0xff] %v640
      %769 = vst [vmem:[%s172 + $0x228] sm:$0xff] %v641
      %770 = vst [vmem:[%s172 + $0x230] sm:$0xff] %v642
      %771 = vst [vmem:[%s172 + $0x238] sm:$0xff] %v643
      %772 = vst [vmem:[%s172 + $0x240] sm:$0xff] %v644
      %773 = vst [vmem:[%s172 + $0x248] sm:$0xff] %v645
      %774 = vst [vmem:[%s172 + $0x250] sm:$0xff] %v646
      %775 = vst [vmem:[%s172 + $0x258] sm:$0xff] %v647
      %776 = vst [vmem:[%s172 + $0x260] sm:$0xff] %v648
      %777 = vst [vmem:[%s172 + $0x268] sm:$0xff] %v649
      %778 = vst [vmem:[%s172 + $0x270] sm:$0xff] %v650
      %779 = vst [vmem:[%s172 + $0x278] sm:$0xff] %v651
      %780 = vst [vmem:[%s172 + $0x280] sm:$0xff] %v652
      %781 = vst [vmem:[%s172 + $0x288] sm:$0xff] %v653
      %782 = vst [vmem:[%s172 + $0x290] sm:$0xff] %v654
      %783 = vst [vmem:[%s172 + $0x298] sm:$0xff] %v655
      %784 = vst [vmem:[%s172 + $0x2a0] sm:$0xff] %v656
      %785 = vst [vmem:[%s172 + $0x2a8] sm:$0xff] %v657
      %786 = vst [vmem:[%s172 + $0x2b0] sm:$0xff] %v658
      %787 = vst [vmem:[%s172 + $0x2b8] sm:$0xff] %v659
      %788 = vst [vmem:[%s172 + $0x2c0] sm:$0xff] %v660
      %789 = vst [vmem:[%s172 + $0x2c8] sm:$0xff] %v661
      %790 = vst [vmem:[%s172 + $0x2d0] sm:$0xff] %v662
      %791 = vst [vmem:[%s172 + $0x2d8] sm:$0xff] %v663
      %792 = vst [vmem:[%s172 + $0x2e0] sm:$0xff] %v664
      %793 = vst [vmem:[%s172 + $0x2e8] sm:$0xff] %v665
      %794 = vst [vmem:[%s172 + $0x2f0] sm:$0xff] %v666
      %795 = vst [vmem:[%s172 + $0x2f8] sm:$0xff] %v667
      %796 = vst [vmem:[%s172 + $0x300] sm:$0xff] %v668
      %797 = vst [vmem:[%s172 + $0x308] sm:$0xff] %v669
      %798 = vst [vmem:[%s172 + $0x310] sm:$0xff] %v670
      %799 = vst [vmem:[%s172 + $0x318] sm:$0xff] %v671
      %800 = vst [vmem:[%s172 + $0x320] sm:$0xff] %v672
      %801 = vst [vmem:[%s172 + $0x328] sm:$0xff] %v673
      %802 = vst [vmem:[%s172 + $0x330] sm:$0xff] %v674
      %803 = vst [vmem:[%s172 + $0x338] sm:$0xff] %v675
      %804 = vst [vmem:[%s172 + $0x340] sm:$0xff] %v676
      %805 = vst [vmem:[%s172 + $0x348] sm:$0xff] %v677
      %806 = vst [vmem:[%s172 + $0x350] sm:$0xff] %v678
      %807 = vst [vmem:[%s172 + $0x358] sm:$0xff] %v679
      %808 = vst [vmem:[%s172 + $0x360] sm:$0xff] %v680
      %809 = vst [vmem:[%s172 + $0x368] sm:$0xff] %v681
      %810 = vst [vmem:[%s172 + $0x370] sm:$0xff] %v682
      %811 = vst [vmem:[%s172 + $0x378] sm:$0xff] %v683
      %812 = vst [vmem:[%s172 + $0x380] sm:$0xff] %v684
      %813 = vst [vmem:[%s172 + $0x388] sm:$0xff] %v685
      %814 = vst [vmem:[%s172 + $0x390] sm:$0xff] %v686
      %815 = vst [vmem:[%s172 + $0x398] sm:$0xff] %v687
      %816 = vst [vmem:[%s172 + $0x3a0] sm:$0xff] %v688
      %817 = vst [vmem:[%s172 + $0x3a8] sm:$0xff] %v689
      %818 = vst [vmem:[%s172 + $0x3b0] sm:$0xff] %v690
      %819 = vst [vmem:[%s172 + $0x3b8] sm:$0xff] %v691
      %820 = vst [vmem:[%s172 + $0x3c0] sm:$0xff] %v692
      %821 = vst [vmem:[%s172 + $0x3c8] sm:$0xff] %v693
      %822 = vst [vmem:[%s172 + $0x3d0] sm:$0xff] %v694
      %823 = vst [vmem:[%s172 + $0x3d8] sm:$0xff] %v695
      %824 = vst [vmem:[%s172 + $0x3e0] sm:$0xff] %v696
      %825 = vst [vmem:[%s172 + $0x3e8] sm:$0xff] %v697
      %826 = vst [vmem:[%s172 + $0x3f0] sm:$0xff] %v698
      %827 = vst [vmem:[%s172 + $0x3f8] sm:$0xff] %v699
      %s828 = smul.u32 128, %s14
      %p829 = scmp.lt.s32.totalorder %s828, 255
      %s830 = scalar_select %p829, %s828, 255
      %s831 = smul.addr %s830, 8
      %s832 = scalar_lea.vmem %s3, %s831
      // Predicated region
      $region33: #{decoder_forward.7} parent=31 // pred_check
        %p833 = pneg %p100
      $region34: #{decoder_forward.7} parent=31 // pred_check_branch
        %835 = sbr.rel (%p833) target = $region36
      $region35: #{decoder_forward.7} parent=31 // pred_region
        %s836 = smul.u32 128, %s14
      $region36: #{decoder_forward.7} parent=31 // pred_fallthru
        _
    $region32: #{decoder_forward.7} parent=5 // pred_fallthru
      _
    %p837 = scmp.le.s32.totalorder 2, %s9
    // Predicated region
    $region37: #{decoder_forward.7} parent=5 // pred_check
      %p838 = pneg %p837
    $region38: #{decoder_forward.7} parent=5 // pred_check_branch
      %840 = sbr.rel (%p838) target = $region40
    $region39: #{decoder_forward.7} parent=5 // pred_region
      %s841 = ssub.s32 %s9, 2
      // Predicated region
      $region41: #{decoder_forward.7} parent=39 // pred_check
        %p842 = pneg %p106
      $region42: #{decoder_forward.7} parent=39 // pred_check_branch
        %844 = sbr.rel (%p842) target = $region44
      $region43: #{decoder_forward.7} parent=39 // pred_region
        %s845 = smul.u32 128, %s15
        %p846 = scmp.lt.s32.totalorder %s845, 255
        %s847 = scalar_select %p846, %s845, 255
        %s848 = smul.addr %s847, 8
        %s849 = scalar_lea.vmem %s3, %s848
      $region44: #{decoder_forward.7} parent=39 // pred_fallthru
        _
    $region40: #{decoder_forward.7} parent=5 // pred_fallthru
      _
  $region6: #{decoder_forward.7} parent=0 // loop_footer
    %s13 = sadd.s32 1, %s9
  $region7: #{decoder_forward.7} parent=0 // loop_footer_branch
    %8 = sbr.rel target = $region3
  $region8: #{decoder_forward.7} parent=0 // loop_exit
    _

// kernel: decoder_forward.6
$region0: #{decoder_forward.6}
  #allocation0 [shape = 'u32[]', space=smem, size = 0x4, offset = 0x4, fixed_abs, tag = 'smem constant byte address 0x4 - core index']
  #allocation1 [shape = 'u32[144,128]{1,0:T(1,128)}', space=vmem, size = 0x12000, scoped, tag = 'internal scratch']
  %s0 = inlined_call_operand.vmem [shape: bf16[2048,72], index: 0, kind: input, shape index: {}]
  %s1 = inlined_call_operand.vmem [shape: bf16[72,128], index: 1, kind: input, shape index: {}]
  %s2 = inlined_call_operand.vmem [shape: f32[2048,128], index: 2, kind: output, shape index: {0}]
  %s3 = inlined_call_operand.vmem [shape: f32[16,128], index: 3, kind: output, shape index: {1}]
  %s4 = inlined_call_operand.vmem [shape: f32[16,128], index: 4, kind: output, shape index: {2}]
  %5 = xla_tuple %s2, %s3, %s4
  %s6 = sld [smem:[#allocation0]]
  $region57: #{decoder_forward.6} parent=0
    _
  %s8 = ssub.s32 1, %s6
  %s9 = scalar_select 0, %s8, %s6
  loop: start=0, step=1, limit=4
  $region2: #{decoder_forward.6} parent=0 // loop_pre_header
    _
  $region3: #{decoder_forward.6} parent=0 // loop_header
    %s11 = sphi 0, %s15
    %p12 = scmp.ge.s32.totalorder %s11, 4
    %s21 = sphi 0, %s23
    %s24 = sphi 0, %s21
    %s25 = sphi 0, %s24
    %s41 = sphi 0, %s25
    %s45 = sphi 0, %s45
    %s47 = sphi 0, %s45
    %s48 = sphi 0, %s47
    %s62 = sphi 0, %s48
    %s68 = sphi 0, %s70
    %s71 = sphi 0, %s68
    %s72 = sphi 0, %s71
    %s88 = sphi 0, %s72
    %s94 = sphi 0, %s96
    %s97 = sphi 0, %s94
    %s98 = sphi 0, %s97
    %s114 = sphi 0, %s98
    %s120 = sphi 0, %s122
    %s123 = sphi 0, %s120
    %s124 = sphi 0, %s123
    %s140 = sphi 0, %s124
  $region4: #{decoder_forward.6} parent=0 // loop_header_branch
    %14 = sbr.rel (%p12) target = $region8
  $region5: #{decoder_forward.6} parent=0 // loop_body
    %s16 = ssub.s32 %s11, 1
    %s17 = ssub.s32 %s11, 2
    %s18 = sadd.s32 %s11, 1
    %s19 = ssub.s32 %s11, %s18
    %p20 = scmp.eq.s32.totalorder %s19, 0
    %s22 = sadd.s32 %s21, 1
    %s23 = scalar_select %p20, %s21, %s22
    %p26 = pneg %p20
    %p27 = scmp.eq.s32.totalorder %s11, 1
    %p28 = por %p26, %p27
    %p29 = scmp.ne.s32.totalorder %s21, %s24
    %p30 = scmp.eq.s32.totalorder %s11, 0
    %p31 = por %p29, %p30
    %p32 = scmp.ne.s32.totalorder %s21, %s24
    %p33 = scmp.eq.s32.totalorder %s16, 1
    %p34 = por %p32, %p33
    %p35 = scmp.ne.s32.totalorder %s24, %s25
    %p36 = scmp.eq.s32.totalorder %s16, 0
    %p37 = por %p35, %p36
    %p38 = scmp.ne.s32.totalorder %s24, %s25
    %p39 = scmp.eq.s32.totalorder %s17, 1
    %p40 = por %p38, %p39
    %p42 = scmp.ne.s32.totalorder %s25, %s41
    %p43 = scmp.eq.s32.totalorder %s17, 0
    %p44 = por %p42, %p43
    %s46 = sadd.s32 %s45, 1
    %p49 = scmp.eq.s32.totalorder %s11, 1
    %p50 = scmp.ne.s32.totalorder %s45, %s47
    %p51 = scmp.eq.s32.totalorder %s11, 0
    %p52 = por %p50, %p51
    %p53 = scmp.ne.s32.totalorder %s45, %s47
    %p54 = scmp.eq.s32.totalorder %s16, 1
    %p55 = por %p53, %p54
    %p56 = scmp.ne.s32.totalorder %s47, %s48
    %p57 = scmp.eq.s32.totalorder %s16, 0
    %p58 = por %p56, %p57
    %p59 = scmp.ne.s32.totalorder %s47, %s48
    %p60 = scmp.eq.s32.totalorder %s17, 1
    %p61 = por %p59, %p60
    %p63 = scmp.ne.s32.totalorder %s48, %s62
    %p64 = scmp.eq.s32.totalorder %s17, 0
    %p65 = por %p63, %p64
    %s66 = ssub.s32 %s11, %s18
    %p67 = scmp.eq.s32.totalorder %s66, 0
    %s69 = sadd.s32 %s68, 1
    %s70 = scalar_select %p67, %s68, %s69
    %p73 = pneg %p67
    %p74 = scmp.eq.s32.totalorder %s11, 1
    %p75 = por %p73, %p74
    %p76 = scmp.ne.s32.totalorder %s68, %s71
    %p77 = scmp.eq.s32.totalorder %s11, 0
    %p78 = por %p76, %p77
    %p79 = scmp.ne.s32.totalorder %s68, %s71
    %p80 = scmp.eq.s32.totalorder %s16, 1
    %p81 = por %p79, %p80
    %p82 = scmp.ne.s32.totalorder %s71, %s72
    %p83 = scmp.eq.s32.totalorder %s16, 0
    %p84 = por %p82, %p83
    %p85 = scmp.ne.s32.totalorder %s71, %s72
    %p86 = scmp.eq.s32.totalorder %s17, 1
    %p87 = por %p85, %p86
    %p89 = scmp.ne.s32.totalorder %s72, %s88
    %p90 = scmp.eq.s32.totalorder %s17, 0
    %p91 = por %p89, %p90
    %s92 = ssub.s32 %s11, %s18
    %p93 = scmp.eq.s32.totalorder %s92, 0
    %s95 = sadd.s32 %s94, 1
    %s96 = scalar_select %p93, %s94, %s95
    %p99 = pneg %p93
    %p100 = scmp.eq.s32.totalorder %s11, 1
    %p101 = por %p99, %p100
    %p102 = scmp.ne.s32.totalorder %s94, %s97
    %p103 = scmp.eq.s32.totalorder %s11, 0
    %p104 = por %p102, %p103
    %p105 = scmp.ne.s32.totalorder %s94, %s97
    %p106 = scmp.eq.s32.totalorder %s16, 1
    %p107 = por %p105, %p106
    %p108 = scmp.ne.s32.totalorder %s97, %s98
    %p109 = scmp.eq.s32.totalorder %s16, 0
    %p110 = por %p108, %p109
    %p111 = scmp.ne.s32.totalorder %s97, %s98
    %p112 = scmp.eq.s32.totalorder %s17, 1
    %p113 = por %p111, %p112
    %p115 = scmp.ne.s32.totalorder %s98, %s114
    %p116 = scmp.eq.s32.totalorder %s17, 0
    %p117 = por %p115, %p116
    %s118 = ssub.s32 %s11, %s18
    %p119 = scmp.eq.s32.totalorder %s118, 0
    %s121 = sadd.s32 %s120, 1
    %s122 = scalar_select %p119, %s120, %s121
    %p125 = pneg %p119
    %p126 = scmp.eq.s32.totalorder %s11, 1
    %p127 = por %p125, %p126
    %p128 = scmp.ne.s32.totalorder %s120, %s123
    %p129 = scmp.eq.s32.totalorder %s11, 0
    %p130 = por %p128, %p129
    %p131 = scmp.ne.s32.totalorder %s120, %s123
    %p132 = scmp.eq.s32.totalorder %s16, 1
    %p133 = por %p131, %p132
    %p134 = scmp.ne.s32.totalorder %s123, %s124
    %p135 = scmp.eq.s32.totalorder %s16, 0
    %p136 = por %p134, %p135
    %p137 = scmp.ne.s32.totalorder %s123, %s124
    %p138 = scmp.eq.s32.totalorder %s17, 1
    %p139 = por %p137, %p138
    %p141 = scmp.ne.s32.totalorder %s124, %s140
    %p142 = scmp.eq.s32.totalorder %s17, 0
    %p143 = por %p141, %p142
    %p144 = scmp.le.s32.totalorder 1, %s11
    %p145 = scmp.lt.s32.totalorder %s11, 3
    %p146 = pnand %p144, %p145
    %p147 = pneg %p146
    // Predicated region
    $region9: #{decoder_forward.6} parent=5 // pred_check
      _
    $region10: #{decoder_forward.6} parent=5 // pred_check_branch
      %149 = sbr.rel (%p146) target = $region12
    $region11: #{decoder_forward.6} parent=5 // pred_region
      %s150 = ssub.s32 %s11, 1
      // Predicated region
      $region13: #{decoder_forward.6} parent=11 // pred_check
        %p151 = pneg %p58
      $region14: #{decoder_forward.6} parent=11 // pred_check_branch
        %153 = sbr.rel (%p151) target = $region16
      $region15: #{decoder_forward.6} parent=11 // pred_region
        _
      $region16: #{decoder_forward.6} parent=11 // pred_fallthru
        _
    $region12: #{decoder_forward.6} parent=5 // pred_fallthru
      _
    %p154 = scmp.lt.s32.totalorder %s11, 2
    // Predicated region
    $region17: #{decoder_forward.6} parent=5 // pred_check
      %p155 = pneg %p154
    $region18: #{decoder_forward.6} parent=5 // pred_check_branch
      %157 = sbr.rel (%p155) target = $region20
    $region19: #{decoder_forward.6} parent=5 // pred_region
      // Predicated region
      $region21: #{decoder_forward.6} parent=19 // pred_check
        %p158 = pneg %p31
      $region22: #{decoder_forward.6} parent=19 // pred_check_branch
        %160 = sbr.rel (%p158) target = $region24
      $region23: #{decoder_forward.6} parent=19 // pred_region
        %s161 = smul.u32 128, %s11
        %p162 = scmp.lt.s32.totalorder %s161, 255
        %s163 = scalar_select %p162, %s161, 255
        %s164 = smul.addr %s163, 4
        %s165 = scalar_lea.vmem %s0, %s164
        %s166 = smul.u32 128, %s11
      $region24: #{decoder_forward.6} parent=19 // pred_fallthru
        _
    $region20: #{decoder_forward.6} parent=5 // pred_fallthru
      _
    %p167 = scmp.le.s32.totalorder 1, %s11
    %p168 = scmp.lt.s32.totalorder %s11, 3
    %p169 = pnand %p167, %p168
    %p170 = pneg %p169
    // Predicated region
    $region25: #{decoder_forward.6} parent=5 // pred_check
      _
    $region26: #{decoder_forward.6} parent=5 // pred_check_branch
      %172 = sbr.rel (%p169) target = $region28
    $region27: #{decoder_forward.6} parent=5 // pred_region
      %s173 = ssub.s32 %s11, 1
      %s174 = smul.u32 128, %s16
      %p175 = scmp.lt.s32.totalorder %s174, 255
      %s176 = scalar_select %p175, %s174, 255
      %s177 = smul.addr %s176, 4
      %s178 = scalar_lea.vmem %s0, %s177
      %p179 = pneg %p37
      %p180 = pneg %p34
      %p181 = pneg %p58
      %p182 = pneg %p55
      %p183 = pneg %p84
      %p184 = pneg %p81
      %s185 = smul.u32 128, %s16
      %p186 = scmp.lt.s32.totalorder %s185, 255
      %s187 = scalar_select %p186, %s185, 255
      %s188 = smul.addr %s187, 8
      %s189 = scalar_lea.vmem %s2, %s188
      %p190 = pneg %p110
      %p191 = pneg %p107
      %p192 = scmp.lt.s32.totalorder %s16, 1
      %s193 = scalar_select %p192, %s16, 1
      %s194 = smul.addr %s193, 8
      %s195 = scalar_lea.vmem %s3, %s194
      %p196 = pneg %p136
      %p197 = pneg %p133
      %p198 = scmp.lt.s32.totalorder %s16, 1
      %s199 = scalar_select %p198, %s16, 1
      %s200 = smul.addr %s199, 8
      %s201 = scalar_lea.vmem %s4, %s200
      %s202 = smul.u32 128, %s16
      %p203 = scmp.lt.s32.totalorder %s202, 255
      %s204 = scalar_select %p203, %s202, 255
      %s205 = smul.addr %s204, 4
      %s206 = scalar_lea.vmem %s0, %s205
      %s207 = smul.u32 128, %s16
      %s208 = smul.u32 128, %s16
      %p209 = scmp.lt.s32.totalorder %s208, 255
      %s210 = scalar_select %p209, %s208, 255
      %s211 = smul.addr %s210, 8
      %s212 = scalar_lea.vmem %s2, %s211
      %s213 = smul.u32 128, %s16
      %p214 = scmp.lt.s32.totalorder %s16, 1
      %s215 = scalar_select %p214, %s16, 1
      %s216 = smul.addr %s215, 8
      %s217 = scalar_lea.vmem %s3, %s216
      %p218 = scmp.lt.s32.totalorder %s16, 1
      %s219 = scalar_select %p218, %s16, 1
      %s220 = smul.addr %s219, 8
      %s221 = scalar_lea.vmem %s4, %s220
      %v223 = vld [vmem:[%s206] sm:$0xf]
      %v224 = vld [vmem:[%s206 + $0x4] sm:$0xf]
      %v225 = vld [vmem:[%s206 + $0x8] sm:$0xf]
      %v226 = vld [vmem:[%s206 + $0xc] sm:$0xf]
      %v227 = vld [vmem:[%s206 + $0x10] sm:$0xf]
      %v228 = vld [vmem:[%s206 + $0x14] sm:$0xf]
      %v229 = vld [vmem:[%s206 + $0x18] sm:$0xf]
      %v230 = vld [vmem:[%s206 + $0x1c] sm:$0xf]
      %v231 = vld [vmem:[%s206 + $0x20] sm:$0xf]
      %v232 = vld [vmem:[%s206 + $0x24] sm:$0xf]
      %v233 = vld [vmem:[%s206 + $0x28] sm:$0xf]
      %v234 = vld [vmem:[%s206 + $0x2c] sm:$0xf]
      %v235 = vld [vmem:[%s206 + $0x30] sm:$0xf]
      %v236 = vld [vmem:[%s206 + $0x34] sm:$0xf]
      %v237 = vld [vmem:[%s206 + $0x38] sm:$0xf]
      %v238 = vld [vmem:[%s206 + $0x3c] sm:$0xf]
      %v239 = vld [vmem:[%s206 + $0x40] sm:$0xf]
      %v240 = vld [vmem:[%s206 + $0x44] sm:$0xf]
      %v241 = vld [vmem:[%s206 + $0x48] sm:$0xf]
      %v242 = vld [vmem:[%s206 + $0x4c] sm:$0xf]
      %v243 = vld [vmem:[%s206 + $0x50] sm:$0xf]
      %v244 = vld [vmem:[%s206 + $0x54] sm:$0xf]
      %v245 = vld [vmem:[%s206 + $0x58] sm:$0xf]
      %v246 = vld [vmem:[%s206 + $0x5c] sm:$0xf]
      %v247 = vld [vmem:[%s206 + $0x60] sm:$0xf]
      %v248 = vld [vmem:[%s206 + $0x64] sm:$0xf]
      %v249 = vld [vmem:[%s206 + $0x68] sm:$0xf]
      %v250 = vld [vmem:[%s206 + $0x6c] sm:$0xf]
      %v251 = vld [vmem:[%s206 + $0x70] sm:$0xf]
      %v252 = vld [vmem:[%s206 + $0x74] sm:$0xf]
      %v253 = vld [vmem:[%s206 + $0x78] sm:$0xf]
      %v254 = vld [vmem:[%s206 + $0x7c] sm:$0xf]
      %v255 = vld [vmem:[%s206 + $0x80] sm:$0xf]
      %v256 = vld [vmem:[%s206 + $0x84] sm:$0xf]
      %v257 = vld [vmem:[%s206 + $0x88] sm:$0xf]
      %v258 = vld [vmem:[%s206 + $0x8c] sm:$0xf]
      %v259 = vld [vmem:[%s206 + $0x90] sm:$0xf]
      %v260 = vld [vmem:[%s206 + $0x94] sm:$0xf]
      %v261 = vld [vmem:[%s206 + $0x98] sm:$0xf]
      %v262 = vld [vmem:[%s206 + $0x9c] sm:$0xf]
      %v263 = vld [vmem:[%s206 + $0xa0] sm:$0xf]
      %v264 = vld [vmem:[%s206 + $0xa4] sm:$0xf]
      %v265 = vld [vmem:[%s206 + $0xa8] sm:$0xf]
      %v266 = vld [vmem:[%s206 + $0xac] sm:$0xf]
      %v267 = vld [vmem:[%s206 + $0xb0] sm:$0xf]
      %v268 = vld [vmem:[%s206 + $0xb4] sm:$0xf]
      %v269 = vld [vmem:[%s206 + $0xb8] sm:$0xf]
      %v270 = vld [vmem:[%s206 + $0xbc] sm:$0xf]
      %v271 = vld [vmem:[%s206 + $0xc0] sm:$0xf]
      %v272 = vld [vmem:[%s206 + $0xc4] sm:$0xf]
      %v273 = vld [vmem:[%s206 + $0xc8] sm:$0xf]
      %v274 = vld [vmem:[%s206 + $0xcc] sm:$0xf]
      %v275 = vld [vmem:[%s206 + $0xd0] sm:$0xf]
      %v276 = vld [vmem:[%s206 + $0xd4] sm:$0xf]
      %v277 = vld [vmem:[%s206 + $0xd8] sm:$0xf]
      %v278 = vld [vmem:[%s206 + $0xdc] sm:$0xf]
      %v279 = vld [vmem:[%s206 + $0xe0] sm:$0xf]
      %v280 = vld [vmem:[%s206 + $0xe4] sm:$0xf]
      %v281 = vld [vmem:[%s206 + $0xe8] sm:$0xf]
      %v282 = vld [vmem:[%s206 + $0xec] sm:$0xf]
      %v283 = vld [vmem:[%s206 + $0xf0] sm:$0xf]
      %v284 = vld [vmem:[%s206 + $0xf4] sm:$0xf]
      %v285 = vld [vmem:[%s206 + $0xf8] sm:$0xf]
      %v286 = vld [vmem:[%s206 + $0xfc] sm:$0xf]
      %v287 = vld [vmem:[%s206 + $0x100] sm:$0xf]
      %v288 = vld [vmem:[%s206 + $0x104] sm:$0xf]
      %v289 = vld [vmem:[%s206 + $0x108] sm:$0xf]
      %v290 = vld [vmem:[%s206 + $0x10c] sm:$0xf]
      %v291 = vld [vmem:[%s206 + $0x110] sm:$0xf]
      %v292 = vld [vmem:[%s206 + $0x114] sm:$0xf]
      %v293 = vld [vmem:[%s206 + $0x118] sm:$0xf]
      %v294 = vld [vmem:[%s206 + $0x11c] sm:$0xf]
      %v295 = vld [vmem:[%s206 + $0x120] sm:$0xf]
      %v296 = vld [vmem:[%s206 + $0x124] sm:$0xf]
      %v297 = vld [vmem:[%s206 + $0x128] sm:$0xf]
      %v298 = vld [vmem:[%s206 + $0x12c] sm:$0xf]
      %v299 = vld [vmem:[%s206 + $0x130] sm:$0xf]
      %v300 = vld [vmem:[%s206 + $0x134] sm:$0xf]
      %v301 = vld [vmem:[%s206 + $0x138] sm:$0xf]
      %v302 = vld [vmem:[%s206 + $0x13c] sm:$0xf]
      %v303 = vld [vmem:[%s206 + $0x140] sm:$0xf]
      %v304 = vld [vmem:[%s206 + $0x144] sm:$0xf]
      %v305 = vld [vmem:[%s206 + $0x148] sm:$0xf]
      %v306 = vld [vmem:[%s206 + $0x14c] sm:$0xf]
      %v307 = vld [vmem:[%s206 + $0x150] sm:$0xf]
      %v308 = vld [vmem:[%s206 + $0x154] sm:$0xf]
      %v309 = vld [vmem:[%s206 + $0x158] sm:$0xf]
      %v310 = vld [vmem:[%s206 + $0x15c] sm:$0xf]
      %v311 = vld [vmem:[%s206 + $0x160] sm:$0xf]
      %v312 = vld [vmem:[%s206 + $0x164] sm:$0xf]
      %v313 = vld [vmem:[%s206 + $0x168] sm:$0xf]
      %v314 = vld [vmem:[%s206 + $0x16c] sm:$0xf]
      %v315 = vld [vmem:[%s206 + $0x170] sm:$0xf]
      %v316 = vld [vmem:[%s206 + $0x174] sm:$0xf]
      %v317 = vld [vmem:[%s206 + $0x178] sm:$0xf]
      %v318 = vld [vmem:[%s206 + $0x17c] sm:$0xf]
      %v319 = vld [vmem:[%s206 + $0x180] sm:$0xf]
      %v320 = vld [vmem:[%s206 + $0x184] sm:$0xf]
      %v321 = vld [vmem:[%s206 + $0x188] sm:$0xf]
      %v322 = vld [vmem:[%s206 + $0x18c] sm:$0xf]
      %v323 = vld [vmem:[%s206 + $0x190] sm:$0xf]
      %v324 = vld [vmem:[%s206 + $0x194] sm:$0xf]
      %v325 = vld [vmem:[%s206 + $0x198] sm:$0xf]
      %v326 = vld [vmem:[%s206 + $0x19c] sm:$0xf]
      %v327 = vld [vmem:[%s206 + $0x1a0] sm:$0xf]
      %v328 = vld [vmem:[%s206 + $0x1a4] sm:$0xf]
      %v329 = vld [vmem:[%s206 + $0x1a8] sm:$0xf]
      %v330 = vld [vmem:[%s206 + $0x1ac] sm:$0xf]
      %v331 = vld [vmem:[%s206 + $0x1b0] sm:$0xf]
      %v332 = vld [vmem:[%s206 + $0x1b4] sm:$0xf]
      %v333 = vld [vmem:[%s206 + $0x1b8] sm:$0xf]
      %v334 = vld [vmem:[%s206 + $0x1bc] sm:$0xf]
      %v335 = vld [vmem:[%s206 + $0x1c0] sm:$0xf]
      %v336 = vld [vmem:[%s206 + $0x1c4] sm:$0xf]
      %v337 = vld [vmem:[%s206 + $0x1c8] sm:$0xf]
      %v338 = vld [vmem:[%s206 + $0x1cc] sm:$0xf]
      %v339 = vld [vmem:[%s206 + $0x1d0] sm:$0xf]
      %v340 = vld [vmem:[%s206 + $0x1d4] sm:$0xf]
      %v341 = vld [vmem:[%s206 + $0x1d8] sm:$0xf]
      %v342 = vld [vmem:[%s206 + $0x1dc] sm:$0xf]
      %v343 = vld [vmem:[%s206 + $0x1e0] sm:$0xf]
      %v344 = vld [vmem:[%s206 + $0x1e4] sm:$0xf]
      %v345 = vld [vmem:[%s206 + $0x1e8] sm:$0xf]
      %v346 = vld [vmem:[%s206 + $0x1ec] sm:$0xf]
      %v347 = vld [vmem:[%s206 + $0x1f0] sm:$0xf]
      %v348 = vld [vmem:[%s206 + $0x1f4] sm:$0xf]
      %v349 = vld [vmem:[%s206 + $0x1f8] sm:$0xf]
      %v350 = vld [vmem:[%s206 + $0x1fc] sm:$0xf]
      %v351 = vld [vmem:[%s1] sm:$0xf]
      %v352 = vld [vmem:[%s1 + $0x4] sm:$0xf]
      %v353 = vld [vmem:[%s1 + $0x8] sm:$0xf]
      %v354 = vld [vmem:[%s1 + $0xc] sm:$0xf]
      %v355 = vld [vmem:[%s1 + $0x10] sm:$0xf]
      %v356 = vld [vmem:[%s1 + $0x14] sm:$0xf]
      %v357 = vld [vmem:[%s1 + $0x18] sm:$0xf]
      %v358 = vld [vmem:[%s1 + $0x1c] sm:$0xf]
      %v359 = vld [vmem:[%s1 + $0x20] sm:$0xf]
      %v488 = vunpack.c.l.b16 %v223
      %v489 = vunpack.c.l.b16 %v224
      %v490 = vunpack.c.l.b16 %v225
      %v491 = vunpack.c.l.b16 %v226
      %v492 = vunpack.c.l.b16 %v227
      %v493 = vunpack.c.l.b16 %v228
      %v494 = vunpack.c.l.b16 %v229
      %v495 = vunpack.c.l.b16 %v230
      %v496 = vunpack.c.l.b16 %v231
      %v497 = vunpack.c.l.b16 %v232
      %v498 = vunpack.c.l.b16 %v233
      %v499 = vunpack.c.l.b16 %v234
      %v500 = vunpack.c.l.b16 %v235
      %v501 = vunpack.c.l.b16 %v236
      %v502 = vunpack.c.l.b16 %v237
      %v503 = vunpack.c.l.b16 %v238
      %v504 = vunpack.c.l.b16 %v239
      %v505 = vunpack.c.l.b16 %v240
      %v506 = vunpack.c.l.b16 %v241
      %v507 = vunpack.c.l.b16 %v242
      %v508 = vunpack.c.l.b16 %v243
      %v509 = vunpack.c.l.b16 %v244
      %v510 = vunpack.c.l.b16 %v245
      %v511 = vunpack.c.l.b16 %v246
      %v512 = vunpack.c.l.b16 %v247
      %v513 = vunpack.c.l.b16 %v248
      %v514 = vunpack.c.l.b16 %v249
      %v515 = vunpack.c.l.b16 %v250
      %v516 = vunpack.c.l.b16 %v251
      %v517 = vunpack.c.l.b16 %v252
      %v518 = vunpack.c.l.b16 %v253
      %v519 = vunpack.c.l.b16 %v254
      %v520 = vunpack.c.l.b16 %v255
      %v521 = vunpack.c.l.b16 %v256
      %v522 = vunpack.c.l.b16 %v257
      %v523 = vunpack.c.l.b16 %v258
      %v524 = vunpack.c.l.b16 %v259
      %v525 = vunpack.c.l.b16 %v260
      %v526 = vunpack.c.l.b16 %v261
      %v527 = vunpack.c.l.b16 %v262
      %v528 = vunpack.c.l.b16 %v263
      %v529 = vunpack.c.l.b16 %v264
      %v530 = vunpack.c.l.b16 %v265
      %v531 = vunpack.c.l.b16 %v266
      %v532 = vunpack.c.l.b16 %v267
      %v533 = vunpack.c.l.b16 %v268
      %v534 = vunpack.c.l.b16 %v269
      %v535 = vunpack.c.l.b16 %v270
      %v536 = vunpack.c.l.b16 %v271
      %v537 = vunpack.c.l.b16 %v272
      %v538 = vunpack.c.l.b16 %v273
      %v539 = vunpack.c.l.b16 %v274
      %v540 = vunpack.c.l.b16 %v275
      %v541 = vunpack.c.l.b16 %v276
      %v542 = vunpack.c.l.b16 %v277
      %v543 = vunpack.c.l.b16 %v278
      %v544 = vunpack.c.l.b16 %v279
      %v545 = vunpack.c.l.b16 %v280
      %v546 = vunpack.c.l.b16 %v281
      %v547 = vunpack.c.l.b16 %v282
      %v548 = vunpack.c.l.b16 %v283
      %v549 = vunpack.c.l.b16 %v284
      %v550 = vunpack.c.l.b16 %v285
      %v551 = vunpack.c.l.b16 %v286
      %v552 = vunpack.c.l.b16 %v287
      %v553 = vunpack.c.l.b16 %v288
      %v554 = vunpack.c.l.b16 %v289
      %v555 = vunpack.c.l.b16 %v290
      %v556 = vunpack.c.l.b16 %v291
      %v557 = vunpack.c.l.b16 %v292
      %v558 = vunpack.c.l.b16 %v293
      %v559 = vunpack.c.l.b16 %v294
      %v560 = vunpack.c.l.b16 %v295
      %v561 = vunpack.c.l.b16 %v296
      %v562 = vunpack.c.l.b16 %v297
      %v563 = vunpack.c.l.b16 %v298
      %v564 = vunpack.c.l.b16 %v299
      %v565 = vunpack.c.l.b16 %v300
      %v566 = vunpack.c.l.b16 %v301
      %v567 = vunpack.c.l.b16 %v302
      %v568 = vunpack.c.l.b16 %v303
      %v569 = vunpack.c.l.b16 %v304
      %v570 = vunpack.c.l.b16 %v305
      %v571 = vunpack.c.l.b16 %v306
      %v572 = vunpack.c.l.b16 %v307
      %v573 = vunpack.c.l.b16 %v308
      %v574 = vunpack.c.l.b16 %v309
      %v575 = vunpack.c.l.b16 %v310
      %v576 = vunpack.c.l.b16 %v311
      %v577 = vunpack.c.l.b16 %v312
      %v578 = vunpack.c.l.b16 %v313
      %v579 = vunpack.c.l.b16 %v314
      %v580 = vunpack.c.l.b16 %v315
      %v581 = vunpack.c.l.b16 %v316
      %v582 = vunpack.c.l.b16 %v317
      %v583 = vunpack.c.l.b16 %v318
      %v584 = vunpack.c.l.b16 %v319
      %v585 = vunpack.c.l.b16 %v320
      %v586 = vunpack.c.l.b16 %v321
      %v587 = vunpack.c.l.b16 %v322
      %v588 = vunpack.c.l.b16 %v323
      %v589 = vunpack.c.l.b16 %v324
      %v590 = vunpack.c.l.b16 %v325
      %v591 = vunpack.c.l.b16 %v326
      %v592 = vunpack.c.l.b16 %v327
      %v593 = vunpack.c.l.b16 %v328
      %v594 = vunpack.c.l.b16 %v329
      %v595 = vunpack.c.l.b16 %v330
      %v596 = vunpack.c.l.b16 %v331
      %v597 = vunpack.c.l.b16 %v332
      %v598 = vunpack.c.l.b16 %v333
      %v599 = vunpack.c.l.b16 %v334
      %v600 = vunpack.c.l.b16 %v335
      %v601 = vunpack.c.l.b16 %v336
      %v602 = vunpack.c.l.b16 %v337
      %v603 = vunpack.c.l.b16 %v338
      %v604 = vunpack.c.l.b16 %v339
      %v605 = vunpack.c.l.b16 %v340
      %v606 = vunpack.c.l.b16 %v341
      %v607 = vunpack.c.l.b16 %v342
      %v608 = vunpack.c.l.b16 %v343
      %v609 = vunpack.c.l.b16 %v344
      %v610 = vunpack.c.l.b16 %v345
      %v611 = vunpack.c.l.b16 %v346
      %v612 = vunpack.c.l.b16 %v347
      %v613 = vunpack.c.l.b16 %v348
      %v614 = vunpack.c.l.b16 %v349
      %v615 = vunpack.c.l.b16 %v350
      %v616 = vpack.c.b16 %v489, %v488
      %v617 = vpack.c.b16 %v491, %v490
      %v618 = vpack.c.b16 %v493, %v492
      %v619 = vpack.c.b16 %v495, %v494
      %v620 = vpack.c.b16 %v497, %v496
      %v621 = vpack.c.b16 %v499, %v498
      %v622 = vpack.c.b16 %v501, %v500
      %v623 = vpack.c.b16 %v503, %v502
      %v624 = vpack.c.b16 %v505, %v504
      %v625 = vpack.c.b16 %v507, %v506
      %v626 = vpack.c.b16 %v509, %v508
      %v627 = vpack.c.b16 %v511, %v510
      %v628 = vpack.c.b16 %v513, %v512
      %v629 = vpack.c.b16 %v515, %v514
      %v630 = vpack.c.b16 %v517, %v516
      %v631 = vpack.c.b16 %v519, %v518
      %v632 = vpack.c.b16 %v521, %v520
      %v633 = vpack.c.b16 %v523, %v522
      %v634 = vpack.c.b16 %v525, %v524
      %v635 = vpack.c.b16 %v527, %v526
      %v636 = vpack.c.b16 %v529, %v528
      %v637 = vpack.c.b16 %v531, %v530
      %v638 = vpack.c.b16 %v533, %v532
      %v639 = vpack.c.b16 %v535, %v534
      %v640 = vpack.c.b16 %v537, %v536
      %v641 = vpack.c.b16 %v539, %v538
      %v642 = vpack.c.b16 %v541, %v540
      %v643 = vpack.c.b16 %v543, %v542
      %v644 = vpack.c.b16 %v545, %v544
      %v645 = vpack.c.b16 %v547, %v546
      %v646 = vpack.c.b16 %v549, %v548
      %v647 = vpack.c.b16 %v551, %v550
      %v648 = vpack.c.b16 %v553, %v552
      %v649 = vpack.c.b16 %v555, %v554
      %v650 = vpack.c.b16 %v557, %v556
      %v651 = vpack.c.b16 %v559, %v558
      %v652 = vpack.c.b16 %v561, %v560
      %v653 = vpack.c.b16 %v563, %v562
      %v654 = vpack.c.b16 %v565, %v564
      %v655 = vpack.c.b16 %v567, %v566
      %v656 = vpack.c.b16 %v569, %v568
      %v657 = vpack.c.b16 %v571, %v570
      %v658 = vpack.c.b16 %v573, %v572
      %v659 = vpack.c.b16 %v575, %v574
      %v660 = vpack.c.b16 %v577, %v576
      %v661 = vpack.c.b16 %v579, %v578
      %v662 = vpack.c.b16 %v581, %v580
      %v663 = vpack.c.b16 %v583, %v582
      %v664 = vpack.c.b16 %v585, %v584
      %v665 = vpack.c.b16 %v587, %v586
      %v666 = vpack.c.b16 %v589, %v588
      %v667 = vpack.c.b16 %v591, %v590
      %v668 = vpack.c.b16 %v593, %v592
      %v669 = vpack.c.b16 %v595, %v594
      %v670 = vpack.c.b16 %v597, %v596
      %v671 = vpack.c.b16 %v599, %v598
      %v672 = vpack.c.b16 %v601, %v600
      %v673 = vpack.c.b16 %v603, %v602
      %v674 = vpack.c.b16 %v605, %v604
      %v675 = vpack.c.b16 %v607, %v606
      %v676 = vpack.c.b16 %v609, %v608
      %v677 = vpack.c.b16 %v611, %v610
      %v678 = vpack.c.b16 %v613, %v612
      %v679 = vpack.c.b16 %v615, %v614
      %v689 = vunpack.c.l.b16 %v351
      %v690 = vunpack.c.l.b16 %v352
      %v691 = vunpack.c.l.b16 %v353
      %v692 = vunpack.c.l.b16 %v354
      %v693 = vunpack.c.l.b16 %v355
      %v694 = vunpack.c.l.b16 %v356
      %v695 = vunpack.c.l.b16 %v357
      %v696 = vunpack.c.l.b16 %v358
      %v697 = vunpack.c.l.b16 %v359
      %v698 = vpack.c.b16 %v690, %v689
      %v699 = vpack.c.b16 %v692, %v691
      %v700 = vpack.c.b16 %v694, %v693
      %v701 = vpack.c.b16 %v696, %v695
      %v702 = vpack.c.b16 %v697, %v697
      %vm707 = vcmask 588800
      %v709 = vsel %vm707, %v616, 0
      %v712 = vsel %vm707, %v617, 0
      %v715 = vsel %vm707, %v618, 0
      %v718 = vsel %vm707, %v619, 0
      %v721 = vsel %vm707, %v620, 0
      %v724 = vsel %vm707, %v621, 0
      %v727 = vsel %vm707, %v622, 0
      %v730 = vsel %vm707, %v623, 0
      %v733 = vsel %vm707, %v624, 0
      %v736 = vsel %vm707, %v625, 0
      %v739 = vsel %vm707, %v626, 0
      %v742 = vsel %vm707, %v627, 0
      %v745 = vsel %vm707, %v628, 0
      %v748 = vsel %vm707, %v629, 0
      %v751 = vsel %vm707, %v630, 0
      %v754 = vsel %vm707, %v631, 0
      %v757 = vsel %vm707, %v632, 0
      %v760 = vsel %vm707, %v633, 0
      %v763 = vsel %vm707, %v634, 0
      %v766 = vsel %vm707, %v635, 0
      %v769 = vsel %vm707, %v636, 0
      %v772 = vsel %vm707, %v637, 0
      %v775 = vsel %vm707, %v638, 0
      %v778 = vsel %vm707, %v639, 0
      %v781 = vsel %vm707, %v640, 0
      %v784 = vsel %vm707, %v641, 0
      %v787 = vsel %vm707, %v642, 0
      %v790 = vsel %vm707, %v643, 0
      %v793 = vsel %vm707, %v644, 0
      %v796 = vsel %vm707, %v645, 0
      %v799 = vsel %vm707, %v646, 0
      %v802 = vsel %vm707, %v647, 0
      %v805 = vsel %vm707, %v648, 0
      %v808 = vsel %vm707, %v649, 0
      %v811 = vsel %vm707, %v650, 0
      %v814 = vsel %vm707, %v651, 0
      %v817 = vsel %vm707, %v652, 0
      %v820 = vsel %vm707, %v653, 0
      %v823 = vsel %vm707, %v654, 0
      %v826 = vsel %vm707, %v655, 0
      %v829 = vsel %vm707, %v656, 0
      %v832 = vsel %vm707, %v657, 0
      %v835 = vsel %vm707, %v658, 0
      %v838 = vsel %vm707, %v659, 0
      %v841 = vsel %vm707, %v660, 0
      %v844 = vsel %vm707, %v661, 0
      %v847 = vsel %vm707, %v662, 0
      %v850 = vsel %vm707, %v663, 0
      %v853 = vsel %vm707, %v664, 0
      %v856 = vsel %vm707, %v665, 0
      %v859 = vsel %vm707, %v666, 0
      %v862 = vsel %vm707, %v667, 0
      %v865 = vsel %vm707, %v668, 0
      %v868 = vsel %vm707, %v669, 0
      %v871 = vsel %vm707, %v670, 0
      %v874 = vsel %vm707, %v671, 0
      %v877 = vsel %vm707, %v672, 0
      %v880 = vsel %vm707, %v673, 0
      %v883 = vsel %vm707, %v674, 0
      %v886 = vsel %vm707, %v675, 0
      %v889 = vsel %vm707, %v676, 0
      %v892 = vsel %vm707, %v677, 0
      %v895 = vsel %vm707, %v678, 0
      %v898 = vsel %vm707, %v679, 0
      %vm900 = vcmask 1043456
      %v902 = vsel %vm900, %v702, 0
      %904 = vmatprep.subr.bf16.mxu0 0
      %905 = vmatpush1.bf16.msra.mxu0 0
      %906 = vmatprep.subr.bf16.mxu0 0
      %907 = vmatpush1.bf16.msra.mxu0 0
      %908 = vmatprep.subr.bf16.mxu0 0
      %909 = vmatpush1.bf16.msra.mxu0 0
      %910 = vmatprep.subr.bf16.mxu0 0
      %911 = vmatpush1.bf16.msra.mxu0 %v902
      %912 = vmatprep.subr.bf16.mxu0 0
      %913 = vmatpush1.bf16.msra.mxu0 %v701
      %914 = vmatprep.subr.bf16.mxu0 0
      %915 = vmatpush1.bf16.msra.mxu0 %v700
      %916 = vmatprep.subr.bf16.mxu0 0
      %917 = vmatpush1.bf16.msra.mxu0 %v699
      %918 = vmatprep.subr.bf16.mxu0 0
      %919 = vmatpush1.bf16.msra.mxu0 %v698
      %920 = vmatprep.subr.bf16.mxu0 0
      %921 = vmatpush2.bf16.msra.mxu0 0
      %922 = vmatprep.subr.bf16.mxu0 0
      %923 = vmatpush2.bf16.msra.mxu0 0
      %924 = vmatprep.subr.bf16.mxu0 0
      %925 = vmatpush2.bf16.msra.mxu0 0
      %926 = vmatprep.subr.bf16.mxu0 0
      %927 = vmatpush2.bf16.msra.mxu0 0
      %928 = vmatprep.subr.bf16.mxu0 0
      %929 = vmatpush2.bf16.msra.mxu0 0
      %930 = vmatprep.subr.bf16.mxu0 0
      %931 = vmatpush2.bf16.msra.mxu0 0
      %932 = vmatprep.subr.bf16.mxu0 0
      %933 = vmatpush2.bf16.msra.mxu0 0
      %934 = vmatprep.subr.bf16.mxu0 0
      %935 = vmatpush2.bf16.msra.mxu0 0
      %936 = vmatprep.mubr.bf16.mxu0 0
      %937 = vmatmul.mubr.bf16.gmra.mxu0 %v709
      %v938 = vpop.f32.mrf.mxu0
      %v939 = vadd.f32 0.0, %v938
      %v940 = vpop.f32.mrf.mxu0
      %v941 = vpop.f32.mrf.mxu0
      %v942 = vadd.f32 0.0, %v941
      %v943 = vpop.f32.mrf.mxu0
      %944 = vmatprep.mubr.bf16.mxu0 0
      %945 = vmatmul.mubr.bf16.gmra.mxu0 %v712
      %v946 = vpop.f32.mrf.mxu0
      %v947 = vadd.f32 0.0, %v946
      %v948 = vpop.f32.mrf.mxu0
      %v949 = vpop.f32.mrf.mxu0
      %v950 = vadd.f32 0.0, %v949
      %v951 = vpop.f32.mrf.mxu0
      %952 = vmatprep.mubr.bf16.mxu0 0
      %953 = vmatmul.mubr.bf16.gmra.mxu0 %v715
      %v954 = vpop.f32.mrf.mxu0
      %v955 = vadd.f32 0.0, %v954
      %v956 = vpop.f32.mrf.mxu0
      %v957 = vpop.f32.mrf.mxu0
      %v958 = vadd.f32 0.0, %v957
      %v959 = vpop.f32.mrf.mxu0
      %960 = vmatprep.mubr.bf16.mxu0 0
      %961 = vmatmul.mubr.bf16.gmra.mxu0 %v718
      %v962 = vpop.f32.mrf.mxu0
      %v963 = vadd.f32 0.0, %v962
      %v964 = vpop.f32.mrf.mxu0
      %v965 = vpop.f32.mrf.mxu0
      %v966 = vadd.f32 0.0, %v965
      %v967 = vpop.f32.mrf.mxu0
      %968 = vmatprep.mubr.bf16.mxu0 0
      %969 = vmatmul.mubr.bf16.gmra.mxu0 %v721
      %v970 = vpop.f32.mrf.mxu0
      %v971 = vadd.f32 0.0, %v970
      %v972 = vpop.f32.mrf.mxu0
      %v973 = vpop.f32.mrf.mxu0
      %v974 = vadd.f32 0.0, %v973
      %v975 = vpop.f32.mrf.mxu0
      %976 = vmatprep.mubr.bf16.mxu0 0
      %977 = vmatmul.mubr.bf16.gmra.mxu0 %v724
      %v978 = vpop.f32.mrf.mxu0
      %v979 = vadd.f32 0.0, %v978
      %v980 = vpop.f32.mrf.mxu0
      %v981 = vpop.f32.mrf.mxu0
      %v982 = vadd.f32 0.0, %v981
      %v983 = vpop.f32.mrf.mxu0
      %984 = vmatprep.mubr.bf16.mxu0 0
      %985 = vmatmul.mubr.bf16.gmra.mxu0 %v727
      %v986 = vpop.f32.mrf.mxu0
      %v987 = vadd.f32 0.0, %v986
      %v988 = vpop.f32.mrf.mxu0
      %v989 = vpop.f32.mrf.mxu0
      %v990 = vadd.f32 0.0, %v989
      %v991 = vpop.f32.mrf.mxu0
      %992 = vmatprep.mubr.bf16.mxu0 0
      %993 = vmatmul.mubr.bf16.gmra.mxu0 %v730
      %v994 = vpop.f32.mrf.mxu0
      %v995 = vadd.f32 0.0, %v994
      %v996 = vpop.f32.mrf.mxu0
      %v997 = vpop.f32.mrf.mxu0
      %v998 = vadd.f32 0.0, %v997
      %v999 = vpop.f32.mrf.mxu0
      %1000 = vmatprep.mubr.bf16.mxu0 0
      %1001 = vmatmul.mubr.bf16.gmra.mxu0 %v733
      %v1002 = vpop.f32.mrf.mxu0
      %v1003 = vadd.f32 0.0, %v1002
      %v1004 = vpop.f32.mrf.mxu0
      %v1005 = vpop.f32.mrf.mxu0
      %v1006 = vadd.f32 0.0, %v1005
      %v1007 = vpop.f32.mrf.mxu0
      %1008 = vmatprep.mubr.bf16.mxu0 0
      %1009 = vmatmul.mubr.bf16.gmra.mxu0 %v736
      %v1010 = vpop.f32.mrf.mxu0
      %v1011 = vadd.f32 0.0, %v1010
      %v1012 = vpop.f32.mrf.mxu0
      %v1013 = vpop.f32.mrf.mxu0
      %v1014 = vadd.f32 0.0, %v1013
      %v1015 = vpop.f32.mrf.mxu0
      %1016 = vmatprep.mubr.bf16.mxu0 0
      %1017 = vmatmul.mubr.bf16.gmra.mxu0 %v739
      %v1018 = vpop.f32.mrf.mxu0
      %v1019 = vadd.f32 0.0, %v1018
      %v1020 = vpop.f32.mrf.mxu0
      %v1021 = vpop.f32.mrf.mxu0
      %v1022 = vadd.f32 0.0, %v1021
      %v1023 = vpop.f32.mrf.mxu0
      %1024 = vmatprep.mubr.bf16.mxu0 0
      %1025 = vmatmul.mubr.bf16.gmra.mxu0 %v742
      %v1026 = vpop.f32.mrf.mxu0
      %v1027 = vadd.f32 0.0, %v1026
      %v1028 = vpop.f32.mrf.mxu0
      %v1029 = vpop.f32.mrf.mxu0
      %v1030 = vadd.f32 0.0, %v1029
      %v1031 = vpop.f32.mrf.mxu0
      %1032 = vmatprep.mubr.bf16.mxu0 0
      %1033 = vmatmul.mubr.bf16.gmra.mxu0 %v745
      %v1034 = vpop.f32.mrf.mxu0
      %v1035 = vadd.f32 0.0, %v1034
      %v1036 = vpop.f32.mrf.mxu0
      %v1037 = vpop.f32.mrf.mxu0
      %v1038 = vadd.f32 0.0, %v1037
      %v1039 = vpop.f32.mrf.mxu0
      %1040 = vmatprep.mubr.bf16.mxu0 0
      %1041 = vmatmul.mubr.bf16.gmra.mxu0 %v748
      %v1042 = vpop.f32.mrf.mxu0
      %v1043 = vadd.f32 0.0, %v1042
      %v1044 = vpop.f32.mrf.mxu0
      %v1045 = vpop.f32.mrf.mxu0
      %v1046 = vadd.f32 0.0, %v1045
      %v1047 = vpop.f32.mrf.mxu0
      %1048 = vmatprep.mubr.bf16.mxu0 0
      %1049 = vmatmul.mubr.bf16.gmra.mxu0 %v751
      %v1050 = vpop.f32.mrf.mxu0
      %v1051 = vadd.f32 0.0, %v1050
      %v1052 = vpop.f32.mrf.mxu0
      %v1053 = vpop.f32.mrf.mxu0
      %v1054 = vadd.f32 0.0, %v1053
      %v1055 = vpop.f32.mrf.mxu0
      %1056 = vmatprep.mubr.bf16.mxu0 0
      %1057 = vmatmul.mubr.bf16.gmra.mxu0 %v754
      %v1058 = vpop.f32.mrf.mxu0
      %v1059 = vadd.f32 0.0, %v1058
      %v1060 = vpop.f32.mrf.mxu0
      %v1061 = vpop.f32.mrf.mxu0
      %v1062 = vadd.f32 0.0, %v1061
      %v1063 = vpop.f32.mrf.mxu0
      %1064 = vmatprep.mubr.bf16.mxu0 0
      %1065 = vmatmul.mubr.bf16.gmra.mxu0 %v757
      %v1066 = vpop.f32.mrf.mxu0
      %v1067 = vadd.f32 0.0, %v1066
      %v1068 = vpop.f32.mrf.mxu0
      %v1069 = vpop.f32.mrf.mxu0
      %v1070 = vadd.f32 0.0, %v1069
      %v1071 = vpop.f32.mrf.mxu0
      %1072 = vmatprep.mubr.bf16.mxu0 0
      %1073 = vmatmul.mubr.bf16.gmra.mxu0 %v760
      %v1074 = vpop.f32.mrf.mxu0
      %v1075 = vadd.f32 0.0, %v1074
      %v1076 = vpop.f32.mrf.mxu0
      %v1077 = vpop.f32.mrf.mxu0
      %v1078 = vadd.f32 0.0, %v1077
      %v1079 = vpop.f32.mrf.mxu0
      %1080 = vmatprep.mubr.bf16.mxu0 0
      %1081 = vmatmul.mubr.bf16.gmra.mxu0 %v763
      %v1082 = vpop.f32.mrf.mxu0
      %v1083 = vadd.f32 0.0, %v1082
      %v1084 = vpop.f32.mrf.mxu0
      %v1085 = vpop.f32.mrf.mxu0
      %v1086 = vadd.f32 0.0, %v1085
      %v1087 = vpop.f32.mrf.mxu0
      %1088 = vmatprep.mubr.bf16.mxu0 0
      %1089 = vmatmul.mubr.bf16.gmra.mxu0 %v766
      %v1090 = vpop.f32.mrf.mxu0
      %v1091 = vadd.f32 0.0, %v1090
      %v1092 = vpop.f32.mrf.mxu0
      %v1093 = vpop.f32.mrf.mxu0
      %v1094 = vadd.f32 0.0, %v1093
      %v1095 = vpop.f32.mrf.mxu0
      %1096 = vmatprep.mubr.bf16.mxu0 0
      %1097 = vmatmul.mubr.bf16.gmra.mxu0 %v769
      %v1098 = vpop.f32.mrf.mxu0
      %v1099 = vadd.f32 0.0, %v1098
      %v1100 = vpop.f32.mrf.mxu0
      %v1101 = vpop.f32.mrf.mxu0
      %v1102 = vadd.f32 0.0, %v1101
      %v1103 = vpop.f32.mrf.mxu0
      %1104 = vmatprep.mubr.bf16.mxu0 0
      %1105 = vmatmul.mubr.bf16.gmra.mxu0 %v772
      %v1106 = vpop.f32.mrf.mxu0
      %v1107 = vadd.f32 0.0, %v1106
      %v1108 = vpop.f32.mrf.mxu0
      %v1109 = vpop.f32.mrf.mxu0
      %v1110 = vadd.f32 0.0, %v1109
      %v1111 = vpop.f32.mrf.mxu0
      %1112 = vmatprep.mubr.bf16.mxu0 0
      %1113 = vmatmul.mubr.bf16.gmra.mxu0 %v775
      %v1114 = vpop.f32.mrf.mxu0
      %v1115 = vadd.f32 0.0, %v1114
      %v1116 = vpop.f32.mrf.mxu0
      %v1117 = vpop.f32.mrf.mxu0
      %v1118 = vadd.f32 0.0, %v1117
      %v1119 = vpop.f32.mrf.mxu0
      %1120 = vmatprep.mubr.bf16.mxu0 0
      %1121 = vmatmul.mubr.bf16.gmra.mxu0 %v778
      %v1122 = vpop.f32.mrf.mxu0
      %v1123 = vadd.f32 0.0, %v1122
      %v1124 = vpop.f32.mrf.mxu0
      %v1125 = vpop.f32.mrf.mxu0
      %v1126 = vadd.f32 0.0, %v1125
      %v1127 = vpop.f32.mrf.mxu0
      %1128 = vmatprep.mubr.bf16.mxu0 0
      %1129 = vmatmul.mubr.bf16.gmra.mxu0 %v781
      %v1130 = vpop.f32.mrf.mxu0
      %v1131 = vadd.f32 0.0, %v1130
      %v1132 = vpop.f32.mrf.mxu0
      %v1133 = vpop.f32.mrf.mxu0
      %v1134 = vadd.f32 0.0, %v1133
      %v1135 = vpop.f32.mrf.mxu0
      %1136 = vmatprep.mubr.bf16.mxu0 0
      %1137 = vmatmul.mubr.bf16.gmra.mxu0 %v784
      %v1138 = vpop.f32.mrf.mxu0
      %v1139 = vadd.f32 0.0, %v1138
      %v1140 = vpop.f32.mrf.mxu0
      %v1141 = vpop.f32.mrf.mxu0
      %v1142 = vadd.f32 0.0, %v1141
      %v1143 = vpop.f32.mrf.mxu0
      %1144 = vmatprep.mubr.bf16.mxu0 0
      %1145 = vmatmul.mubr.bf16.gmra.mxu0 %v787
      %v1146 = vpop.f32.mrf.mxu0
      %v1147 = vadd.f32 0.0, %v1146
      %v1148 = vpop.f32.mrf.mxu0
      %v1149 = vpop.f32.mrf.mxu0
      %v1150 = vadd.f32 0.0, %v1149
      %v1151 = vpop.f32.mrf.mxu0
      %1152 = vmatprep.mubr.bf16.mxu0 0
      %1153 = vmatmul.mubr.bf16.gmra.mxu0 %v790
      %v1154 = vpop.f32.mrf.mxu0
      %v1155 = vadd.f32 0.0, %v1154
      %v1156 = vpop.f32.mrf.mxu0
      %v1157 = vpop.f32.mrf.mxu0
      %v1158 = vadd.f32 0.0, %v1157
      %v1159 = vpop.f32.mrf.mxu0
      %1160 = vmatprep.mubr.bf16.mxu0 0
      %1161 = vmatmul.mubr.bf16.gmra.mxu0 %v793
      %v1162 = vpop.f32.mrf.mxu0
      %v1163 = vadd.f32 0.0, %v1162
      %v1164 = vpop.f32.mrf.mxu0
      %v1165 = vpop.f32.mrf.mxu0
      %v1166 = vadd.f32 0.0, %v1165
      %v1167 = vpop.f32.mrf.mxu0
      %1168 = vmatprep.mubr.bf16.mxu0 0
      %1169 = vmatmul.mubr.bf16.gmra.mxu0 %v796
      %v1170 = vpop.f32.mrf.mxu0
      %v1171 = vadd.f32 0.0, %v1170
      %v1172 = vpop.f32.mrf.mxu0
      %v1173 = vpop.f32.mrf.mxu0
      %v1174 = vadd.f32 0.0, %v1173
      %v1175 = vpop.f32.mrf.mxu0
      %1176 = vmatprep.mubr.bf16.mxu0 0
      %1177 = vmatmul.mubr.bf16.gmra.mxu0 %v799
      %v1178 = vpop.f32.mrf.mxu0
      %v1179 = vadd.f32 0.0, %v1178
      %v1180 = vpop.f32.mrf.mxu0
      %v1181 = vpop.f32.mrf.mxu0
      %v1182 = vadd.f32 0.0, %v1181
      %v1183 = vpop.f32.mrf.mxu0
      %1184 = vmatprep.mubr.bf16.mxu0 0
      %1185 = vmatmul.mubr.bf16.gmra.mxu0 %v802
      %v1186 = vpop.f32.mrf.mxu0
      %v1187 = vadd.f32 0.0, %v1186
      %v1188 = vpop.f32.mrf.mxu0
      %v1189 = vpop.f32.mrf.mxu0
      %v1190 = vadd.f32 0.0, %v1189
      %v1191 = vpop.f32.mrf.mxu0
      %1192 = vmatprep.mubr.bf16.mxu0 0
      %1193 = vmatmul.mubr.bf16.gmra.mxu0 %v805
      %v1194 = vpop.f32.mrf.mxu0
      %v1195 = vadd.f32 0.0, %v1194
      %v1196 = vpop.f32.mrf.mxu0
      %v1197 = vpop.f32.mrf.mxu0
      %v1198 = vadd.f32 0.0, %v1197
      %v1199 = vpop.f32.mrf.mxu0
      %1200 = vmatprep.mubr.bf16.mxu0 0
      %1201 = vmatmul.mubr.bf16.gmra.mxu0 %v808
      %v1202 = vpop.f32.mrf.mxu0
      %v1203 = vadd.f32 0.0, %v1202
      %v1204 = vpop.f32.mrf.mxu0
      %v1205 = vpop.f32.mrf.mxu0
      %v1206 = vadd.f32 0.0, %v1205
      %v1207 = vpop.f32.mrf.mxu0
      %1208 = vmatprep.mubr.bf16.mxu0 0
      %1209 = vmatmul.mubr.bf16.gmra.mxu0 %v811
      %v1210 = vpop.f32.mrf.mxu0
      %v1211 = vadd.f32 0.0, %v1210
      %v1212 = vpop.f32.mrf.mxu0
      %v1213 = vpop.f32.mrf.mxu0
      %v1214 = vadd.f32 0.0, %v1213
      %v1215 = vpop.f32.mrf.mxu0
      %1216 = vmatprep.mubr.bf16.mxu0 0
      %1217 = vmatmul.mubr.bf16.gmra.mxu0 %v814
      %v1218 = vpop.f32.mrf.mxu0
      %v1219 = vadd.f32 0.0, %v1218
      %v1220 = vpop.f32.mrf.mxu0
      %v1221 = vpop.f32.mrf.mxu0
      %v1222 = vadd.f32 0.0, %v1221
      %v1223 = vpop.f32.mrf.mxu0
      %1224 = vmatprep.mubr.bf16.mxu0 0
      %1225 = vmatmul.mubr.bf16.gmra.mxu0 %v817
      %v1226 = vpop.f32.mrf.mxu0
      %v1227 = vadd.f32 0.0, %v1226
      %v1228 = vpop.f32.mrf.mxu0
      %v1229 = vpop.f32.mrf.mxu0
      %v1230 = vadd.f32 0.0, %v1229
      %v1231 = vpop.f32.mrf.mxu0
      %1232 = vmatprep.mubr.bf16.mxu0 0
      %1233 = vmatmul.mubr.bf16.gmra.mxu0 %v820
      %v1234 = vpop.f32.mrf.mxu0
      %v1235 = vadd.f32 0.0, %v1234
      %v1236 = vpop.f32.mrf.mxu0
      %v1237 = vpop.f32.mrf.mxu0
      %v1238 = vadd.f32 0.0, %v1237
      %v1239 = vpop.f32.mrf.mxu0
      %1240 = vmatprep.mubr.bf16.mxu0 0
      %1241 = vmatmul.mubr.bf16.gmra.mxu0 %v823
      %v1242 = vpop.f32.mrf.mxu0
      %v1243 = vadd.f32 0.0, %v1242
      %v1244 = vpop.f32.mrf.mxu0
      %v1245 = vpop.f32.mrf.mxu0
      %v1246 = vadd.f32 0.0, %v1245
      %v1247 = vpop.f32.mrf.mxu0
      %1248 = vmatprep.mubr.bf16.mxu0 0
      %1249 = vmatmul.mubr.bf16.gmra.mxu0 %v826
      %v1250 = vpop.f32.mrf.mxu0
      %v1251 = vadd.f32 0.0, %v1250
      %v1252 = vpop.f32.mrf.mxu0
      %v1253 = vpop.f32.mrf.mxu0
      %v1254 = vadd.f32 0.0, %v1253
      %v1255 = vpop.f32.mrf.mxu0
      %1256 = vmatprep.mubr.bf16.mxu0 0
      %1257 = vmatmul.mubr.bf16.gmra.mxu0 %v829
      %v1258 = vpop.f32.mrf.mxu0
      %v1259 = vadd.f32 0.0, %v1258
      %v1260 = vpop.f32.mrf.mxu0
      %v1261 = vpop.f32.mrf.mxu0
      %v1262 = vadd.f32 0.0, %v1261
      %v1263 = vpop.f32.mrf.mxu0
      %1264 = vmatprep.mubr.bf16.mxu0 0
      %1265 = vmatmul.mubr.bf16.gmra.mxu0 %v832
      %v1266 = vpop.f32.mrf.mxu0
      %v1267 = vadd.f32 0.0, %v1266
      %v1268 = vpop.f32.mrf.mxu0
      %v1269 = vpop.f32.mrf.mxu0
      %v1270 = vadd.f32 0.0, %v1269
      %v1271 = vpop.f32.mrf.mxu0
      %1272 = vmatprep.mubr.bf16.mxu0 0
      %1273 = vmatmul.mubr.bf16.gmra.mxu0 %v835
      %v1274 = vpop.f32.mrf.mxu0
      %v1275 = vadd.f32 0.0, %v1274
      %v1276 = vpop.f32.mrf.mxu0
      %v1277 = vpop.f32.mrf.mxu0
      %v1278 = vadd.f32 0.0, %v1277
      %v1279 = vpop.f32.mrf.mxu0
      %1280 = vmatprep.mubr.bf16.mxu0 0
      %1281 = vmatmul.mubr.bf16.gmra.mxu0 %v838
      %v1282 = vpop.f32.mrf.mxu0
      %v1283 = vadd.f32 0.0, %v1282
      %v1284 = vpop.f32.mrf.mxu0
      %v1285 = vpop.f32.mrf.mxu0
      %v1286 = vadd.f32 0.0, %v1285
      %v1287 = vpop.f32.mrf.mxu0
      %1288 = vmatprep.mubr.bf16.mxu0 0
      %1289 = vmatmul.mubr.bf16.gmra.mxu0 %v841
      %v1290 = vpop.f32.mrf.mxu0
      %v1291 = vadd.f32 0.0, %v1290
      %v1292 = vpop.f32.mrf.mxu0
      %v1293 = vpop.f32.mrf.mxu0
      %v1294 = vadd.f32 0.0, %v1293
      %v1295 = vpop.f32.mrf.mxu0
      %1296 = vmatprep.mubr.bf16.mxu0 0
      %1297 = vmatmul.mubr.bf16.gmra.mxu0 %v844
      %v1298 = vpop.f32.mrf.mxu0
      %v1299 = vadd.f32 0.0, %v1298
      %v1300 = vpop.f32.mrf.mxu0
      %v1301 = vpop.f32.mrf.mxu0
      %v1302 = vadd.f32 0.0, %v1301
      %v1303 = vpop.f32.mrf.mxu0
      %1304 = vmatprep.mubr.bf16.mxu0 0
      %1305 = vmatmul.mubr.bf16.gmra.mxu0 %v847
      %v1306 = vpop.f32.mrf.mxu0
      %v1307 = vadd.f32 0.0, %v1306
      %v1308 = vpop.f32.mrf.mxu0
      %v1309 = vpop.f32.mrf.mxu0
      %v1310 = vadd.f32 0.0, %v1309
      %v1311 = vpop.f32.mrf.mxu0
      %1312 = vmatprep.mubr.bf16.mxu0 0
      %1313 = vmatmul.mubr.bf16.gmra.mxu0 %v850
      %v1314 = vpop.f32.mrf.mxu0
      %v1315 = vadd.f32 0.0, %v1314
      %v1316 = vpop.f32.mrf.mxu0
      %v1317 = vpop.f32.mrf.mxu0
      %v1318 = vadd.f32 0.0, %v1317
      %v1319 = vpop.f32.mrf.mxu0
      %1320 = vmatprep.mubr.bf16.mxu0 0
      %1321 = vmatmul.mubr.bf16.gmra.mxu0 %v853
      %v1322 = vpop.f32.mrf.mxu0
      %v1323 = vadd.f32 0.0, %v1322
      %v1324 = vpop.f32.mrf.mxu0
      %v1325 = vpop.f32.mrf.mxu0
      %v1326 = vadd.f32 0.0, %v1325
      %v1327 = vpop.f32.mrf.mxu0
      %1328 = vmatprep.mubr.bf16.mxu0 0
      %1329 = vmatmul.mubr.bf16.gmra.mxu0 %v856
      %v1330 = vpop.f32.mrf.mxu0
      %v1331 = vadd.f32 0.0, %v1330
      %v1332 = vpop.f32.mrf.mxu0
      %v1333 = vpop.f32.mrf.mxu0
      %v1334 = vadd.f32 0.0, %v1333
      %v1335 = vpop.f32.mrf.mxu0
      %1336 = vmatprep.mubr.bf16.mxu0 0
      %1337 = vmatmul.mubr.bf16.gmra.mxu0 %v859
      %v1338 = vpop.f32.mrf.mxu0
      %v1339 = vadd.f32 0.0, %v1338
      %v1340 = vpop.f32.mrf.mxu0
      %v1341 = vpop.f32.mrf.mxu0
      %v1342 = vadd.f32 0.0, %v1341
      %v1343 = vpop.f32.mrf.mxu0
      %1344 = vmatprep.mubr.bf16.mxu0 0
      %1345 = vmatmul.mubr.bf16.gmra.mxu0 %v862
      %v1346 = vpop.f32.mrf.mxu0
      %v1347 = vadd.f32 0.0, %v1346
      %v1348 = vpop.f32.mrf.mxu0
      %v1349 = vpop.f32.mrf.mxu0
      %v1350 = vadd.f32 0.0, %v1349
      %v1351 = vpop.f32.mrf.mxu0
      %1352 = vmatprep.mubr.bf16.mxu0 0
      %1353 = vmatmul.mubr.bf16.gmra.mxu0 %v865
      %v1354 = vpop.f32.mrf.mxu0
      %v1355 = vadd.f32 0.0, %v1354
      %v1356 = vpop.f32.mrf.mxu0
      %v1357 = vpop.f32.mrf.mxu0
      %v1358 = vadd.f32 0.0, %v1357
      %v1359 = vpop.f32.mrf.mxu0
      %1360 = vmatprep.mubr.bf16.mxu0 0
      %1361 = vmatmul.mubr.bf16.gmra.mxu0 %v868
      %v1362 = vpop.f32.mrf.mxu0
      %v1363 = vadd.f32 0.0, %v1362
      %v1364 = vpop.f32.mrf.mxu0
      %v1365 = vpop.f32.mrf.mxu0
      %v1366 = vadd.f32 0.0, %v1365
      %v1367 = vpop.f32.mrf.mxu0
      %1368 = vmatprep.mubr.bf16.mxu0 0
      %1369 = vmatmul.mubr.bf16.gmra.mxu0 %v871
      %v1370 = vpop.f32.mrf.mxu0
      %v1371 = vadd.f32 0.0, %v1370
      %v1372 = vpop.f32.mrf.mxu0
      %v1373 = vpop.f32.mrf.mxu0
      %v1374 = vadd.f32 0.0, %v1373
      %v1375 = vpop.f32.mrf.mxu0
      %1376 = vmatprep.mubr.bf16.mxu0 0
      %1377 = vmatmul.mubr.bf16.gmra.mxu0 %v874
      %v1378 = vpop.f32.mrf.mxu0
      %v1379 = vadd.f32 0.0, %v1378
      %v1380 = vpop.f32.mrf.mxu0
      %v1381 = vpop.f32.mrf.mxu0
      %v1382 = vadd.f32 0.0, %v1381
      %v1383 = vpop.f32.mrf.mxu0
      %1384 = vmatprep.mubr.bf16.mxu0 0
      %1385 = vmatmul.mubr.bf16.gmra.mxu0 %v877
      %v1386 = vpop.f32.mrf.mxu0
      %v1387 = vadd.f32 0.0, %v1386
      %v1388 = vpop.f32.mrf.mxu0
      %v1389 = vpop.f32.mrf.mxu0
      %v1390 = vadd.f32 0.0, %v1389
      %v1391 = vpop.f32.mrf.mxu0
      %1392 = vmatprep.mubr.bf16.mxu0 0
      %1393 = vmatmul.mubr.bf16.gmra.mxu0 %v880
      %v1394 = vpop.f32.mrf.mxu0
      %v1395 = vadd.f32 0.0, %v1394
      %v1396 = vpop.f32.mrf.mxu0
      %v1397 = vpop.f32.mrf.mxu0
      %v1398 = vadd.f32 0.0, %v1397
      %v1399 = vpop.f32.mrf.mxu0
      %1400 = vmatprep.mubr.bf16.mxu0 0
      %1401 = vmatmul.mubr.bf16.gmra.mxu0 %v883
      %v1402 = vpop.f32.mrf.mxu0
      %v1403 = vadd.f32 0.0, %v1402
      %v1404 = vpop.f32.mrf.mxu0
      %v1405 = vpop.f32.mrf.mxu0
      %v1406 = vadd.f32 0.0, %v1405
      %v1407 = vpop.f32.mrf.mxu0
      %1408 = vmatprep.mubr.bf16.mxu0 0
      %1409 = vmatmul.mubr.bf16.gmra.mxu0 %v886
      %v1410 = vpop.f32.mrf.mxu0
      %v1411 = vadd.f32 0.0, %v1410
      %v1412 = vpop.f32.mrf.mxu0
      %v1413 = vpop.f32.mrf.mxu0
      %v1414 = vadd.f32 0.0, %v1413
      %v1415 = vpop.f32.mrf.mxu0
      %1416 = vmatprep.mubr.bf16.mxu0 0
      %1417 = vmatmul.mubr.bf16.gmra.mxu0 %v889
      %v1418 = vpop.f32.mrf.mxu0
      %v1419 = vadd.f32 0.0, %v1418
      %v1420 = vpop.f32.mrf.mxu0
      %v1421 = vpop.f32.mrf.mxu0
      %v1422 = vadd.f32 0.0, %v1421
      %v1423 = vpop.f32.mrf.mxu0
      %1424 = vmatprep.mubr.bf16.mxu0 0
      %1425 = vmatmul.mubr.bf16.gmra.mxu0 %v892
      %v1426 = vpop.f32.mrf.mxu0
      %v1427 = vadd.f32 0.0, %v1426
      %v1428 = vpop.f32.mrf.mxu0
      %v1429 = vpop.f32.mrf.mxu0
      %v1430 = vadd.f32 0.0, %v1429
      %v1431 = vpop.f32.mrf.mxu0
      %1432 = vmatprep.mubr.bf16.mxu0 0
      %1433 = vmatmul.mubr.bf16.gmra.mxu0 %v895
      %v1434 = vpop.f32.mrf.mxu0
      %v1435 = vadd.f32 0.0, %v1434
      %v1436 = vpop.f32.mrf.mxu0
      %v1437 = vpop.f32.mrf.mxu0
      %v1438 = vadd.f32 0.0, %v1437
      %v1439 = vpop.f32.mrf.mxu0
      %1440 = vmatprep.mubr.bf16.mxu0 0
      %1441 = vmatmul.mubr.bf16.gmra.mxu0 %v898
      %v1442 = vpop.f32.mrf.mxu0
      %v1443 = vadd.f32 0.0, %v1442
      %v1444 = vpop.f32.mrf.mxu0
      %v1445 = vpop.f32.mrf.mxu0
      %v1446 = vadd.f32 0.0, %v1445
      %v1447 = vpop.f32.mrf.mxu0
      %1448 = vdwg.mxu0
      %1449 = vst [vmem:[%s212] sm:$0xff] %v939
      %1450 = vst [vmem:[%s212 + $0x8] sm:$0xff] %v942
      %1451 = vst [vmem:[%s212 + $0x10] sm:$0xff] %v947
      %1452 = vst [vmem:[%s212 + $0x18] sm:$0xff] %v950
      %1453 = vst [vmem:[%s212 + $0x20] sm:$0xff] %v955
      %1454 = vst [vmem:[%s212 + $0x28] sm:$0xff] %v958
      %1455 = vst [vmem:[%s212 + $0x30] sm:$0xff] %v963
      %1456 = vst [vmem:[%s212 + $0x38] sm:$0xff] %v966
      %1457 = vst [vmem:[%s212 + $0x40] sm:$0xff] %v971
      %1458 = vst [vmem:[%s212 + $0x48] sm:$0xff] %v974
      %1459 = vst [vmem:[%s212 + $0x50] sm:$0xff] %v979
      %1460 = vst [vmem:[%s212 + $0x58] sm:$0xff] %v982
      %1461 = vst [vmem:[%s212 + $0x60] sm:$0xff] %v987
      %1462 = vst [vmem:[%s212 + $0x68] sm:$0xff] %v990
      %1463 = vst [vmem:[%s212 + $0x70] sm:$0xff] %v995
      %1464 = vst [vmem:[%s212 + $0x78] sm:$0xff] %v998
      %1465 = vst [vmem:[%s212 + $0x80] sm:$0xff] %v1003
      %1466 = vst [vmem:[%s212 + $0x88] sm:$0xff] %v1006
      %1467 = vst [vmem:[%s212 + $0x90] sm:$0xff] %v1011
      %1468 = vst [vmem:[%s212 + $0x98] sm:$0xff] %v1014
      %1469 = vst [vmem:[%s212 + $0xa0] sm:$0xff] %v1019
      %1470 = vst [vmem:[%s212 + $0xa8] sm:$0xff] %v1022
      %1471 = vst [vmem:[%s212 + $0xb0] sm:$0xff] %v1027
      %1472 = vst [vmem:[%s212 + $0xb8] sm:$0xff] %v1030
      %1473 = vst [vmem:[%s212 + $0xc0] sm:$0xff] %v1035
      %1474 = vst [vmem:[%s212 + $0xc8] sm:$0xff] %v1038
      %1475 = vst [vmem:[%s212 + $0xd0] sm:$0xff] %v1043
      %1476 = vst [vmem:[%s212 + $0xd8] sm:$0xff] %v1046
      %1477 = vst [vmem:[%s212 + $0xe0] sm:$0xff] %v1051
      %1478 = vst [vmem:[%s212 + $0xe8] sm:$0xff] %v1054
      %1479 = vst [vmem:[%s212 + $0xf0] sm:$0xff] %v1059
      %1480 = vst [vmem:[%s212 + $0xf8] sm:$0xff] %v1062
      %1481 = vst [vmem:[%s212 + $0x100] sm:$0xff] %v1067
      %1482 = vst [vmem:[%s212 + $0x108] sm:$0xff] %v1070
      %1483 = vst [vmem:[%s212 + $0x110] sm:$0xff] %v1075
      %1484 = vst [vmem:[%s212 + $0x118] sm:$0xff] %v1078
      %1485 = vst [vmem:[%s212 + $0x120] sm:$0xff] %v1083
      %1486 = vst [vmem:[%s212 + $0x128] sm:$0xff] %v1086
      %1487 = vst [vmem:[%s212 + $0x130] sm:$0xff] %v1091
      %1488 = vst [vmem:[%s212 + $0x138] sm:$0xff] %v1094
      %1489 = vst [vmem:[%s212 + $0x140] sm:$0xff] %v1099
      %1490 = vst [vmem:[%s212 + $0x148] sm:$0xff] %v1102
      %1491 = vst [vmem:[%s212 + $0x150] sm:$0xff] %v1107
      %1492 = vst [vmem:[%s212 + $0x158] sm:$0xff] %v1110
      %1493 = vst [vmem:[%s212 + $0x160] sm:$0xff] %v1115
      %1494 = vst [vmem:[%s212 + $0x168] sm:$0xff] %v1118
      %1495 = vst [vmem:[%s212 + $0x170] sm:$0xff] %v1123
      %1496 = vst [vmem:[%s212 + $0x178] sm:$0xff] %v1126
      %1497 = vst [vmem:[%s212 + $0x180] sm:$0xff] %v1131
      %1498 = vst [vmem:[%s212 + $0x188] sm:$0xff] %v1134
      %1499 = vst [vmem:[%s212 + $0x190] sm:$0xff] %v1139
      %1500 = vst [vmem:[%s212 + $0x198] sm:$0xff] %v1142
      %1501 = vst [vmem:[%s212 + $0x1a0] sm:$0xff] %v1147
      %1502 = vst [vmem:[%s212 + $0x1a8] sm:$0xff] %v1150
      %1503 = vst [vmem:[%s212 + $0x1b0] sm:$0xff] %v1155
      %1504 = vst [vmem:[%s212 + $0x1b8] sm:$0xff] %v1158
      %1505 = vst [vmem:[%s212 + $0x1c0] sm:$0xff] %v1163
      %1506 = vst [vmem:[%s212 + $0x1c8] sm:$0xff] %v1166
      %1507 = vst [vmem:[%s212 + $0x1d0] sm:$0xff] %v1171
      %1508 = vst [vmem:[%s212 + $0x1d8] sm:$0xff] %v1174
      %1509 = vst [vmem:[%s212 + $0x1e0] sm:$0xff] %v1179
      %1510 = vst [vmem:[%s212 + $0x1e8] sm:$0xff] %v1182
      %1511 = vst [vmem:[%s212 + $0x1f0] sm:$0xff] %v1187
      %1512 = vst [vmem:[%s212 + $0x1f8] sm:$0xff] %v1190
      %1513 = vst [vmem:[%s212 + $0x200] sm:$0xff] %v1195
      %1514 = vst [vmem:[%s212 + $0x208] sm:$0xff] %v1198
      %1515 = vst [vmem:[%s212 + $0x210] sm:$0xff] %v1203
      %1516 = vst [vmem:[%s212 + $0x218] sm:$0xff] %v1206
      %1517 = vst [vmem:[%s212 + $0x220] sm:$0xff] %v1211
      %1518 = vst [vmem:[%s212 + $0x228] sm:$0xff] %v1214
      %1519 = vst [vmem:[%s212 + $0x230] sm:$0xff] %v1219
      %1520 = vst [vmem:[%s212 + $0x238] sm:$0xff] %v1222
      %1521 = vst [vmem:[%s212 + $0x240] sm:$0xff] %v1227
      %1522 = vst [vmem:[%s212 + $0x248] sm:$0xff] %v1230
      %1523 = vst [vmem:[%s212 + $0x250] sm:$0xff] %v1235
      %1524 = vst [vmem:[%s212 + $0x258] sm:$0xff] %v1238
      %1525 = vst [vmem:[%s212 + $0x260] sm:$0xff] %v1243
      %1526 = vst [vmem:[%s212 + $0x268] sm:$0xff] %v1246
      %1527 = vst [vmem:[%s212 + $0x270] sm:$0xff] %v1251
      %1528 = vst [vmem:[%s212 + $0x278] sm:$0xff] %v1254
      %1529 = vst [vmem:[%s212 + $0x280] sm:$0xff] %v1259
      %1530 = vst [vmem:[%s212 + $0x288] sm:$0xff] %v1262
      %1531 = vst [vmem:[%s212 + $0x290] sm:$0xff] %v1267
      %1532 = vst [vmem:[%s212 + $0x298] sm:$0xff] %v1270
      %1533 = vst [vmem:[%s212 + $0x2a0] sm:$0xff] %v1275
      %1534 = vst [vmem:[%s212 + $0x2a8] sm:$0xff] %v1278
      %1535 = vst [vmem:[%s212 + $0x2b0] sm:$0xff] %v1283
      %1536 = vst [vmem:[%s212 + $0x2b8] sm:$0xff] %v1286
      %1537 = vst [vmem:[%s212 + $0x2c0] sm:$0xff] %v1291
      %1538 = vst [vmem:[%s212 + $0x2c8] sm:$0xff] %v1294
      %1539 = vst [vmem:[%s212 + $0x2d0] sm:$0xff] %v1299
      %1540 = vst [vmem:[%s212 + $0x2d8] sm:$0xff] %v1302
      %1541 = vst [vmem:[%s212 + $0x2e0] sm:$0xff] %v1307
      %1542 = vst [vmem:[%s212 + $0x2e8] sm:$0xff] %v1310
      %1543 = vst [vmem:[%s212 + $0x2f0] sm:$0xff] %v1315
      %1544 = vst [vmem:[%s212 + $0x2f8] sm:$0xff] %v1318
      %1545 = vst [vmem:[%s212 + $0x300] sm:$0xff] %v1323
      %1546 = vst [vmem:[%s212 + $0x308] sm:$0xff] %v1326
      %1547 = vst [vmem:[%s212 + $0x310] sm:$0xff] %v1331
      %1548 = vst [vmem:[%s212 + $0x318] sm:$0xff] %v1334
      %1549 = vst [vmem:[%s212 + $0x320] sm:$0xff] %v1339
      %1550 = vst [vmem:[%s212 + $0x328] sm:$0xff] %v1342
      %1551 = vst [vmem:[%s212 + $0x330] sm:$0xff] %v1347
      %1552 = vst [vmem:[%s212 + $0x338] sm:$0xff] %v1350
      %1553 = vst [vmem:[%s212 + $0x340] sm:$0xff] %v1355
      %1554 = vst [vmem:[%s212 + $0x348] sm:$0xff] %v1358
      %1555 = vst [vmem:[%s212 + $0x350] sm:$0xff] %v1363
      %1556 = vst [vmem:[%s212 + $0x358] sm:$0xff] %v1366
      %1557 = vst [vmem:[%s212 + $0x360] sm:$0xff] %v1371
      %1558 = vst [vmem:[%s212 + $0x368] sm:$0xff] %v1374
      %1559 = vst [vmem:[%s212 + $0x370] sm:$0xff] %v1379
      %1560 = vst [vmem:[%s212 + $0x378] sm:$0xff] %v1382
      %1561 = vst [vmem:[%s212 + $0x380] sm:$0xff] %v1387
      %1562 = vst [vmem:[%s212 + $0x388] sm:$0xff] %v1390
      %1563 = vst [vmem:[%s212 + $0x390] sm:$0xff] %v1395
      %1564 = vst [vmem:[%s212 + $0x398] sm:$0xff] %v1398
      %1565 = vst [vmem:[%s212 + $0x3a0] sm:$0xff] %v1403
      %1566 = vst [vmem:[%s212 + $0x3a8] sm:$0xff] %v1406
      %1567 = vst [vmem:[%s212 + $0x3b0] sm:$0xff] %v1411
      %1568 = vst [vmem:[%s212 + $0x3b8] sm:$0xff] %v1414
      %1569 = vst [vmem:[%s212 + $0x3c0] sm:$0xff] %v1419
      %1570 = vst [vmem:[%s212 + $0x3c8] sm:$0xff] %v1422
      %1571 = vst [vmem:[%s212 + $0x3d0] sm:$0xff] %v1427
      %1572 = vst [vmem:[%s212 + $0x3d8] sm:$0xff] %v1430
      %1573 = vst [vmem:[%s212 + $0x3e0] sm:$0xff] %v1435
      %1574 = vst [vmem:[%s212 + $0x3e8] sm:$0xff] %v1438
      %1575 = vst [vmem:[%s212 + $0x3f0] sm:$0xff] %v1443
      %1576 = vst [vmem:[%s212 + $0x3f8] sm:$0xff] %v1446
      %v1577 = vadd.f32 %v939, %v942
      %v1578 = vadd.f32 %v1577, %v947
      %v1579 = vadd.f32 %v1578, %v950
      %v1580 = vadd.f32 %v1579, %v955
      %v1581 = vadd.f32 %v1580, %v958
      %v1582 = vadd.f32 %v1581, %v963
      %v1583 = vadd.f32 %v1582, %v966
      %v1584 = vadd.f32 %v1583, %v971
      %v1585 = vadd.f32 %v1584, %v974
      %v1586 = vadd.f32 %v1585, %v979
      %v1587 = vadd.f32 %v1586, %v982
      %v1588 = vadd.f32 %v1587, %v987
      %v1589 = vadd.f32 %v1588, %v990
      %v1590 = vadd.f32 %v1589, %v995
      %v1591 = vadd.f32 %v1590, %v998
      %v1592 = vadd.f32 %v1591, %v1003
      %v1593 = vadd.f32 %v1592, %v1006
      %v1594 = vadd.f32 %v1593, %v1011
      %v1595 = vadd.f32 %v1594, %v1014
      %v1596 = vadd.f32 %v1595, %v1019
      %v1597 = vadd.f32 %v1596, %v1022
      %v1598 = vadd.f32 %v1597, %v1027
      %v1599 = vadd.f32 %v1598, %v1030
      %v1600 = vadd.f32 %v1599, %v1035
      %v1601 = vadd.f32 %v1600, %v1038
      %v1602 = vadd.f32 %v1601, %v1043
      %v1603 = vadd.f32 %v1602, %v1046
      %v1604 = vadd.f32 %v1603, %v1051
      %v1605 = vadd.f32 %v1604, %v1054
      %v1606 = vadd.f32 %v1605, %v1059
      %v1607 = vadd.f32 %v1606, %v1062
      %v1608 = vadd.f32 %v1607, %v1067
      %v1609 = vadd.f32 %v1608, %v1070
      %v1610 = vadd.f32 %v1609, %v1075
      %v1611 = vadd.f32 %v1610, %v1078
      %v1612 = vadd.f32 %v1611, %v1083
      %v1613 = vadd.f32 %v1612, %v1086
      %v1614 = vadd.f32 %v1613, %v1091
      %v1615 = vadd.f32 %v1614, %v1094
      %v1616 = vadd.f32 %v1615, %v1099
      %v1617 = vadd.f32 %v1616, %v1102
      %v1618 = vadd.f32 %v1617, %v1107
      %v1619 = vadd.f32 %v1618, %v1110
      %v1620 = vadd.f32 %v1619, %v1115
      %v1621 = vadd.f32 %v1620, %v1118
      %v1622 = vadd.f32 %v1621, %v1123
      %v1623 = vadd.f32 %v1622, %v1126
      %v1624 = vadd.f32 %v1623, %v1131
      %v1625 = vadd.f32 %v1624, %v1134
      %v1626 = vadd.f32 %v1625, %v1139
      %v1627 = vadd.f32 %v1626, %v1142
      %v1628 = vadd.f32 %v1627, %v1147
      %v1629 = vadd.f32 %v1628, %v1150
      %v1630 = vadd.f32 %v1629, %v1155
      %v1631 = vadd.f32 %v1630, %v1158
      %v1632 = vadd.f32 %v1631, %v1163
      %v1633 = vadd.f32 %v1632, %v1166
      %v1634 = vadd.f32 %v1633, %v1171
      %v1635 = vadd.f32 %v1634, %v1174
      %v1636 = vadd.f32 %v1635, %v1179
      %v1637 = vadd.f32 %v1636, %v1182
      %v1638 = vadd.f32 %v1637, %v1187
      %v1639 = vadd.f32 %v1638, %v1190
      %v1640 = vadd.f32 %v1639, %v1195
      %v1641 = vadd.f32 %v1640, %v1198
      %v1642 = vadd.f32 %v1641, %v1203
      %v1643 = vadd.f32 %v1642, %v1206
      %v1644 = vadd.f32 %v1643, %v1211
      %v1645 = vadd.f32 %v1644, %v1214
      %v1646 = vadd.f32 %v1645, %v1219
      %v1647 = vadd.f32 %v1646, %v1222
      %v1648 = vadd.f32 %v1647, %v1227
      %v1649 = vadd.f32 %v1648, %v1230
      %v1650 = vadd.f32 %v1649, %v1235
      %v1651 = vadd.f32 %v1650, %v1238
      %v1652 = vadd.f32 %v1651, %v1243
      %v1653 = vadd.f32 %v1652, %v1246
      %v1654 = vadd.f32 %v1653, %v1251
      %v1655 = vadd.f32 %v1654, %v1254
      %v1656 = vadd.f32 %v1655, %v1259
      %v1657 = vadd.f32 %v1656, %v1262
      %v1658 = vadd.f32 %v1657, %v1267
      %v1659 = vadd.f32 %v1658, %v1270
      %v1660 = vadd.f32 %v1659, %v1275
      %v1661 = vadd.f32 %v1660, %v1278
      %v1662 = vadd.f32 %v1661, %v1283
      %v1663 = vadd.f32 %v1662, %v1286
      %v1664 = vadd.f32 %v1663, %v1291
      %v1665 = vadd.f32 %v1664, %v1294
      %v1666 = vadd.f32 %v1665, %v1299
      %v1667 = vadd.f32 %v1666, %v1302
      %v1668 = vadd.f32 %v1667, %v1307
      %v1669 = vadd.f32 %v1668, %v1310
      %v1670 = vadd.f32 %v1669, %v1315
      %v1671 = vadd.f32 %v1670, %v1318
      %v1672 = vadd.f32 %v1671, %v1323
      %v1673 = vadd.f32 %v1672, %v1326
      %v1674 = vadd.f32 %v1673, %v1331
      %v1675 = vadd.f32 %v1674, %v1334
      %v1676 = vadd.f32 %v1675, %v1339
      %v1677 = vadd.f32 %v1676, %v1342
      %v1678 = vadd.f32 %v1677, %v1347
      %v1679 = vadd.f32 %v1678, %v1350
      %v1680 = vadd.f32 %v1679, %v1355
      %v1681 = vadd.f32 %v1680, %v1358
      %v1682 = vadd.f32 %v1681, %v1363
      %v1683 = vadd.f32 %v1682, %v1366
      %v1684 = vadd.f32 %v1683, %v1371
      %v1685 = vadd.f32 %v1684, %v1374
      %v1686 = vadd.f32 %v1685, %v1379
      %v1687 = vadd.f32 %v1686, %v1382
      %v1688 = vadd.f32 %v1687, %v1387
      %v1689 = vadd.f32 %v1688, %v1390
      %v1690 = vadd.f32 %v1689, %v1395
      %v1691 = vadd.f32 %v1690, %v1398
      %v1692 = vadd.f32 %v1691, %v1403
      %v1693 = vadd.f32 %v1692, %v1406
      %v1694 = vadd.f32 %v1693, %v1411
      %v1695 = vadd.f32 %v1694, %v1414
      %v1696 = vadd.f32 %v1695, %v1419
      %v1697 = vadd.f32 %v1696, %v1422
      %v1698 = vadd.f32 %v1697, %v1427
      %v1699 = vadd.f32 %v1698, %v1430
      %v1700 = vadd.f32 %v1699, %v1435
      %v1701 = vadd.f32 %v1700, %v1438
      %v1702 = vadd.f32 %v1701, %v1443
      %v1703 = vadd.f32 %v1702, %v1446
      %v1704 = vrot.slane %v1703, 4
      %v1705 = vadd.f32 %v1703, %v1704
      %v1706 = vrot.slane %v1705, 2
      %v1707 = vadd.f32 %v1705, %v1706
      %v1708 = vrot.slane %v1707, 1
      %v1709 = vadd.f32 %v1707, %v1708
      %v1710 = vmul.f32 %v939, %v939
      %v1711 = vmul.f32 %v942, %v942
      %v1712 = vmul.f32 %v947, %v947
      %v1713 = vmul.f32 %v950, %v950
      %v1714 = vmul.f32 %v955, %v955
      %v1715 = vmul.f32 %v958, %v958
      %v1716 = vmul.f32 %v963, %v963
      %v1717 = vmul.f32 %v966, %v966
      %v1718 = vmul.f32 %v971, %v971
      %v1719 = vmul.f32 %v974, %v974
      %v1720 = vmul.f32 %v979, %v979
      %v1721 = vmul.f32 %v982, %v982
      %v1722 = vmul.f32 %v987, %v987
      %v1723 = vmul.f32 %v990, %v990
      %v1724 = vmul.f32 %v995, %v995
      %v1725 = vmul.f32 %v998, %v998
      %v1726 = vmul.f32 %v1003, %v1003
      %v1727 = vmul.f32 %v1006, %v1006
      %v1728 = vmul.f32 %v1011, %v1011
      %v1729 = vmul.f32 %v1014, %v1014
      %v1730 = vmul.f32 %v1019, %v1019
      %v1731 = vmul.f32 %v1022, %v1022
      %v1732 = vmul.f32 %v1027, %v1027
      %v1733 = vmul.f32 %v1030, %v1030
      %v1734 = vmul.f32 %v1035, %v1035
      %v1735 = vmul.f32 %v1038, %v1038
      %v1736 = vmul.f32 %v1043, %v1043
      %v1737 = vmul.f32 %v1046, %v1046
      %v1738 = vmul.f32 %v1051, %v1051
      %v1739 = vmul.f32 %v1054, %v1054
      %v1740 = vmul.f32 %v1059, %v1059
      %v1741 = vmul.f32 %v1062, %v1062
      %v1742 = vmul.f32 %v1067, %v1067
      %v1743 = vmul.f32 %v1070, %v1070
      %v1744 = vmul.f32 %v1075, %v1075
      %v1745 = vmul.f32 %v1078, %v1078
      %v1746 = vmul.f32 %v1083, %v1083
      %v1747 = vmul.f32 %v1086, %v1086
      %v1748 = vmul.f32 %v1091, %v1091
      %v1749 = vmul.f32 %v1094, %v1094
      %v1750 = vmul.f32 %v1099, %v1099
      %v1751 = vmul.f32 %v1102, %v1102
      %v1752 = vmul.f32 %v1107, %v1107
      %v1753 = vmul.f32 %v1110, %v1110
      %v1754 = vmul.f32 %v1115, %v1115
      %v1755 = vmul.f32 %v1118, %v1118
      %v1756 = vmul.f32 %v1123, %v1123
      %v1757 = vmul.f32 %v1126, %v1126
      %v1758 = vmul.f32 %v1131, %v1131
      %v1759 = vmul.f32 %v1134, %v1134
      %v1760 = vmul.f32 %v1139, %v1139
      %v1761 = vmul.f32 %v1142, %v1142
      %v1762 = vmul.f32 %v1147, %v1147
      %v1763 = vmul.f32 %v1150, %v1150
      %v1764 = vmul.f32 %v1155, %v1155
      %v1765 = vmul.f32 %v1158, %v1158
      %v1766 = vmul.f32 %v1163, %v1163
      %v1767 = vmul.f32 %v1166, %v1166
      %v1768 = vmul.f32 %v1171, %v1171
      %v1769 = vmul.f32 %v1174, %v1174
      %v1770 = vmul.f32 %v1179, %v1179
      %v1771 = vmul.f32 %v1182, %v1182
      %v1772 = vmul.f32 %v1187, %v1187
      %v1773 = vmul.f32 %v1190, %v1190
      %v1774 = vmul.f32 %v1195, %v1195
      %v1775 = vmul.f32 %v1198, %v1198
      %v1776 = vmul.f32 %v1203, %v1203
      %v1777 = vmul.f32 %v1206, %v1206
      %v1778 = vmul.f32 %v1211, %v1211
      %v1779 = vmul.f32 %v1214, %v1214
      %v1780 = vmul.f32 %v1219, %v1219
      %v1781 = vmul.f32 %v1222, %v1222
      %v1782 = vmul.f32 %v1227, %v1227
      %v1783 = vmul.f32 %v1230, %v1230
      %v1784 = vmul.f32 %v1235, %v1235
      %v1785 = vmul.f32 %v1238, %v1238
      %v1786 = vmul.f32 %v1243, %v1243
      %v1787 = vmul.f32 %v1246, %v1246
      %v1788 = vmul.f32 %v1251, %v1251
      %v1789 = vmul.f32 %v1254, %v1254
      %v1790 = vmul.f32 %v1259, %v1259
      %v1791 = vmul.f32 %v1262, %v1262
      %v1792 = vmul.f32 %v1267, %v1267
      %v1793 = vmul.f32 %v1270, %v1270
      %v1794 = vmul.f32 %v1275, %v1275
      %v1795 = vmul.f32 %v1278, %v1278
      %v1796 = vmul.f32 %v1283, %v1283
      %v1797 = vmul.f32 %v1286, %v1286
      %v1798 = vmul.f32 %v1291, %v1291
      %v1799 = vmul.f32 %v1294, %v1294
      %v1800 = vmul.f32 %v1299, %v1299
      %v1801 = vmul.f32 %v1302, %v1302
      %v1802 = vmul.f32 %v1307, %v1307
      %v1803 = vmul.f32 %v1310, %v1310
      %v1804 = vmul.f32 %v1315, %v1315
      %v1805 = vmul.f32 %v1318, %v1318
      %v1806 = vmul.f32 %v1323, %v1323
      %v1807 = vmul.f32 %v1326, %v1326
      %v1808 = vmul.f32 %v1331, %v1331
      %v1809 = vmul.f32 %v1334, %v1334
      %v1810 = vmul.f32 %v1339, %v1339
      %v1811 = vmul.f32 %v1342, %v1342
      %v1812 = vmul.f32 %v1347, %v1347
      %v1813 = vmul.f32 %v1350, %v1350
      %v1814 = vmul.f32 %v1355, %v1355
      %v1815 = vmul.f32 %v1358, %v1358
      %v1816 = vmul.f32 %v1363, %v1363
      %v1817 = vmul.f32 %v1366, %v1366
      %v1818 = vmul.f32 %v1371, %v1371
      %v1819 = vmul.f32 %v1374, %v1374
      %v1820 = vmul.f32 %v1379, %v1379
      %v1821 = vmul.f32 %v1382, %v1382
      %v1822 = vmul.f32 %v1387, %v1387
      %v1823 = vmul.f32 %v1390, %v1390
      %v1824 = vmul.f32 %v1395, %v1395
      %v1825 = vmul.f32 %v1398, %v1398
      %v1826 = vmul.f32 %v1403, %v1403
      %v1827 = vmul.f32 %v1406, %v1406
      %v1828 = vmul.f32 %v1411, %v1411
      %v1829 = vmul.f32 %v1414, %v1414
      %v1830 = vmul.f32 %v1419, %v1419
      %v1831 = vmul.f32 %v1422, %v1422
      %v1832 = vmul.f32 %v1427, %v1427
      %v1833 = vmul.f32 %v1430, %v1430
      %v1834 = vmul.f32 %v1435, %v1435
      %v1835 = vmul.f32 %v1438, %v1438
      %v1836 = vmul.f32 %v1443, %v1443
      %v1837 = vmul.f32 %v1446, %v1446
      %v1838 = vadd.f32 %v1710, %v1711
      %v1839 = vadd.f32 %v1838, %v1712
      %v1840 = vadd.f32 %v1839, %v1713
      %v1841 = vadd.f32 %v1840, %v1714
      %v1842 = vadd.f32 %v1841, %v1715
      %v1843 = vadd.f32 %v1842, %v1716
      %v1844 = vadd.f32 %v1843, %v1717
      %v1845 = vadd.f32 %v1844, %v1718
      %v1846 = vadd.f32 %v1845, %v1719
      %v1847 = vadd.f32 %v1846, %v1720
      %v1848 = vadd.f32 %v1847, %v1721
      %v1849 = vadd.f32 %v1848, %v1722
      %v1850 = vadd.f32 %v1849, %v1723
      %v1851 = vadd.f32 %v1850, %v1724
      %v1852 = vadd.f32 %v1851, %v1725
      %v1853 = vadd.f32 %v1852, %v1726
      %v1854 = vadd.f32 %v1853, %v1727
      %v1855 = vadd.f32 %v1854, %v1728
      %v1856 = vadd.f32 %v1855, %v1729
      %v1857 = vadd.f32 %v1856, %v1730
      %v1858 = vadd.f32 %v1857, %v1731
      %v1859 = vadd.f32 %v1858, %v1732
      %v1860 = vadd.f32 %v1859, %v1733
      %v1861 = vadd.f32 %v1860, %v1734
      %v1862 = vadd.f32 %v1861, %v1735
      %v1863 = vadd.f32 %v1862, %v1736
      %v1864 = vadd.f32 %v1863, %v1737
      %v1865 = vadd.f32 %v1864, %v1738
      %v1866 = vadd.f32 %v1865, %v1739
      %v1867 = vadd.f32 %v1866, %v1740
      %v1868 = vadd.f32 %v1867, %v1741
      %v1869 = vadd.f32 %v1868, %v1742
      %v1870 = vadd.f32 %v1869, %v1743
      %v1871 = vadd.f32 %v1870, %v1744
      %v1872 = vadd.f32 %v1871, %v1745
      %v1873 = vadd.f32 %v1872, %v1746
      %v1874 = vadd.f32 %v1873, %v1747
      %v1875 = vadd.f32 %v1874, %v1748
      %v1876 = vadd.f32 %v1875, %v1749
      %v1877 = vadd.f32 %v1876, %v1750
      %v1878 = vadd.f32 %v1877, %v1751
      %v1879 = vadd.f32 %v1878, %v1752
      %v1880 = vadd.f32 %v1879, %v1753
      %v1881 = vadd.f32 %v1880, %v1754
      %v1882 = vadd.f32 %v1881, %v1755
      %v1883 = vadd.f32 %v1882, %v1756
      %v1884 = vadd.f32 %v1883, %v1757
      %v1885 = vadd.f32 %v1884, %v1758
      %v1886 = vadd.f32 %v1885, %v1759
      %v1887 = vadd.f32 %v1886, %v1760
      %v1888 = vadd.f32 %v1887, %v1761
      %v1889 = vadd.f32 %v1888, %v1762
      %v1890 = vadd.f32 %v1889, %v1763
      %v1891 = vadd.f32 %v1890, %v1764
      %v1892 = vadd.f32 %v1891, %v1765
      %v1893 = vadd.f32 %v1892, %v1766
      %v1894 = vadd.f32 %v1893, %v1767
      %v1895 = vadd.f32 %v1894, %v1768
      %v1896 = vadd.f32 %v1895, %v1769
      %v1897 = vadd.f32 %v1896, %v1770
      %v1898 = vadd.f32 %v1897, %v1771
      %v1899 = vadd.f32 %v1898, %v1772
      %v1900 = vadd.f32 %v1899, %v1773
      %v1901 = vadd.f32 %v1900, %v1774
      %v1902 = vadd.f32 %v1901, %v1775
      %v1903 = vadd.f32 %v1902, %v1776
      %v1904 = vadd.f32 %v1903, %v1777
      %v1905 = vadd.f32 %v1904, %v1778
      %v1906 = vadd.f32 %v1905, %v1779
      %v1907 = vadd.f32 %v1906, %v1780
      %v1908 = vadd.f32 %v1907, %v1781
      %v1909 = vadd.f32 %v1908, %v1782
      %v1910 = vadd.f32 %v1909, %v1783
      %v1911 = vadd.f32 %v1910, %v1784
      %v1912 = vadd.f32 %v1911, %v1785
      %v1913 = vadd.f32 %v1912, %v1786
      %v1914 = vadd.f32 %v1913, %v1787
      %v1915 = vadd.f32 %v1914, %v1788
      %v1916 = vadd.f32 %v1915, %v1789
      %v1917 = vadd.f32 %v1916, %v1790
      %v1918 = vadd.f32 %v1917, %v1791
      %v1919 = vadd.f32 %v1918, %v1792
      %v1920 = vadd.f32 %v1919, %v1793
      %v1921 = vadd.f32 %v1920, %v1794
      %v1922 = vadd.f32 %v1921, %v1795
      %v1923 = vadd.f32 %v1922, %v1796
      %v1924 = vadd.f32 %v1923, %v1797
      %v1925 = vadd.f32 %v1924, %v1798
      %v1926 = vadd.f32 %v1925, %v1799
      %v1927 = vadd.f32 %v1926, %v1800
      %v1928 = vadd.f32 %v1927, %v1801
      %v1929 = vadd.f32 %v1928, %v1802
      %v1930 = vadd.f32 %v1929, %v1803
      %v1931 = vadd.f32 %v1930, %v1804
      %v1932 = vadd.f32 %v1931, %v1805
      %v1933 = vadd.f32 %v1932, %v1806
      %v1934 = vadd.f32 %v1933, %v1807
      %v1935 = vadd.f32 %v1934, %v1808
      %v1936 = vadd.f32 %v1935, %v1809
      %v1937 = vadd.f32 %v1936, %v1810
      %v1938 = vadd.f32 %v1937, %v1811
      %v1939 = vadd.f32 %v1938, %v1812
      %v1940 = vadd.f32 %v1939, %v1813
      %v1941 = vadd.f32 %v1940, %v1814
      %v1942 = vadd.f32 %v1941, %v1815
      %v1943 = vadd.f32 %v1942, %v1816
      %v1944 = vadd.f32 %v1943, %v1817
      %v1945 = vadd.f32 %v1944, %v1818
      %v1946 = vadd.f32 %v1945, %v1819
      %v1947 = vadd.f32 %v1946, %v1820
      %v1948 = vadd.f32 %v1947, %v1821
      %v1949 = vadd.f32 %v1948, %v1822
      %v1950 = vadd.f32 %v1949, %v1823
      %v1951 = vadd.f32 %v1950, %v1824
      %v1952 = vadd.f32 %v1951, %v1825
      %v1953 = vadd.f32 %v1952, %v1826
      %v1954 = vadd.f32 %v1953, %v1827
      %v1955 = vadd.f32 %v1954, %v1828
      %v1956 = vadd.f32 %v1955, %v1829
      %v1957 = vadd.f32 %v1956, %v1830
      %v1958 = vadd.f32 %v1957, %v1831
      %v1959 = vadd.f32 %v1958, %v1832
      %v1960 = vadd.f32 %v1959, %v1833
      %v1961 = vadd.f32 %v1960, %v1834
      %v1962 = vadd.f32 %v1961, %v1835
      %v1963 = vadd.f32 %v1962, %v1836
      %v1964 = vadd.f32 %v1963, %v1837
      %v1965 = vrot.slane %v1964, 4
      %v1966 = vadd.f32 %v1964, %v1965
      %v1967 = vrot.slane %v1966, 2
      %v1968 = vadd.f32 %v1966, %v1967
      %v1969 = vrot.slane %v1968, 1
      %v1970 = vadd.f32 %v1968, %v1969
      %1971 = vst [vmem:[%s217] sm:$0xff] %v1709
      %1972 = vst [vmem:[%s221] sm:$0xff] %v1970
      %s1973 = smul.u32 128, %s16
      %p1974 = scmp.lt.s32.totalorder %s1973, 255
      %s1975 = scalar_select %p1974, %s1973, 255
      %s1976 = smul.addr %s1975, 8
      %s1977 = scalar_lea.vmem %s2, %s1976
      %p1978 = scmp.lt.s32.totalorder %s16, 1
      %s1979 = scalar_select %p1978, %s16, 1
      %s1980 = smul.addr %s1979, 8
      %s1981 = scalar_lea.vmem %s3, %s1980
      %p1982 = scmp.lt.s32.totalorder %s16, 1
      %s1983 = scalar_select %p1982, %s16, 1
      %s1984 = smul.addr %s1983, 8
      %s1985 = scalar_lea.vmem %s4, %s1984
      // Predicated region
      $region29: #{decoder_forward.6} parent=27 // pred_check
        %p1986 = pneg %p81
      $region30: #{decoder_forward.6} parent=27 // pred_check_branch
        %1988 = sbr.rel (%p1986) target = $region32
      $region31: #{decoder_forward.6} parent=27 // pred_region
        %s1989 = smul.u32 128, %s16
      $region32: #{decoder_forward.6} parent=27 // pred_fallthru
        _
      // Predicated region
      $region33: #{decoder_forward.6} parent=27 // pred_check
        %p1990 = pneg %p107
      $region34: #{decoder_forward.6} parent=27 // pred_check_branch
        %1992 = sbr.rel (%p1990) target = $region36
      $region35: #{decoder_forward.6} parent=27 // pred_region
        _
      $region36: #{decoder_forward.6} parent=27 // pred_fallthru
        _
      // Predicated region
      $region37: #{decoder_forward.6} parent=27 // pred_check
        %p1993 = pneg %p133
      $region38: #{decoder_forward.6} parent=27 // pred_check_branch
        %1995 = sbr.rel (%p1993) target = $region40
      $region39: #{decoder_forward.6} parent=27 // pred_region
        _
      $region40: #{decoder_forward.6} parent=27 // pred_fallthru
        _
    $region28: #{decoder_forward.6} parent=5 // pred_fallthru
      _
    %p1996 = scmp.le.s32.totalorder 2, %s11
    // Predicated region
    $region41: #{decoder_forward.6} parent=5 // pred_check
      %p1997 = pneg %p1996
    $region42: #{decoder_forward.6} parent=5 // pred_check_branch
      %1999 = sbr.rel (%p1997) target = $region44
    $region43: #{decoder_forward.6} parent=5 // pred_region
      %s2000 = ssub.s32 %s11, 2
      // Predicated region
      $region45: #{decoder_forward.6} parent=43 // pred_check
        %p2001 = pneg %p87
      $region46: #{decoder_forward.6} parent=43 // pred_check_branch
        %2003 = sbr.rel (%p2001) target = $region48
      $region47: #{decoder_forward.6} parent=43 // pred_region
        %s2004 = smul.u32 128, %s17
        %p2005 = scmp.lt.s32.totalorder %s2004, 255
        %s2006 = scalar_select %p2005, %s2004, 255
        %s2007 = smul.addr %s2006, 8
        %s2008 = scalar_lea.vmem %s2, %s2007
      $region48: #{decoder_forward.6} parent=43 // pred_fallthru
        _
      // Predicated region
      $region49: #{decoder_forward.6} parent=43 // pred_check
        %p2009 = pneg %p113
      $region50: #{decoder_forward.6} parent=43 // pred_check_branch
        %2011 = sbr.rel (%p2009) target = $region52
      $region51: #{decoder_forward.6} parent=43 // pred_region
        %p2012 = scmp.lt.s32.totalorder %s17, 1
        %s2013 = scalar_select %p2012, %s17, 1
        %s2014 = smul.addr %s2013, 8
        %s2015 = scalar_lea.vmem %s3, %s2014
      $region52: #{decoder_forward.6} parent=43 // pred_fallthru
        _
      // Predicated region
      $region53: #{decoder_forward.6} parent=43 // pred_check
        %p2016 = pneg %p139
      $region54: #{decoder_forward.6} parent=43 // pred_check_branch
        %2018 = sbr.rel (%p2016) target = $region56
      $region55: #{decoder_forward.6} parent=43 // pred_region
        %p2019 = scmp.lt.s32.totalorder %s17, 1
        %s2020 = scalar_select %p2019, %s17, 1
        %s2021 = smul.addr %s2020, 8
        %s2022 = scalar_lea.vmem %s4, %s2021
      $region56: #{decoder_forward.6} parent=43 // pred_fallthru
        _
    $region44: #{decoder_forward.6} parent=5 // pred_fallthru
      _
  $region6: #{decoder_forward.6} parent=0 // loop_footer
    %s15 = sadd.s32 1, %s11
  $region7: #{decoder_forward.6} parent=0 // loop_footer_branch
    %10 = sbr.rel target = $region3
  $region8: #{decoder_forward.6} parent=0 // loop_exit
    _

// kernel: decoder_forward.8
$region0: #{decoder_forward.8}
  #allocation0 [shape = 'u32[]', space=smem, size = 0x4, offset = 0x4, fixed_abs, tag = 'smem constant byte address 0x4 - core index']
  #allocation1 [shape = 'u32[144,128]{1,0:T(1,128)}', space=vmem, size = 0x12000, scoped, tag = 'internal scratch']
  %s0 = inlined_call_operand.vmem [shape: bf16[2048,36], index: 0, kind: input, shape index: {}]
  %s1 = inlined_call_operand.vmem [shape: bf16[36,128], index: 1, kind: input, shape index: {}]
  %s2 = inlined_call_operand.vmem [shape: f32[2048,128], index: 2, kind: output, shape index: {0}]
  %s3 = inlined_call_operand.vmem [shape: f32[16,128], index: 3, kind: output, shape index: {1}]
  %s4 = inlined_call_operand.vmem [shape: f32[16,128], index: 4, kind: output, shape index: {2}]
  %5 = xla_tuple %s2, %s3, %s4
  %s6 = sld [smem:[#allocation0]]
  $region57: #{decoder_forward.8} parent=0
    _
  %s8 = ssub.s32 1, %s6
  %s9 = scalar_select 0, %s8, %s6
  loop: start=0, step=1, limit=4
  $region2: #{decoder_forward.8} parent=0 // loop_pre_header
    _
  $region3: #{decoder_forward.8} parent=0 // loop_header
    %s11 = sphi 0, %s15
    %p12 = scmp.ge.s32.totalorder %s11, 4
    %s21 = sphi 0, %s23
    %s24 = sphi 0, %s21
    %s25 = sphi 0, %s24
    %s41 = sphi 0, %s25
    %s45 = sphi 0, %s45
    %s47 = sphi 0, %s45
    %s48 = sphi 0, %s47
    %s62 = sphi 0, %s48
    %s68 = sphi 0, %s70
    %s71 = sphi 0, %s68
    %s72 = sphi 0, %s71
    %s88 = sphi 0, %s72
    %s94 = sphi 0, %s96
    %s97 = sphi 0, %s94
    %s98 = sphi 0, %s97
    %s114 = sphi 0, %s98
    %s120 = sphi 0, %s122
    %s123 = sphi 0, %s120
    %s124 = sphi 0, %s123
    %s140 = sphi 0, %s124
  $region4: #{decoder_forward.8} parent=0 // loop_header_branch
    %14 = sbr.rel (%p12) target = $region8
  $region5: #{decoder_forward.8} parent=0 // loop_body
    %s16 = ssub.s32 %s11, 1
    %s17 = ssub.s32 %s11, 2
    %s18 = sadd.s32 %s11, 1
    %s19 = ssub.s32 %s11, %s18
    %p20 = scmp.eq.s32.totalorder %s19, 0
    %s22 = sadd.s32 %s21, 1
    %s23 = scalar_select %p20, %s21, %s22
    %p26 = pneg %p20
    %p27 = scmp.eq.s32.totalorder %s11, 1
    %p28 = por %p26, %p27
    %p29 = scmp.ne.s32.totalorder %s21, %s24
    %p30 = scmp.eq.s32.totalorder %s11, 0
    %p31 = por %p29, %p30
    %p32 = scmp.ne.s32.totalorder %s21, %s24
    %p33 = scmp.eq.s32.totalorder %s16, 1
    %p34 = por %p32, %p33
    %p35 = scmp.ne.s32.totalorder %s24, %s25
    %p36 = scmp.eq.s32.totalorder %s16, 0
    %p37 = por %p35, %p36
    %p38 = scmp.ne.s32.totalorder %s24, %s25
    %p39 = scmp.eq.s32.totalorder %s17, 1
    %p40 = por %p38, %p39
    %p42 = scmp.ne.s32.totalorder %s25, %s41
    %p43 = scmp.eq.s32.totalorder %s17, 0
    %p44 = por %p42, %p43
    %s46 = sadd.s32 %s45, 1
    %p49 = scmp.eq.s32.totalorder %s11, 1
    %p50 = scmp.ne.s32.totalorder %s45, %s47
    %p51 = scmp.eq.s32.totalorder %s11, 0
    %p52 = por %p50, %p51
    %p53 = scmp.ne.s32.totalorder %s45, %s47
    %p54 = scmp.eq.s32.totalorder %s16, 1
    %p55 = por %p53, %p54
    %p56 = scmp.ne.s32.totalorder %s47, %s48
    %p57 = scmp.eq.s32.totalorder %s16, 0
    %p58 = por %p56, %p57
    %p59 = scmp.ne.s32.totalorder %s47, %s48
    %p60 = scmp.eq.s32.totalorder %s17, 1
    %p61 = por %p59, %p60
    %p63 = scmp.ne.s32.totalorder %s48, %s62
    %p64 = scmp.eq.s32.totalorder %s17, 0
    %p65 = por %p63, %p64
    %s66 = ssub.s32 %s11, %s18
    %p67 = scmp.eq.s32.totalorder %s66, 0
    %s69 = sadd.s32 %s68, 1
    %s70 = scalar_select %p67, %s68, %s69
    %p73 = pneg %p67
    %p74 = scmp.eq.s32.totalorder %s11, 1
    %p75 = por %p73, %p74
    %p76 = scmp.ne.s32.totalorder %s68, %s71
    %p77 = scmp.eq.s32.totalorder %s11, 0
    %p78 = por %p76, %p77
    %p79 = scmp.ne.s32.totalorder %s68, %s71
    %p80 = scmp.eq.s32.totalorder %s16, 1
    %p81 = por %p79, %p80
    %p82 = scmp.ne.s32.totalorder %s71, %s72
    %p83 = scmp.eq.s32.totalorder %s16, 0
    %p84 = por %p82, %p83
    %p85 = scmp.ne.s32.totalorder %s71, %s72
    %p86 = scmp.eq.s32.totalorder %s17, 1
    %p87 = por %p85, %p86
    %p89 = scmp.ne.s32.totalorder %s72, %s88
    %p90 = scmp.eq.s32.totalorder %s17, 0
    %p91 = por %p89, %p90
    %s92 = ssub.s32 %s11, %s18
    %p93 = scmp.eq.s32.totalorder %s92, 0
    %s95 = sadd.s32 %s94, 1
    %s96 = scalar_select %p93, %s94, %s95
    %p99 = pneg %p93
    %p100 = scmp.eq.s32.totalorder %s11, 1
    %p101 = por %p99, %p100
    %p102 = scmp.ne.s32.totalorder %s94, %s97
    %p103 = scmp.eq.s32.totalorder %s11, 0
    %p104 = por %p102, %p103
    %p105 = scmp.ne.s32.totalorder %s94, %s97
    %p106 = scmp.eq.s32.totalorder %s16, 1
    %p107 = por %p105, %p106
    %p108 = scmp.ne.s32.totalorder %s97, %s98
    %p109 = scmp.eq.s32.totalorder %s16, 0
    %p110 = por %p108, %p109
    %p111 = scmp.ne.s32.totalorder %s97, %s98
    %p112 = scmp.eq.s32.totalorder %s17, 1
    %p113 = por %p111, %p112
    %p115 = scmp.ne.s32.totalorder %s98, %s114
    %p116 = scmp.eq.s32.totalorder %s17, 0
    %p117 = por %p115, %p116
    %s118 = ssub.s32 %s11, %s18
    %p119 = scmp.eq.s32.totalorder %s118, 0
    %s121 = sadd.s32 %s120, 1
    %s122 = scalar_select %p119, %s120, %s121
    %p125 = pneg %p119
    %p126 = scmp.eq.s32.totalorder %s11, 1
    %p127 = por %p125, %p126
    %p128 = scmp.ne.s32.totalorder %s120, %s123
    %p129 = scmp.eq.s32.totalorder %s11, 0
    %p130 = por %p128, %p129
    %p131 = scmp.ne.s32.totalorder %s120, %s123
    %p132 = scmp.eq.s32.totalorder %s16, 1
    %p133 = por %p131, %p132
    %p134 = scmp.ne.s32.totalorder %s123, %s124
    %p135 = scmp.eq.s32.totalorder %s16, 0
    %p136 = por %p134, %p135
    %p137 = scmp.ne.s32.totalorder %s123, %s124
    %p138 = scmp.eq.s32.totalorder %s17, 1
    %p139 = por %p137, %p138
    %p141 = scmp.ne.s32.totalorder %s124, %s140
    %p142 = scmp.eq.s32.totalorder %s17, 0
    %p143 = por %p141, %p142
    %p144 = scmp.le.s32.totalorder 1, %s11
    %p145 = scmp.lt.s32.totalorder %s11, 3
    %p146 = pnand %p144, %p145
    %p147 = pneg %p146
    // Predicated region
    $region9: #{decoder_forward.8} parent=5 // pred_check
      _
    $region10: #{decoder_forward.8} parent=5 // pred_check_branch
      %149 = sbr.rel (%p146) target = $region12
    $region11: #{decoder_forward.8} parent=5 // pred_region
      %s150 = ssub.s32 %s11, 1
      // Predicated region
      $region13: #{decoder_forward.8} parent=11 // pred_check
        %p151 = pneg %p58
      $region14: #{decoder_forward.8} parent=11 // pred_check_branch
        %153 = sbr.rel (%p151) target = $region16
      $region15: #{decoder_forward.8} parent=11 // pred_region
        _
      $region16: #{decoder_forward.8} parent=11 // pred_fallthru
        _
    $region12: #{decoder_forward.8} parent=5 // pred_fallthru
      _
    %p154 = scmp.lt.s32.totalorder %s11, 2
    // Predicated region
    $region17: #{decoder_forward.8} parent=5 // pred_check
      %p155 = pneg %p154
    $region18: #{decoder_forward.8} parent=5 // pred_check_branch
      %157 = sbr.rel (%p155) target = $region20
    $region19: #{decoder_forward.8} parent=5 // pred_region
      // Predicated region
      $region21: #{decoder_forward.8} parent=19 // pred_check
        %p158 = pneg %p31
      $region22: #{decoder_forward.8} parent=19 // pred_check_branch
        %160 = sbr.rel (%p158) target = $region24
      $region23: #{decoder_forward.8} parent=19 // pred_region
        %s161 = smul.u32 128, %s11
        %p162 = scmp.lt.s32.totalorder %s161, 255
        %s163 = scalar_select %p162, %s161, 255
        %s164 = smul.addr %s163, 4
        %s165 = scalar_lea.vmem %s0, %s164
        %s166 = smul.u32 128, %s11
      $region24: #{decoder_forward.8} parent=19 // pred_fallthru
        _
    $region20: #{decoder_forward.8} parent=5 // pred_fallthru
      _
    %p167 = scmp.le.s32.totalorder 1, %s11
    %p168 = scmp.lt.s32.totalorder %s11, 3
    %p169 = pnand %p167, %p168
    %p170 = pneg %p169
    // Predicated region
    $region25: #{decoder_forward.8} parent=5 // pred_check
      _
    $region26: #{decoder_forward.8} parent=5 // pred_check_branch
      %172 = sbr.rel (%p169) target = $region28
    $region27: #{decoder_forward.8} parent=5 // pred_region
      %s173 = ssub.s32 %s11, 1
      %s174 = smul.u32 128, %s16
      %p175 = scmp.lt.s32.totalorder %s174, 255
      %s176 = scalar_select %p175, %s174, 255
      %s177 = smul.addr %s176, 4
      %s178 = scalar_lea.vmem %s0, %s177
      %p179 = pneg %p37
      %p180 = pneg %p34
      %p181 = pneg %p58
      %p182 = pneg %p55
      %p183 = pneg %p84
      %p184 = pneg %p81
      %s185 = smul.u32 128, %s16
      %p186 = scmp.lt.s32.totalorder %s185, 255
      %s187 = scalar_select %p186, %s185, 255
      %s188 = smul.addr %s187, 8
      %s189 = scalar_lea.vmem %s2, %s188
      %p190 = pneg %p110
      %p191 = pneg %p107
      %p192 = scmp.lt.s32.totalorder %s16, 1
      %s193 = scalar_select %p192, %s16, 1
      %s194 = smul.addr %s193, 8
      %s195 = scalar_lea.vmem %s3, %s194
      %p196 = pneg %p136
      %p197 = pneg %p133
      %p198 = scmp.lt.s32.totalorder %s16, 1
      %s199 = scalar_select %p198, %s16, 1
      %s200 = smul.addr %s199, 8
      %s201 = scalar_lea.vmem %s4, %s200
      %s202 = smul.u32 128, %s16
      %p203 = scmp.lt.s32.totalorder %s202, 255
      %s204 = scalar_select %p203, %s202, 255
      %s205 = smul.addr %s204, 4
      %s206 = scalar_lea.vmem %s0, %s205
      %s207 = smul.u32 128, %s16
      %s208 = smul.u32 128, %s16
      %p209 = scmp.lt.s32.totalorder %s208, 255
      %s210 = scalar_select %p209, %s208, 255
      %s211 = smul.addr %s210, 8
      %s212 = scalar_lea.vmem %s2, %s211
      %s213 = smul.u32 128, %s16
      %p214 = scmp.lt.s32.totalorder %s16, 1
      %s215 = scalar_select %p214, %s16, 1
      %s216 = smul.addr %s215, 8
      %s217 = scalar_lea.vmem %s3, %s216
      %p218 = scmp.lt.s32.totalorder %s16, 1
      %s219 = scalar_select %p218, %s16, 1
      %s220 = smul.addr %s219, 8
      %s221 = scalar_lea.vmem %s4, %s220
      %v223 = vld [vmem:[%s206] sm:$0xf]
      %v224 = vld [vmem:[%s206 + $0x4] sm:$0xf]
      %v225 = vld [vmem:[%s206 + $0x8] sm:$0xf]
      %v226 = vld [vmem:[%s206 + $0xc] sm:$0xf]
      %v227 = vld [vmem:[%s206 + $0x10] sm:$0xf]
      %v228 = vld [vmem:[%s206 + $0x14] sm:$0xf]
      %v229 = vld [vmem:[%s206 + $0x18] sm:$0xf]
      %v230 = vld [vmem:[%s206 + $0x1c] sm:$0xf]
      %v231 = vld [vmem:[%s206 + $0x20] sm:$0xf]
      %v232 = vld [vmem:[%s206 + $0x24] sm:$0xf]
      %v233 = vld [vmem:[%s206 + $0x28] sm:$0xf]
      %v234 = vld [vmem:[%s206 + $0x2c] sm:$0xf]
      %v235 = vld [vmem:[%s206 + $0x30] sm:$0xf]
      %v236 = vld [vmem:[%s206 + $0x34] sm:$0xf]
      %v237 = vld [vmem:[%s206 + $0x38] sm:$0xf]
      %v238 = vld [vmem:[%s206 + $0x3c] sm:$0xf]
      %v239 = vld [vmem:[%s206 + $0x40] sm:$0xf]
      %v240 = vld [vmem:[%s206 + $0x44] sm:$0xf]
      %v241 = vld [vmem:[%s206 + $0x48] sm:$0xf]
      %v242 = vld [vmem:[%s206 + $0x4c] sm:$0xf]
      %v243 = vld [vmem:[%s206 + $0x50] sm:$0xf]
      %v244 = vld [vmem:[%s206 + $0x54] sm:$0xf]
      %v245 = vld [vmem:[%s206 + $0x58] sm:$0xf]
      %v246 = vld [vmem:[%s206 + $0x5c] sm:$0xf]
      %v247 = vld [vmem:[%s206 + $0x60] sm:$0xf]
      %v248 = vld [vmem:[%s206 + $0x64] sm:$0xf]
      %v249 = vld [vmem:[%s206 + $0x68] sm:$0xf]
      %v250 = vld [vmem:[%s206 + $0x6c] sm:$0xf]
      %v251 = vld [vmem:[%s206 + $0x70] sm:$0xf]
      %v252 = vld [vmem:[%s206 + $0x74] sm:$0xf]
      %v253 = vld [vmem:[%s206 + $0x78] sm:$0xf]
      %v254 = vld [vmem:[%s206 + $0x7c] sm:$0xf]
      %v255 = vld [vmem:[%s206 + $0x80] sm:$0xf]
      %v256 = vld [vmem:[%s206 + $0x84] sm:$0xf]
      %v257 = vld [vmem:[%s206 + $0x88] sm:$0xf]
      %v258 = vld [vmem:[%s206 + $0x8c] sm:$0xf]
      %v259 = vld [vmem:[%s206 + $0x90] sm:$0xf]
      %v260 = vld [vmem:[%s206 + $0x94] sm:$0xf]
      %v261 = vld [vmem:[%s206 + $0x98] sm:$0xf]
      %v262 = vld [vmem:[%s206 + $0x9c] sm:$0xf]
      %v263 = vld [vmem:[%s206 + $0xa0] sm:$0xf]
      %v264 = vld [vmem:[%s206 + $0xa4] sm:$0xf]
      %v265 = vld [vmem:[%s206 + $0xa8] sm:$0xf]
      %v266 = vld [vmem:[%s206 + $0xac] sm:$0xf]
      %v267 = vld [vmem:[%s206 + $0xb0] sm:$0xf]
      %v268 = vld [vmem:[%s206 + $0xb4] sm:$0xf]
      %v269 = vld [vmem:[%s206 + $0xb8] sm:$0xf]
      %v270 = vld [vmem:[%s206 + $0xbc] sm:$0xf]
      %v271 = vld [vmem:[%s206 + $0xc0] sm:$0xf]
      %v272 = vld [vmem:[%s206 + $0xc4] sm:$0xf]
      %v273 = vld [vmem:[%s206 + $0xc8] sm:$0xf]
      %v274 = vld [vmem:[%s206 + $0xcc] sm:$0xf]
      %v275 = vld [vmem:[%s206 + $0xd0] sm:$0xf]
      %v276 = vld [vmem:[%s206 + $0xd4] sm:$0xf]
      %v277 = vld [vmem:[%s206 + $0xd8] sm:$0xf]
      %v278 = vld [vmem:[%s206 + $0xdc] sm:$0xf]
      %v279 = vld [vmem:[%s206 + $0xe0] sm:$0xf]
      %v280 = vld [vmem:[%s206 + $0xe4] sm:$0xf]
      %v281 = vld [vmem:[%s206 + $0xe8] sm:$0xf]
      %v282 = vld [vmem:[%s206 + $0xec] sm:$0xf]
      %v283 = vld [vmem:[%s206 + $0xf0] sm:$0xf]
      %v284 = vld [vmem:[%s206 + $0xf4] sm:$0xf]
      %v285 = vld [vmem:[%s206 + $0xf8] sm:$0xf]
      %v286 = vld [vmem:[%s206 + $0xfc] sm:$0xf]
      %v287 = vld [vmem:[%s206 + $0x100] sm:$0xf]
      %v288 = vld [vmem:[%s206 + $0x104] sm:$0xf]
      %v289 = vld [vmem:[%s206 + $0x108] sm:$0xf]
      %v290 = vld [vmem:[%s206 + $0x10c] sm:$0xf]
      %v291 = vld [vmem:[%s206 + $0x110] sm:$0xf]
      %v292 = vld [vmem:[%s206 + $0x114] sm:$0xf]
      %v293 = vld [vmem:[%s206 + $0x118] sm:$0xf]
      %v294 = vld [vmem:[%s206 + $0x11c] sm:$0xf]
      %v295 = vld [vmem:[%s206 + $0x120] sm:$0xf]
      %v296 = vld [vmem:[%s206 + $0x124] sm:$0xf]
      %v297 = vld [vmem:[%s206 + $0x128] sm:$0xf]
      %v298 = vld [vmem:[%s206 + $0x12c] sm:$0xf]
      %v299 = vld [vmem:[%s206 + $0x130] sm:$0xf]
      %v300 = vld [vmem:[%s206 + $0x134] sm:$0xf]
      %v301 = vld [vmem:[%s206 + $0x138] sm:$0xf]
      %v302 = vld [vmem:[%s206 + $0x13c] sm:$0xf]
      %v303 = vld [vmem:[%s206 + $0x140] sm:$0xf]
      %v304 = vld [vmem:[%s206 + $0x144] sm:$0xf]
      %v305 = vld [vmem:[%s206 + $0x148] sm:$0xf]
      %v306 = vld [vmem:[%s206 + $0x14c] sm:$0xf]
      %v307 = vld [vmem:[%s206 + $0x150] sm:$0xf]
      %v308 = vld [vmem:[%s206 + $0x154] sm:$0xf]
      %v309 = vld [vmem:[%s206 + $0x158] sm:$0xf]
      %v310 = vld [vmem:[%s206 + $0x15c] sm:$0xf]
      %v311 = vld [vmem:[%s206 + $0x160] sm:$0xf]
      %v312 = vld [vmem:[%s206 + $0x164] sm:$0xf]
      %v313 = vld [vmem:[%s206 + $0x168] sm:$0xf]
      %v314 = vld [vmem:[%s206 + $0x16c] sm:$0xf]
      %v315 = vld [vmem:[%s206 + $0x170] sm:$0xf]
      %v316 = vld [vmem:[%s206 + $0x174] sm:$0xf]
      %v317 = vld [vmem:[%s206 + $0x178] sm:$0xf]
      %v318 = vld [vmem:[%s206 + $0x17c] sm:$0xf]
      %v319 = vld [vmem:[%s206 + $0x180] sm:$0xf]
      %v320 = vld [vmem:[%s206 + $0x184] sm:$0xf]
      %v321 = vld [vmem:[%s206 + $0x188] sm:$0xf]
      %v322 = vld [vmem:[%s206 + $0x18c] sm:$0xf]
      %v323 = vld [vmem:[%s206 + $0x190] sm:$0xf]
      %v324 = vld [vmem:[%s206 + $0x194] sm:$0xf]
      %v325 = vld [vmem:[%s206 + $0x198] sm:$0xf]
      %v326 = vld [vmem:[%s206 + $0x19c] sm:$0xf]
      %v327 = vld [vmem:[%s206 + $0x1a0] sm:$0xf]
      %v328 = vld [vmem:[%s206 + $0x1a4] sm:$0xf]
      %v329 = vld [vmem:[%s206 + $0x1a8] sm:$0xf]
      %v330 = vld [vmem:[%s206 + $0x1ac] sm:$0xf]
      %v331 = vld [vmem:[%s206 + $0x1b0] sm:$0xf]
      %v332 = vld [vmem:[%s206 + $0x1b4] sm:$0xf]
      %v333 = vld [vmem:[%s206 + $0x1b8] sm:$0xf]
      %v334 = vld [vmem:[%s206 + $0x1bc] sm:$0xf]
      %v335 = vld [vmem:[%s206 + $0x1c0] sm:$0xf]
      %v336 = vld [vmem:[%s206 + $0x1c4] sm:$0xf]
      %v337 = vld [vmem:[%s206 + $0x1c8] sm:$0xf]
      %v338 = vld [vmem:[%s206 + $0x1cc] sm:$0xf]
      %v339 = vld [vmem:[%s206 + $0x1d0] sm:$0xf]
      %v340 = vld [vmem:[%s206 + $0x1d4] sm:$0xf]
      %v341 = vld [vmem:[%s206 + $0x1d8] sm:$0xf]
      %v342 = vld [vmem:[%s206 + $0x1dc] sm:$0xf]
      %v343 = vld [vmem:[%s206 + $0x1e0] sm:$0xf]
      %v344 = vld [vmem:[%s206 + $0x1e4] sm:$0xf]
      %v345 = vld [vmem:[%s206 + $0x1e8] sm:$0xf]
      %v346 = vld [vmem:[%s206 + $0x1ec] sm:$0xf]
      %v347 = vld [vmem:[%s206 + $0x1f0] sm:$0xf]
      %v348 = vld [vmem:[%s206 + $0x1f4] sm:$0xf]
      %v349 = vld [vmem:[%s206 + $0x1f8] sm:$0xf]
      %v350 = vld [vmem:[%s206 + $0x1fc] sm:$0xf]
      %v351 = vld [vmem:[%s1] sm:$0xf]
      %v352 = vld [vmem:[%s1 + $0x4] sm:$0xf]
      %v353 = vld [vmem:[%s1 + $0x8] sm:$0xf]
      %v354 = vld [vmem:[%s1 + $0xc] sm:$0xf]
      %v355 = vld [vmem:[%s1 + $0x10] sm:$0x3]
      %v484 = vunpack.c.l.b16 %v223
      %v485 = vunpack.c.l.b16 %v224
      %v486 = vunpack.c.l.b16 %v225
      %v487 = vunpack.c.l.b16 %v226
      %v488 = vunpack.c.l.b16 %v227
      %v489 = vunpack.c.l.b16 %v228
      %v490 = vunpack.c.l.b16 %v229
      %v491 = vunpack.c.l.b16 %v230
      %v492 = vunpack.c.l.b16 %v231
      %v493 = vunpack.c.l.b16 %v232
      %v494 = vunpack.c.l.b16 %v233
      %v495 = vunpack.c.l.b16 %v234
      %v496 = vunpack.c.l.b16 %v235
      %v497 = vunpack.c.l.b16 %v236
      %v498 = vunpack.c.l.b16 %v237
      %v499 = vunpack.c.l.b16 %v238
      %v500 = vunpack.c.l.b16 %v239
      %v501 = vunpack.c.l.b16 %v240
      %v502 = vunpack.c.l.b16 %v241
      %v503 = vunpack.c.l.b16 %v242
      %v504 = vunpack.c.l.b16 %v243
      %v505 = vunpack.c.l.b16 %v244
      %v506 = vunpack.c.l.b16 %v245
      %v507 = vunpack.c.l.b16 %v246
      %v508 = vunpack.c.l.b16 %v247
      %v509 = vunpack.c.l.b16 %v248
      %v510 = vunpack.c.l.b16 %v249
      %v511 = vunpack.c.l.b16 %v250
      %v512 = vunpack.c.l.b16 %v251
      %v513 = vunpack.c.l.b16 %v252
      %v514 = vunpack.c.l.b16 %v253
      %v515 = vunpack.c.l.b16 %v254
      %v516 = vunpack.c.l.b16 %v255
      %v517 = vunpack.c.l.b16 %v256
      %v518 = vunpack.c.l.b16 %v257
      %v519 = vunpack.c.l.b16 %v258
      %v520 = vunpack.c.l.b16 %v259
      %v521 = vunpack.c.l.b16 %v260
      %v522 = vunpack.c.l.b16 %v261
      %v523 = vunpack.c.l.b16 %v262
      %v524 = vunpack.c.l.b16 %v263
      %v525 = vunpack.c.l.b16 %v264
      %v526 = vunpack.c.l.b16 %v265
      %v527 = vunpack.c.l.b16 %v266
      %v528 = vunpack.c.l.b16 %v267
      %v529 = vunpack.c.l.b16 %v268
      %v530 = vunpack.c.l.b16 %v269
      %v531 = vunpack.c.l.b16 %v270
      %v532 = vunpack.c.l.b16 %v271
      %v533 = vunpack.c.l.b16 %v272
      %v534 = vunpack.c.l.b16 %v273
      %v535 = vunpack.c.l.b16 %v274
      %v536 = vunpack.c.l.b16 %v275
      %v537 = vunpack.c.l.b16 %v276
      %v538 = vunpack.c.l.b16 %v277
      %v539 = vunpack.c.l.b16 %v278
      %v540 = vunpack.c.l.b16 %v279
      %v541 = vunpack.c.l.b16 %v280
      %v542 = vunpack.c.l.b16 %v281
      %v543 = vunpack.c.l.b16 %v282
      %v544 = vunpack.c.l.b16 %v283
      %v545 = vunpack.c.l.b16 %v284
      %v546 = vunpack.c.l.b16 %v285
      %v547 = vunpack.c.l.b16 %v286
      %v548 = vunpack.c.l.b16 %v287
      %v549 = vunpack.c.l.b16 %v288
      %v550 = vunpack.c.l.b16 %v289
      %v551 = vunpack.c.l.b16 %v290
      %v552 = vunpack.c.l.b16 %v291
      %v553 = vunpack.c.l.b16 %v292
      %v554 = vunpack.c.l.b16 %v293
      %v555 = vunpack.c.l.b16 %v294
      %v556 = vunpack.c.l.b16 %v295
      %v557 = vunpack.c.l.b16 %v296
      %v558 = vunpack.c.l.b16 %v297
      %v559 = vunpack.c.l.b16 %v298
      %v560 = vunpack.c.l.b16 %v299
      %v561 = vunpack.c.l.b16 %v300
      %v562 = vunpack.c.l.b16 %v301
      %v563 = vunpack.c.l.b16 %v302
      %v564 = vunpack.c.l.b16 %v303
      %v565 = vunpack.c.l.b16 %v304
      %v566 = vunpack.c.l.b16 %v305
      %v567 = vunpack.c.l.b16 %v306
      %v568 = vunpack.c.l.b16 %v307
      %v569 = vunpack.c.l.b16 %v308
      %v570 = vunpack.c.l.b16 %v309
      %v571 = vunpack.c.l.b16 %v310
      %v572 = vunpack.c.l.b16 %v311
      %v573 = vunpack.c.l.b16 %v312
      %v574 = vunpack.c.l.b16 %v313
      %v575 = vunpack.c.l.b16 %v314
      %v576 = vunpack.c.l.b16 %v315
      %v577 = vunpack.c.l.b16 %v316
      %v578 = vunpack.c.l.b16 %v317
      %v579 = vunpack.c.l.b16 %v318
      %v580 = vunpack.c.l.b16 %v319
      %v581 = vunpack.c.l.b16 %v320
      %v582 = vunpack.c.l.b16 %v321
      %v583 = vunpack.c.l.b16 %v322
      %v584 = vunpack.c.l.b16 %v323
      %v585 = vunpack.c.l.b16 %v324
      %v586 = vunpack.c.l.b16 %v325
      %v587 = vunpack.c.l.b16 %v326
      %v588 = vunpack.c.l.b16 %v327
      %v589 = vunpack.c.l.b16 %v328
      %v590 = vunpack.c.l.b16 %v329
      %v591 = vunpack.c.l.b16 %v330
      %v592 = vunpack.c.l.b16 %v331
      %v593 = vunpack.c.l.b16 %v332
      %v594 = vunpack.c.l.b16 %v333
      %v595 = vunpack.c.l.b16 %v334
      %v596 = vunpack.c.l.b16 %v335
      %v597 = vunpack.c.l.b16 %v336
      %v598 = vunpack.c.l.b16 %v337
      %v599 = vunpack.c.l.b16 %v338
      %v600 = vunpack.c.l.b16 %v339
      %v601 = vunpack.c.l.b16 %v340
      %v602 = vunpack.c.l.b16 %v341
      %v603 = vunpack.c.l.b16 %v342
      %v604 = vunpack.c.l.b16 %v343
      %v605 = vunpack.c.l.b16 %v344
      %v606 = vunpack.c.l.b16 %v345
      %v607 = vunpack.c.l.b16 %v346
      %v608 = vunpack.c.l.b16 %v347
      %v609 = vunpack.c.l.b16 %v348
      %v610 = vunpack.c.l.b16 %v349
      %v611 = vunpack.c.l.b16 %v350
      %v612 = vpack.c.b16 %v485, %v484
      %v613 = vpack.c.b16 %v487, %v486
      %v614 = vpack.c.b16 %v489, %v488
      %v615 = vpack.c.b16 %v491, %v490
      %v616 = vpack.c.b16 %v493, %v492
      %v617 = vpack.c.b16 %v495, %v494
      %v618 = vpack.c.b16 %v497, %v496
      %v619 = vpack.c.b16 %v499, %v498
      %v620 = vpack.c.b16 %v501, %v500
      %v621 = vpack.c.b16 %v503, %v502
      %v622 = vpack.c.b16 %v505, %v504
      %v623 = vpack.c.b16 %v507, %v506
      %v624 = vpack.c.b16 %v509, %v508
      %v625 = vpack.c.b16 %v511, %v510
      %v626 = vpack.c.b16 %v513, %v512
      %v627 = vpack.c.b16 %v515, %v514
      %v628 = vpack.c.b16 %v517, %v516
      %v629 = vpack.c.b16 %v519, %v518
      %v630 = vpack.c.b16 %v521, %v520
      %v631 = vpack.c.b16 %v523, %v522
      %v632 = vpack.c.b16 %v525, %v524
      %v633 = vpack.c.b16 %v527, %v526
      %v634 = vpack.c.b16 %v529, %v528
      %v635 = vpack.c.b16 %v531, %v530
      %v636 = vpack.c.b16 %v533, %v532
      %v637 = vpack.c.b16 %v535, %v534
      %v638 = vpack.c.b16 %v537, %v536
      %v639 = vpack.c.b16 %v539, %v538
      %v640 = vpack.c.b16 %v541, %v540
      %v641 = vpack.c.b16 %v543, %v542
      %v642 = vpack.c.b16 %v545, %v544
      %v643 = vpack.c.b16 %v547, %v546
      %v644 = vpack.c.b16 %v549, %v548
      %v645 = vpack.c.b16 %v551, %v550
      %v646 = vpack.c.b16 %v553, %v552
      %v647 = vpack.c.b16 %v555, %v554
      %v648 = vpack.c.b16 %v557, %v556
      %v649 = vpack.c.b16 %v559, %v558
      %v650 = vpack.c.b16 %v561, %v560
      %v651 = vpack.c.b16 %v563, %v562
      %v652 = vpack.c.b16 %v565, %v564
      %v653 = vpack.c.b16 %v567, %v566
      %v654 = vpack.c.b16 %v569, %v568
      %v655 = vpack.c.b16 %v571, %v570
      %v656 = vpack.c.b16 %v573, %v572
      %v657 = vpack.c.b16 %v575, %v574
      %v658 = vpack.c.b16 %v577, %v576
      %v659 = vpack.c.b16 %v579, %v578
      %v660 = vpack.c.b16 %v581, %v580
      %v661 = vpack.c.b16 %v583, %v582
      %v662 = vpack.c.b16 %v585, %v584
      %v663 = vpack.c.b16 %v587, %v586
      %v664 = vpack.c.b16 %v589, %v588
      %v665 = vpack.c.b16 %v591, %v590
      %v666 = vpack.c.b16 %v593, %v592
      %v667 = vpack.c.b16 %v595, %v594
      %v668 = vpack.c.b16 %v597, %v596
      %v669 = vpack.c.b16 %v599, %v598
      %v670 = vpack.c.b16 %v601, %v600
      %v671 = vpack.c.b16 %v603, %v602
      %v672 = vpack.c.b16 %v605, %v604
      %v673 = vpack.c.b16 %v607, %v606
      %v674 = vpack.c.b16 %v609, %v608
      %v675 = vpack.c.b16 %v611, %v610
      %v681 = vunpack.c.l.b16 %v351
      %v682 = vunpack.c.l.b16 %v352
      %v683 = vunpack.c.l.b16 %v353
      %v684 = vunpack.c.l.b16 %v354
      %v685 = vunpack.c.l.b16 %v355
      %v686 = vpack.c.b16 %v682, %v681
      %v687 = vpack.c.b16 %v684, %v683
      %v688 = vpack.c.b16 %v685, %v685
      %vm691 = vcmask 293888
      %v693 = vsel %vm691, %v612, 0
      %v696 = vsel %vm691, %v613, 0
      %v699 = vsel %vm691, %v614, 0
      %v702 = vsel %vm691, %v615, 0
      %v705 = vsel %vm691, %v616, 0
      %v708 = vsel %vm691, %v617, 0
      %v711 = vsel %vm691, %v618, 0
      %v714 = vsel %vm691, %v619, 0
      %v717 = vsel %vm691, %v620, 0
      %v720 = vsel %vm691, %v621, 0
      %v723 = vsel %vm691, %v622, 0
      %v726 = vsel %vm691, %v623, 0
      %v729 = vsel %vm691, %v624, 0
      %v732 = vsel %vm691, %v625, 0
      %v735 = vsel %vm691, %v626, 0
      %v738 = vsel %vm691, %v627, 0
      %v741 = vsel %vm691, %v628, 0
      %v744 = vsel %vm691, %v629, 0
      %v747 = vsel %vm691, %v630, 0
      %v750 = vsel %vm691, %v631, 0
      %v753 = vsel %vm691, %v632, 0
      %v756 = vsel %vm691, %v633, 0
      %v759 = vsel %vm691, %v634, 0
      %v762 = vsel %vm691, %v635, 0
      %v765 = vsel %vm691, %v636, 0
      %v768 = vsel %vm691, %v637, 0
      %v771 = vsel %vm691, %v638, 0
      %v774 = vsel %vm691, %v639, 0
      %v777 = vsel %vm691, %v640, 0
      %v780 = vsel %vm691, %v641, 0
      %v783 = vsel %vm691, %v642, 0
      %v786 = vsel %vm691, %v643, 0
      %v789 = vsel %vm691, %v644, 0
      %v792 = vsel %vm691, %v645, 0
      %v795 = vsel %vm691, %v646, 0
      %v798 = vsel %vm691, %v647, 0
      %v801 = vsel %vm691, %v648, 0
      %v804 = vsel %vm691, %v649, 0
      %v807 = vsel %vm691, %v650, 0
      %v810 = vsel %vm691, %v651, 0
      %v813 = vsel %vm691, %v652, 0
      %v816 = vsel %vm691, %v653, 0
      %v819 = vsel %vm691, %v654, 0
      %v822 = vsel %vm691, %v655, 0
      %v825 = vsel %vm691, %v656, 0
      %v828 = vsel %vm691, %v657, 0
      %v831 = vsel %vm691, %v658, 0
      %v834 = vsel %vm691, %v659, 0
      %v837 = vsel %vm691, %v660, 0
      %v840 = vsel %vm691, %v661, 0
      %v843 = vsel %vm691, %v662, 0
      %v846 = vsel %vm691, %v663, 0
      %v849 = vsel %vm691, %v664, 0
      %v852 = vsel %vm691, %v665, 0
      %v855 = vsel %vm691, %v666, 0
      %v858 = vsel %vm691, %v667, 0
      %v861 = vsel %vm691, %v668, 0
      %v864 = vsel %vm691, %v669, 0
      %v867 = vsel %vm691, %v670, 0
      %v870 = vsel %vm691, %v671, 0
      %v873 = vsel %vm691, %v672, 0
      %v876 = vsel %vm691, %v673, 0
      %v879 = vsel %vm691, %v674, 0
      %v882 = vsel %vm691, %v675, 0
      %vm884 = vcmask 1041408
      %v886 = vsel %vm884, %v688, 0
      %888 = vmatprep.subr.bf16.mxu0 0
      %889 = vmatpush1.bf16.msra.mxu0 0
      %890 = vmatprep.subr.bf16.mxu0 0
      %891 = vmatpush1.bf16.msra.mxu0 0
      %892 = vmatprep.subr.bf16.mxu0 0
      %893 = vmatpush1.bf16.msra.mxu0 0
      %894 = vmatprep.subr.bf16.mxu0 0
      %895 = vmatpush1.bf16.msra.mxu0 0
      %896 = vmatprep.subr.bf16.mxu0 0
      %897 = vmatpush1.bf16.msra.mxu0 0
      %898 = vmatprep.subr.bf16.mxu0 0
      %899 = vmatpush1.bf16.msra.mxu0 %v886
      %900 = vmatprep.subr.bf16.mxu0 0
      %901 = vmatpush1.bf16.msra.mxu0 %v687
      %902 = vmatprep.subr.bf16.mxu0 0
      %903 = vmatpush1.bf16.msra.mxu0 %v686
      %904 = vmatprep.subr.bf16.mxu0 0
      %905 = vmatpush2.bf16.msra.mxu0 0
      %906 = vmatprep.subr.bf16.mxu0 0
      %907 = vmatpush2.bf16.msra.mxu0 0
      %908 = vmatprep.subr.bf16.mxu0 0
      %909 = vmatpush2.bf16.msra.mxu0 0
      %910 = vmatprep.subr.bf16.mxu0 0
      %911 = vmatpush2.bf16.msra.mxu0 0
      %912 = vmatprep.subr.bf16.mxu0 0
      %913 = vmatpush2.bf16.msra.mxu0 0
      %914 = vmatprep.subr.bf16.mxu0 0
      %915 = vmatpush2.bf16.msra.mxu0 0
      %916 = vmatprep.subr.bf16.mxu0 0
      %917 = vmatpush2.bf16.msra.mxu0 0
      %918 = vmatprep.subr.bf16.mxu0 0
      %919 = vmatpush2.bf16.msra.mxu0 0
      %920 = vmatprep.mubr.bf16.mxu0 0
      %921 = vmatmul.mubr.bf16.gmra.mxu0 %v693
      %v922 = vpop.f32.mrf.mxu0
      %v923 = vadd.f32 0.0, %v922
      %v924 = vpop.f32.mrf.mxu0
      %v925 = vpop.f32.mrf.mxu0
      %v926 = vadd.f32 0.0, %v925
      %v927 = vpop.f32.mrf.mxu0
      %928 = vmatprep.mubr.bf16.mxu0 0
      %929 = vmatmul.mubr.bf16.gmra.mxu0 %v696
      %v930 = vpop.f32.mrf.mxu0
      %v931 = vadd.f32 0.0, %v930
      %v932 = vpop.f32.mrf.mxu0
      %v933 = vpop.f32.mrf.mxu0
      %v934 = vadd.f32 0.0, %v933
      %v935 = vpop.f32.mrf.mxu0
      %936 = vmatprep.mubr.bf16.mxu0 0
      %937 = vmatmul.mubr.bf16.gmra.mxu0 %v699
      %v938 = vpop.f32.mrf.mxu0
      %v939 = vadd.f32 0.0, %v938
      %v940 = vpop.f32.mrf.mxu0
      %v941 = vpop.f32.mrf.mxu0
      %v942 = vadd.f32 0.0, %v941
      %v943 = vpop.f32.mrf.mxu0
      %944 = vmatprep.mubr.bf16.mxu0 0
      %945 = vmatmul.mubr.bf16.gmra.mxu0 %v702
      %v946 = vpop.f32.mrf.mxu0
      %v947 = vadd.f32 0.0, %v946
      %v948 = vpop.f32.mrf.mxu0
      %v949 = vpop.f32.mrf.mxu0
      %v950 = vadd.f32 0.0, %v949
      %v951 = vpop.f32.mrf.mxu0
      %952 = vmatprep.mubr.bf16.mxu0 0
      %953 = vmatmul.mubr.bf16.gmra.mxu0 %v705
      %v954 = vpop.f32.mrf.mxu0
      %v955 = vadd.f32 0.0, %v954
      %v956 = vpop.f32.mrf.mxu0
      %v957 = vpop.f32.mrf.mxu0
      %v958 = vadd.f32 0.0, %v957
      %v959 = vpop.f32.mrf.mxu0
      %960 = vmatprep.mubr.bf16.mxu0 0
      %961 = vmatmul.mubr.bf16.gmra.mxu0 %v708
      %v962 = vpop.f32.mrf.mxu0
      %v963 = vadd.f32 0.0, %v962
      %v964 = vpop.f32.mrf.mxu0
      %v965 = vpop.f32.mrf.mxu0
      %v966 = vadd.f32 0.0, %v965
      %v967 = vpop.f32.mrf.mxu0
      %968 = vmatprep.mubr.bf16.mxu0 0
      %969 = vmatmul.mubr.bf16.gmra.mxu0 %v711
      %v970 = vpop.f32.mrf.mxu0
      %v971 = vadd.f32 0.0, %v970
      %v972 = vpop.f32.mrf.mxu0
      %v973 = vpop.f32.mrf.mxu0
      %v974 = vadd.f32 0.0, %v973
      %v975 = vpop.f32.mrf.mxu0
      %976 = vmatprep.mubr.bf16.mxu0 0
      %977 = vmatmul.mubr.bf16.gmra.mxu0 %v714
      %v978 = vpop.f32.mrf.mxu0
      %v979 = vadd.f32 0.0, %v978
      %v980 = vpop.f32.mrf.mxu0
      %v981 = vpop.f32.mrf.mxu0
      %v982 = vadd.f32 0.0, %v981
      %v983 = vpop.f32.mrf.mxu0
      %984 = vmatprep.mubr.bf16.mxu0 0
      %985 = vmatmul.mubr.bf16.gmra.mxu0 %v717
      %v986 = vpop.f32.mrf.mxu0
      %v987 = vadd.f32 0.0, %v986
      %v988 = vpop.f32.mrf.mxu0
      %v989 = vpop.f32.mrf.mxu0
      %v990 = vadd.f32 0.0, %v989
      %v991 = vpop.f32.mrf.mxu0
      %992 = vmatprep.mubr.bf16.mxu0 0
      %993 = vmatmul.mubr.bf16.gmra.mxu0 %v720
      %v994 = vpop.f32.mrf.mxu0
      %v995 = vadd.f32 0.0, %v994
      %v996 = vpop.f32.mrf.mxu0
      %v997 = vpop.f32.mrf.mxu0
      %v998 = vadd.f32 0.0, %v997
      %v999 = vpop.f32.mrf.mxu0
      %1000 = vmatprep.mubr.bf16.mxu0 0
      %1001 = vmatmul.mubr.bf16.gmra.mxu0 %v723
      %v1002 = vpop.f32.mrf.mxu0
      %v1003 = vadd.f32 0.0, %v1002
      %v1004 = vpop.f32.mrf.mxu0
      %v1005 = vpop.f32.mrf.mxu0
      %v1006 = vadd.f32 0.0, %v1005
      %v1007 = vpop.f32.mrf.mxu0
      %1008 = vmatprep.mubr.bf16.mxu0 0
      %1009 = vmatmul.mubr.bf16.gmra.mxu0 %v726
      %v1010 = vpop.f32.mrf.mxu0
      %v1011 = vadd.f32 0.0, %v1010
      %v1012 = vpop.f32.mrf.mxu0
      %v1013 = vpop.f32.mrf.mxu0
      %v1014 = vadd.f32 0.0, %v1013
      %v1015 = vpop.f32.mrf.mxu0
      %1016 = vmatprep.mubr.bf16.mxu0 0
      %1017 = vmatmul.mubr.bf16.gmra.mxu0 %v729
      %v1018 = vpop.f32.mrf.mxu0
      %v1019 = vadd.f32 0.0, %v1018
      %v1020 = vpop.f32.mrf.mxu0
      %v1021 = vpop.f32.mrf.mxu0
      %v1022 = vadd.f32 0.0, %v1021
      %v1023 = vpop.f32.mrf.mxu0
      %1024 = vmatprep.mubr.bf16.mxu0 0
      %1025 = vmatmul.mubr.bf16.gmra.mxu0 %v732
      %v1026 = vpop.f32.mrf.mxu0
      %v1027 = vadd.f32 0.0, %v1026
      %v1028 = vpop.f32.mrf.mxu0
      %v1029 = vpop.f32.mrf.mxu0
      %v1030 = vadd.f32 0.0, %v1029
      %v1031 = vpop.f32.mrf.mxu0
      %1032 = vmatprep.mubr.bf16.mxu0 0
      %1033 = vmatmul.mubr.bf16.gmra.mxu0 %v735
      %v1034 = vpop.f32.mrf.mxu0
      %v1035 = vadd.f32 0.0, %v1034
      %v1036 = vpop.f32.mrf.mxu0
      %v1037 = vpop.f32.mrf.mxu0
      %v1038 = vadd.f32 0.0, %v1037
      %v1039 = vpop.f32.mrf.mxu0
      %1040 = vmatprep.mubr.bf16.mxu0 0
      %1041 = vmatmul.mubr.bf16.gmra.mxu0 %v738
      %v1042 = vpop.f32.mrf.mxu0
      %v1043 = vadd.f32 0.0, %v1042
      %v1044 = vpop.f32.mrf.mxu0
      %v1045 = vpop.f32.mrf.mxu0
      %v1046 = vadd.f32 0.0, %v1045
      %v1047 = vpop.f32.mrf.mxu0
      %1048 = vmatprep.mubr.bf16.mxu0 0
      %1049 = vmatmul.mubr.bf16.gmra.mxu0 %v741
      %v1050 = vpop.f32.mrf.mxu0
      %v1051 = vadd.f32 0.0, %v1050
      %v1052 = vpop.f32.mrf.mxu0
      %v1053 = vpop.f32.mrf.mxu0
      %v1054 = vadd.f32 0.0, %v1053
      %v1055 = vpop.f32.mrf.mxu0
      %1056 = vmatprep.mubr.bf16.mxu0 0
      %1057 = vmatmul.mubr.bf16.gmra.mxu0 %v744
      %v1058 = vpop.f32.mrf.mxu0
      %v1059 = vadd.f32 0.0, %v1058
      %v1060 = vpop.f32.mrf.mxu0
      %v1061 = vpop.f32.mrf.mxu0
      %v1062 = vadd.f32 0.0, %v1061
      %v1063 = vpop.f32.mrf.mxu0
      %1064 = vmatprep.mubr.bf16.mxu0 0
      %1065 = vmatmul.mubr.bf16.gmra.mxu0 %v747
      %v1066 = vpop.f32.mrf.mxu0
      %v1067 = vadd.f32 0.0, %v1066
      %v1068 = vpop.f32.mrf.mxu0
      %v1069 = vpop.f32.mrf.mxu0
      %v1070 = vadd.f32 0.0, %v1069
      %v1071 = vpop.f32.mrf.mxu0
      %1072 = vmatprep.mubr.bf16.mxu0 0
      %1073 = vmatmul.mubr.bf16.gmra.mxu0 %v750
      %v1074 = vpop.f32.mrf.mxu0
      %v1075 = vadd.f32 0.0, %v1074
      %v1076 = vpop.f32.mrf.mxu0
      %v1077 = vpop.f32.mrf.mxu0
      %v1078 = vadd.f32 0.0, %v1077
      %v1079 = vpop.f32.mrf.mxu0
      %1080 = vmatprep.mubr.bf16.mxu0 0
      %1081 = vmatmul.mubr.bf16.gmra.mxu0 %v753
      %v1082 = vpop.f32.mrf.mxu0
      %v1083 = vadd.f32 0.0, %v1082
      %v1084 = vpop.f32.mrf.mxu0
      %v1085 = vpop.f32.mrf.mxu0
      %v1086 = vadd.f32 0.0, %v1085
      %v1087 = vpop.f32.mrf.mxu0
      %1088 = vmatprep.mubr.bf16.mxu0 0
      %1089 = vmatmul.mubr.bf16.gmra.mxu0 %v756
      %v1090 = vpop.f32.mrf.mxu0
      %v1091 = vadd.f32 0.0, %v1090
      %v1092 = vpop.f32.mrf.mxu0
      %v1093 = vpop.f32.mrf.mxu0
      %v1094 = vadd.f32 0.0, %v1093
      %v1095 = vpop.f32.mrf.mxu0
      %1096 = vmatprep.mubr.bf16.mxu0 0
      %1097 = vmatmul.mubr.bf16.gmra.mxu0 %v759
      %v1098 = vpop.f32.mrf.mxu0
      %v1099 = vadd.f32 0.0, %v1098
      %v1100 = vpop.f32.mrf.mxu0
      %v1101 = vpop.f32.mrf.mxu0
      %v1102 = vadd.f32 0.0, %v1101
      %v1103 = vpop.f32.mrf.mxu0
      %1104 = vmatprep.mubr.bf16.mxu0 0
      %1105 = vmatmul.mubr.bf16.gmra.mxu0 %v762
      %v1106 = vpop.f32.mrf.mxu0
      %v1107 = vadd.f32 0.0, %v1106
      %v1108 = vpop.f32.mrf.mxu0
      %v1109 = vpop.f32.mrf.mxu0
      %v1110 = vadd.f32 0.0, %v1109
      %v1111 = vpop.f32.mrf.mxu0
      %1112 = vmatprep.mubr.bf16.mxu0 0
      %1113 = vmatmul.mubr.bf16.gmra.mxu0 %v765
      %v1114 = vpop.f32.mrf.mxu0
      %v1115 = vadd.f32 0.0, %v1114
      %v1116 = vpop.f32.mrf.mxu0
      %v1117 = vpop.f32.mrf.mxu0
      %v1118 = vadd.f32 0.0, %v1117
      %v1119 = vpop.f32.mrf.mxu0
      %1120 = vmatprep.mubr.bf16.mxu0 0
      %1121 = vmatmul.mubr.bf16.gmra.mxu0 %v768
      %v1122 = vpop.f32.mrf.mxu0
      %v1123 = vadd.f32 0.0, %v1122
      %v1124 = vpop.f32.mrf.mxu0
      %v1125 = vpop.f32.mrf.mxu0
      %v1126 = vadd.f32 0.0, %v1125
      %v1127 = vpop.f32.mrf.mxu0
      %1128 = vmatprep.mubr.bf16.mxu0 0
      %1129 = vmatmul.mubr.bf16.gmra.mxu0 %v771
      %v1130 = vpop.f32.mrf.mxu0
      %v1131 = vadd.f32 0.0, %v1130
      %v1132 = vpop.f32.mrf.mxu0
      %v1133 = vpop.f32.mrf.mxu0
      %v1134 = vadd.f32 0.0, %v1133
      %v1135 = vpop.f32.mrf.mxu0
      %1136 = vmatprep.mubr.bf16.mxu0 0
      %1137 = vmatmul.mubr.bf16.gmra.mxu0 %v774
      %v1138 = vpop.f32.mrf.mxu0
      %v1139 = vadd.f32 0.0, %v1138
      %v1140 = vpop.f32.mrf.mxu0
      %v1141 = vpop.f32.mrf.mxu0
      %v1142 = vadd.f32 0.0, %v1141
      %v1143 = vpop.f32.mrf.mxu0
      %1144 = vmatprep.mubr.bf16.mxu0 0
      %1145 = vmatmul.mubr.bf16.gmra.mxu0 %v777
      %v1146 = vpop.f32.mrf.mxu0
      %v1147 = vadd.f32 0.0, %v1146
      %v1148 = vpop.f32.mrf.mxu0
      %v1149 = vpop.f32.mrf.mxu0
      %v1150 = vadd.f32 0.0, %v1149
      %v1151 = vpop.f32.mrf.mxu0
      %1152 = vmatprep.mubr.bf16.mxu0 0
      %1153 = vmatmul.mubr.bf16.gmra.mxu0 %v780
      %v1154 = vpop.f32.mrf.mxu0
      %v1155 = vadd.f32 0.0, %v1154
      %v1156 = vpop.f32.mrf.mxu0
      %v1157 = vpop.f32.mrf.mxu0
      %v1158 = vadd.f32 0.0, %v1157
      %v1159 = vpop.f32.mrf.mxu0
      %1160 = vmatprep.mubr.bf16.mxu0 0
      %1161 = vmatmul.mubr.bf16.gmra.mxu0 %v783
      %v1162 = vpop.f32.mrf.mxu0
      %v1163 = vadd.f32 0.0, %v1162
      %v1164 = vpop.f32.mrf.mxu0
      %v1165 = vpop.f32.mrf.mxu0
      %v1166 = vadd.f32 0.0, %v1165
      %v1167 = vpop.f32.mrf.mxu0
      %1168 = vmatprep.mubr.bf16.mxu0 0
      %1169 = vmatmul.mubr.bf16.gmra.mxu0 %v786
      %v1170 = vpop.f32.mrf.mxu0
      %v1171 = vadd.f32 0.0, %v1170
      %v1172 = vpop.f32.mrf.mxu0
      %v1173 = vpop.f32.mrf.mxu0
      %v1174 = vadd.f32 0.0, %v1173
      %v1175 = vpop.f32.mrf.mxu0
      %1176 = vmatprep.mubr.bf16.mxu0 0
      %1177 = vmatmul.mubr.bf16.gmra.mxu0 %v789
      %v1178 = vpop.f32.mrf.mxu0
      %v1179 = vadd.f32 0.0, %v1178
      %v1180 = vpop.f32.mrf.mxu0
      %v1181 = vpop.f32.mrf.mxu0
      %v1182 = vadd.f32 0.0, %v1181
      %v1183 = vpop.f32.mrf.mxu0
      %1184 = vmatprep.mubr.bf16.mxu0 0
      %1185 = vmatmul.mubr.bf16.gmra.mxu0 %v792
      %v1186 = vpop.f32.mrf.mxu0
      %v1187 = vadd.f32 0.0, %v1186
      %v1188 = vpop.f32.mrf.mxu0
      %v1189 = vpop.f32.mrf.mxu0
      %v1190 = vadd.f32 0.0, %v1189
      %v1191 = vpop.f32.mrf.mxu0
      %1192 = vmatprep.mubr.bf16.mxu0 0
      %1193 = vmatmul.mubr.bf16.gmra.mxu0 %v795
      %v1194 = vpop.f32.mrf.mxu0
      %v1195 = vadd.f32 0.0, %v1194
      %v1196 = vpop.f32.mrf.mxu0
      %v1197 = vpop.f32.mrf.mxu0
      %v1198 = vadd.f32 0.0, %v1197
      %v1199 = vpop.f32.mrf.mxu0
      %1200 = vmatprep.mubr.bf16.mxu0 0
      %1201 = vmatmul.mubr.bf16.gmra.mxu0 %v798
      %v1202 = vpop.f32.mrf.mxu0
      %v1203 = vadd.f32 0.0, %v1202
      %v1204 = vpop.f32.mrf.mxu0
      %v1205 = vpop.f32.mrf.mxu0
      %v1206 = vadd.f32 0.0, %v1205
      %v1207 = vpop.f32.mrf.mxu0
      %1208 = vmatprep.mubr.bf16.mxu0 0
      %1209 = vmatmul.mubr.bf16.gmra.mxu0 %v801
      %v1210 = vpop.f32.mrf.mxu0
      %v1211 = vadd.f32 0.0, %v1210
      %v1212 = vpop.f32.mrf.mxu0
      %v1213 = vpop.f32.mrf.mxu0
      %v1214 = vadd.f32 0.0, %v1213
      %v1215 = vpop.f32.mrf.mxu0
      %1216 = vmatprep.mubr.bf16.mxu0 0
      %1217 = vmatmul.mubr.bf16.gmra.mxu0 %v804
      %v1218 = vpop.f32.mrf.mxu0
      %v1219 = vadd.f32 0.0, %v1218
      %v1220 = vpop.f32.mrf.mxu0
      %v1221 = vpop.f32.mrf.mxu0
      %v1222 = vadd.f32 0.0, %v1221
      %v1223 = vpop.f32.mrf.mxu0
      %1224 = vmatprep.mubr.bf16.mxu0 0
      %1225 = vmatmul.mubr.bf16.gmra.mxu0 %v807
      %v1226 = vpop.f32.mrf.mxu0
      %v1227 = vadd.f32 0.0, %v1226
      %v1228 = vpop.f32.mrf.mxu0
      %v1229 = vpop.f32.mrf.mxu0
      %v1230 = vadd.f32 0.0, %v1229
      %v1231 = vpop.f32.mrf.mxu0
      %1232 = vmatprep.mubr.bf16.mxu0 0
      %1233 = vmatmul.mubr.bf16.gmra.mxu0 %v810
      %v1234 = vpop.f32.mrf.mxu0
      %v1235 = vadd.f32 0.0, %v1234
      %v1236 = vpop.f32.mrf.mxu0
      %v1237 = vpop.f32.mrf.mxu0
      %v1238 = vadd.f32 0.0, %v1237
      %v1239 = vpop.f32.mrf.mxu0
      %1240 = vmatprep.mubr.bf16.mxu0 0
      %1241 = vmatmul.mubr.bf16.gmra.mxu0 %v813
      %v1242 = vpop.f32.mrf.mxu0
      %v1243 = vadd.f32 0.0, %v1242
      %v1244 = vpop.f32.mrf.mxu0
      %v1245 = vpop.f32.mrf.mxu0
      %v1246 = vadd.f32 0.0, %v1245
      %v1247 = vpop.f32.mrf.mxu0
      %1248 = vmatprep.mubr.bf16.mxu0 0
      %1249 = vmatmul.mubr.bf16.gmra.mxu0 %v816
      %v1250 = vpop.f32.mrf.mxu0
      %v1251 = vadd.f32 0.0, %v1250
      %v1252 = vpop.f32.mrf.mxu0
      %v1253 = vpop.f32.mrf.mxu0
      %v1254 = vadd.f32 0.0, %v1253
      %v1255 = vpop.f32.mrf.mxu0
      %1256 = vmatprep.mubr.bf16.mxu0 0
      %1257 = vmatmul.mubr.bf16.gmra.mxu0 %v819
      %v1258 = vpop.f32.mrf.mxu0
      %v1259 = vadd.f32 0.0, %v1258
      %v1260 = vpop.f32.mrf.mxu0
      %v1261 = vpop.f32.mrf.mxu0
      %v1262 = vadd.f32 0.0, %v1261
      %v1263 = vpop.f32.mrf.mxu0
      %1264 = vmatprep.mubr.bf16.mxu0 0
      %1265 = vmatmul.mubr.bf16.gmra.mxu0 %v822
      %v1266 = vpop.f32.mrf.mxu0
      %v1267 = vadd.f32 0.0, %v1266
      %v1268 = vpop.f32.mrf.mxu0
      %v1269 = vpop.f32.mrf.mxu0
      %v1270 = vadd.f32 0.0, %v1269
      %v1271 = vpop.f32.mrf.mxu0
      %1272 = vmatprep.mubr.bf16.mxu0 0
      %1273 = vmatmul.mubr.bf16.gmra.mxu0 %v825
      %v1274 = vpop.f32.mrf.mxu0
      %v1275 = vadd.f32 0.0, %v1274
      %v1276 = vpop.f32.mrf.mxu0
      %v1277 = vpop.f32.mrf.mxu0
      %v1278 = vadd.f32 0.0, %v1277
      %v1279 = vpop.f32.mrf.mxu0
      %1280 = vmatprep.mubr.bf16.mxu0 0
      %1281 = vmatmul.mubr.bf16.gmra.mxu0 %v828
      %v1282 = vpop.f32.mrf.mxu0
      %v1283 = vadd.f32 0.0, %v1282
      %v1284 = vpop.f32.mrf.mxu0
      %v1285 = vpop.f32.mrf.mxu0
      %v1286 = vadd.f32 0.0, %v1285
      %v1287 = vpop.f32.mrf.mxu0
      %1288 = vmatprep.mubr.bf16.mxu0 0
      %1289 = vmatmul.mubr.bf16.gmra.mxu0 %v831
      %v1290 = vpop.f32.mrf.mxu0
      %v1291 = vadd.f32 0.0, %v1290
      %v1292 = vpop.f32.mrf.mxu0
      %v1293 = vpop.f32.mrf.mxu0
      %v1294 = vadd.f32 0.0, %v1293
      %v1295 = vpop.f32.mrf.mxu0
      %1296 = vmatprep.mubr.bf16.mxu0 0
      %1297 = vmatmul.mubr.bf16.gmra.mxu0 %v834
      %v1298 = vpop.f32.mrf.mxu0
      %v1299 = vadd.f32 0.0, %v1298
      %v1300 = vpop.f32.mrf.mxu0
      %v1301 = vpop.f32.mrf.mxu0
      %v1302 = vadd.f32 0.0, %v1301
      %v1303 = vpop.f32.mrf.mxu0
      %1304 = vmatprep.mubr.bf16.mxu0 0
      %1305 = vmatmul.mubr.bf16.gmra.mxu0 %v837
      %v1306 = vpop.f32.mrf.mxu0
      %v1307 = vadd.f32 0.0, %v1306
      %v1308 = vpop.f32.mrf.mxu0
      %v1309 = vpop.f32.mrf.mxu0
      %v1310 = vadd.f32 0.0, %v1309
      %v1311 = vpop.f32.mrf.mxu0
      %1312 = vmatprep.mubr.bf16.mxu0 0
      %1313 = vmatmul.mubr.bf16.gmra.mxu0 %v840
      %v1314 = vpop.f32.mrf.mxu0
      %v1315 = vadd.f32 0.0, %v1314
      %v1316 = vpop.f32.mrf.mxu0
      %v1317 = vpop.f32.mrf.mxu0
      %v1318 = vadd.f32 0.0, %v1317
      %v1319 = vpop.f32.mrf.mxu0
      %1320 = vmatprep.mubr.bf16.mxu0 0
      %1321 = vmatmul.mubr.bf16.gmra.mxu0 %v843
      %v1322 = vpop.f32.mrf.mxu0
      %v1323 = vadd.f32 0.0, %v1322
      %v1324 = vpop.f32.mrf.mxu0
      %v1325 = vpop.f32.mrf.mxu0
      %v1326 = vadd.f32 0.0, %v1325
      %v1327 = vpop.f32.mrf.mxu0
      %1328 = vmatprep.mubr.bf16.mxu0 0
      %1329 = vmatmul.mubr.bf16.gmra.mxu0 %v846
      %v1330 = vpop.f32.mrf.mxu0
      %v1331 = vadd.f32 0.0, %v1330
      %v1332 = vpop.f32.mrf.mxu0
      %v1333 = vpop.f32.mrf.mxu0
      %v1334 = vadd.f32 0.0, %v1333
      %v1335 = vpop.f32.mrf.mxu0
      %1336 = vmatprep.mubr.bf16.mxu0 0
      %1337 = vmatmul.mubr.bf16.gmra.mxu0 %v849
      %v1338 = vpop.f32.mrf.mxu0
      %v1339 = vadd.f32 0.0, %v1338
      %v1340 = vpop.f32.mrf.mxu0
      %v1341 = vpop.f32.mrf.mxu0
      %v1342 = vadd.f32 0.0, %v1341
      %v1343 = vpop.f32.mrf.mxu0
      %1344 = vmatprep.mubr.bf16.mxu0 0
      %1345 = vmatmul.mubr.bf16.gmra.mxu0 %v852
      %v1346 = vpop.f32.mrf.mxu0
      %v1347 = vadd.f32 0.0, %v1346
      %v1348 = vpop.f32.mrf.mxu0
      %v1349 = vpop.f32.mrf.mxu0
      %v1350 = vadd.f32 0.0, %v1349
      %v1351 = vpop.f32.mrf.mxu0
      %1352 = vmatprep.mubr.bf16.mxu0 0
      %1353 = vmatmul.mubr.bf16.gmra.mxu0 %v855
      %v1354 = vpop.f32.mrf.mxu0
      %v1355 = vadd.f32 0.0, %v1354
      %v1356 = vpop.f32.mrf.mxu0
      %v1357 = vpop.f32.mrf.mxu0
      %v1358 = vadd.f32 0.0, %v1357
      %v1359 = vpop.f32.mrf.mxu0
      %1360 = vmatprep.mubr.bf16.mxu0 0
      %1361 = vmatmul.mubr.bf16.gmra.mxu0 %v858
      %v1362 = vpop.f32.mrf.mxu0
      %v1363 = vadd.f32 0.0, %v1362
      %v1364 = vpop.f32.mrf.mxu0
      %v1365 = vpop.f32.mrf.mxu0
      %v1366 = vadd.f32 0.0, %v1365
      %v1367 = vpop.f32.mrf.mxu0
      %1368 = vmatprep.mubr.bf16.mxu0 0
      %1369 = vmatmul.mubr.bf16.gmra.mxu0 %v861
      %v1370 = vpop.f32.mrf.mxu0
      %v1371 = vadd.f32 0.0, %v1370
      %v1372 = vpop.f32.mrf.mxu0
      %v1373 = vpop.f32.mrf.mxu0
      %v1374 = vadd.f32 0.0, %v1373
      %v1375 = vpop.f32.mrf.mxu0
      %1376 = vmatprep.mubr.bf16.mxu0 0
      %1377 = vmatmul.mubr.bf16.gmra.mxu0 %v864
      %v1378 = vpop.f32.mrf.mxu0
      %v1379 = vadd.f32 0.0, %v1378
      %v1380 = vpop.f32.mrf.mxu0
      %v1381 = vpop.f32.mrf.mxu0
      %v1382 = vadd.f32 0.0, %v1381
      %v1383 = vpop.f32.mrf.mxu0
      %1384 = vmatprep.mubr.bf16.mxu0 0
      %1385 = vmatmul.mubr.bf16.gmra.mxu0 %v867
      %v1386 = vpop.f32.mrf.mxu0
      %v1387 = vadd.f32 0.0, %v1386
      %v1388 = vpop.f32.mrf.mxu0
      %v1389 = vpop.f32.mrf.mxu0
      %v1390 = vadd.f32 0.0, %v1389
      %v1391 = vpop.f32.mrf.mxu0
      %1392 = vmatprep.mubr.bf16.mxu0 0
      %1393 = vmatmul.mubr.bf16.gmra.mxu0 %v870
      %v1394 = vpop.f32.mrf.mxu0
      %v1395 = vadd.f32 0.0, %v1394
      %v1396 = vpop.f32.mrf.mxu0
      %v1397 = vpop.f32.mrf.mxu0
      %v1398 = vadd.f32 0.0, %v1397
      %v1399 = vpop.f32.mrf.mxu0
      %1400 = vmatprep.mubr.bf16.mxu0 0
      %1401 = vmatmul.mubr.bf16.gmra.mxu0 %v873
      %v1402 = vpop.f32.mrf.mxu0
      %v1403 = vadd.f32 0.0, %v1402
      %v1404 = vpop.f32.mrf.mxu0
      %v1405 = vpop.f32.mrf.mxu0
      %v1406 = vadd.f32 0.0, %v1405
      %v1407 = vpop.f32.mrf.mxu0
      %1408 = vmatprep.mubr.bf16.mxu0 0
      %1409 = vmatmul.mubr.bf16.gmra.mxu0 %v876
      %v1410 = vpop.f32.mrf.mxu0
      %v1411 = vadd.f32 0.0, %v1410
      %v1412 = vpop.f32.mrf.mxu0
      %v1413 = vpop.f32.mrf.mxu0
      %v1414 = vadd.f32 0.0, %v1413
      %v1415 = vpop.f32.mrf.mxu0
      %1416 = vmatprep.mubr.bf16.mxu0 0
      %1417 = vmatmul.mubr.bf16.gmra.mxu0 %v879
      %v1418 = vpop.f32.mrf.mxu0
      %v1419 = vadd.f32 0.0, %v1418
      %v1420 = vpop.f32.mrf.mxu0
      %v1421 = vpop.f32.mrf.mxu0
      %v1422 = vadd.f32 0.0, %v1421
      %v1423 = vpop.f32.mrf.mxu0
      %1424 = vmatprep.mubr.bf16.mxu0 0
      %1425 = vmatmul.mubr.bf16.gmra.mxu0 %v882
      %v1426 = vpop.f32.mrf.mxu0
      %v1427 = vadd.f32 0.0, %v1426
      %v1428 = vpop.f32.mrf.mxu0
      %v1429 = vpop.f32.mrf.mxu0
      %v1430 = vadd.f32 0.0, %v1429
      %v1431 = vpop.f32.mrf.mxu0
      %1432 = vdwg.mxu0
      %1433 = vst [vmem:[%s212] sm:$0xff] %v923
      %1434 = vst [vmem:[%s212 + $0x8] sm:$0xff] %v926
      %1435 = vst [vmem:[%s212 + $0x10] sm:$0xff] %v931
      %1436 = vst [vmem:[%s212 + $0x18] sm:$0xff] %v934
      %1437 = vst [vmem:[%s212 + $0x20] sm:$0xff] %v939
      %1438 = vst [vmem:[%s212 + $0x28] sm:$0xff] %v942
      %1439 = vst [vmem:[%s212 + $0x30] sm:$0xff] %v947
      %1440 = vst [vmem:[%s212 + $0x38] sm:$0xff] %v950
      %1441 = vst [vmem:[%s212 + $0x40] sm:$0xff] %v955
      %1442 = vst [vmem:[%s212 + $0x48] sm:$0xff] %v958
      %1443 = vst [vmem:[%s212 + $0x50] sm:$0xff] %v963
      %1444 = vst [vmem:[%s212 + $0x58] sm:$0xff] %v966
      %1445 = vst [vmem:[%s212 + $0x60] sm:$0xff] %v971
      %1446 = vst [vmem:[%s212 + $0x68] sm:$0xff] %v974
      %1447 = vst [vmem:[%s212 + $0x70] sm:$0xff] %v979
      %1448 = vst [vmem:[%s212 + $0x78] sm:$0xff] %v982
      %1449 = vst [vmem:[%s212 + $0x80] sm:$0xff] %v987
      %1450 = vst [vmem:[%s212 + $0x88] sm:$0xff] %v990
      %1451 = vst [vmem:[%s212 + $0x90] sm:$0xff] %v995
      %1452 = vst [vmem:[%s212 + $0x98] sm:$0xff] %v998
      %1453 = vst [vmem:[%s212 + $0xa0] sm:$0xff] %v1003
      %1454 = vst [vmem:[%s212 + $0xa8] sm:$0xff] %v1006
      %1455 = vst [vmem:[%s212 + $0xb0] sm:$0xff] %v1011
      %1456 = vst [vmem:[%s212 + $0xb8] sm:$0xff] %v1014
      %1457 = vst [vmem:[%s212 + $0xc0] sm:$0xff] %v1019
      %1458 = vst [vmem:[%s212 + $0xc8] sm:$0xff] %v1022
      %1459 = vst [vmem:[%s212 + $0xd0] sm:$0xff] %v1027
      %1460 = vst [vmem:[%s212 + $0xd8] sm:$0xff] %v1030
      %1461 = vst [vmem:[%s212 + $0xe0] sm:$0xff] %v1035
      %1462 = vst [vmem:[%s212 + $0xe8] sm:$0xff] %v1038
      %1463 = vst [vmem:[%s212 + $0xf0] sm:$0xff] %v1043
      %1464 = vst [vmem:[%s212 + $0xf8] sm:$0xff] %v1046
      %1465 = vst [vmem:[%s212 + $0x100] sm:$0xff] %v1051
      %1466 = vst [vmem:[%s212 + $0x108] sm:$0xff] %v1054
      %1467 = vst [vmem:[%s212 + $0x110] sm:$0xff] %v1059
      %1468 = vst [vmem:[%s212 + $0x118] sm:$0xff] %v1062
      %1469 = vst [vmem:[%s212 + $0x120] sm:$0xff] %v1067
      %1470 = vst [vmem:[%s212 + $0x128] sm:$0xff] %v1070
      %1471 = vst [vmem:[%s212 + $0x130] sm:$0xff] %v1075
      %1472 = vst [vmem:[%s212 + $0x138] sm:$0xff] %v1078
      %1473 = vst [vmem:[%s212 + $0x140] sm:$0xff] %v1083
      %1474 = vst [vmem:[%s212 + $0x148] sm:$0xff] %v1086
      %1475 = vst [vmem:[%s212 + $0x150] sm:$0xff] %v1091
      %1476 = vst [vmem:[%s212 + $0x158] sm:$0xff] %v1094
      %1477 = vst [vmem:[%s212 + $0x160] sm:$0xff] %v1099
      %1478 = vst [vmem:[%s212 + $0x168] sm:$0xff] %v1102
      %1479 = vst [vmem:[%s212 + $0x170] sm:$0xff] %v1107
      %1480 = vst [vmem:[%s212 + $0x178] sm:$0xff] %v1110
      %1481 = vst [vmem:[%s212 + $0x180] sm:$0xff] %v1115
      %1482 = vst [vmem:[%s212 + $0x188] sm:$0xff] %v1118
      %1483 = vst [vmem:[%s212 + $0x190] sm:$0xff] %v1123
      %1484 = vst [vmem:[%s212 + $0x198] sm:$0xff] %v1126
      %1485 = vst [vmem:[%s212 + $0x1a0] sm:$0xff] %v1131
      %1486 = vst [vmem:[%s212 + $0x1a8] sm:$0xff] %v1134
      %1487 = vst [vmem:[%s212 + $0x1b0] sm:$0xff] %v1139
      %1488 = vst [vmem:[%s212 + $0x1b8] sm:$0xff] %v1142
      %1489 = vst [vmem:[%s212 + $0x1c0] sm:$0xff] %v1147
      %1490 = vst [vmem:[%s212 + $0x1c8] sm:$0xff] %v1150
      %1491 = vst [vmem:[%s212 + $0x1d0] sm:$0xff] %v1155
      %1492 = vst [vmem:[%s212 + $0x1d8] sm:$0xff] %v1158
      %1493 = vst [vmem:[%s212 + $0x1e0] sm:$0xff] %v1163
      %1494 = vst [vmem:[%s212 + $0x1e8] sm:$0xff] %v1166
      %1495 = vst [vmem:[%s212 + $0x1f0] sm:$0xff] %v1171
      %1496 = vst [vmem:[%s212 + $0x1f8] sm:$0xff] %v1174
      %1497 = vst [vmem:[%s212 + $0x200] sm:$0xff] %v1179
      %1498 = vst [vmem:[%s212 + $0x208] sm:$0xff] %v1182
      %1499 = vst [vmem:[%s212 + $0x210] sm:$0xff] %v1187
      %1500 = vst [vmem:[%s212 + $0x218] sm:$0xff] %v1190
      %1501 = vst [vmem:[%s212 + $0x220] sm:$0xff] %v1195
      %1502 = vst [vmem:[%s212 + $0x228] sm:$0xff] %v1198
      %1503 = vst [vmem:[%s212 + $0x230] sm:$0xff] %v1203
      %1504 = vst [vmem:[%s212 + $0x238] sm:$0xff] %v1206
      %1505 = vst [vmem:[%s212 + $0x240] sm:$0xff] %v1211
      %1506 = vst [vmem:[%s212 + $0x248] sm:$0xff] %v1214
      %1507 = vst [vmem:[%s212 + $0x250] sm:$0xff] %v1219
      %1508 = vst [vmem:[%s212 + $0x258] sm:$0xff] %v1222
      %1509 = vst [vmem:[%s212 + $0x260] sm:$0xff] %v1227
      %1510 = vst [vmem:[%s212 + $0x268] sm:$0xff] %v1230
      %1511 = vst [vmem:[%s212 + $0x270] sm:$0xff] %v1235
      %1512 = vst [vmem:[%s212 + $0x278] sm:$0xff] %v1238
      %1513 = vst [vmem:[%s212 + $0x280] sm:$0xff] %v1243
      %1514 = vst [vmem:[%s212 + $0x288] sm:$0xff] %v1246
      %1515 = vst [vmem:[%s212 + $0x290] sm:$0xff] %v1251
      %1516 = vst [vmem:[%s212 + $0x298] sm:$0xff] %v1254
      %1517 = vst [vmem:[%s212 + $0x2a0] sm:$0xff] %v1259
      %1518 = vst [vmem:[%s212 + $0x2a8] sm:$0xff] %v1262
      %1519 = vst [vmem:[%s212 + $0x2b0] sm:$0xff] %v1267
      %1520 = vst [vmem:[%s212 + $0x2b8] sm:$0xff] %v1270
      %1521 = vst [vmem:[%s212 + $0x2c0] sm:$0xff] %v1275
      %1522 = vst [vmem:[%s212 + $0x2c8] sm:$0xff] %v1278
      %1523 = vst [vmem:[%s212 + $0x2d0] sm:$0xff] %v1283
      %1524 = vst [vmem:[%s212 + $0x2d8] sm:$0xff] %v1286
      %1525 = vst [vmem:[%s212 + $0x2e0] sm:$0xff] %v1291
      %1526 = vst [vmem:[%s212 + $0x2e8] sm:$0xff] %v1294
      %1527 = vst [vmem:[%s212 + $0x2f0] sm:$0xff] %v1299
      %1528 = vst [vmem:[%s212 + $0x2f8] sm:$0xff] %v1302
      %1529 = vst [vmem:[%s212 + $0x300] sm:$0xff] %v1307
      %1530 = vst [vmem:[%s212 + $0x308] sm:$0xff] %v1310
      %1531 = vst [vmem:[%s212 + $0x310] sm:$0xff] %v1315
      %1532 = vst [vmem:[%s212 + $0x318] sm:$0xff] %v1318
      %1533 = vst [vmem:[%s212 + $0x320] sm:$0xff] %v1323
      %1534 = vst [vmem:[%s212 + $0x328] sm:$0xff] %v1326
      %1535 = vst [vmem:[%s212 + $0x330] sm:$0xff] %v1331
      %1536 = vst [vmem:[%s212 + $0x338] sm:$0xff] %v1334
      %1537 = vst [vmem:[%s212 + $0x340] sm:$0xff] %v1339
      %1538 = vst [vmem:[%s212 + $0x348] sm:$0xff] %v1342
      %1539 = vst [vmem:[%s212 + $0x350] sm:$0xff] %v1347
      %1540 = vst [vmem:[%s212 + $0x358] sm:$0xff] %v1350
      %1541 = vst [vmem:[%s212 + $0x360] sm:$0xff] %v1355
      %1542 = vst [vmem:[%s212 + $0x368] sm:$0xff] %v1358
      %1543 = vst [vmem:[%s212 + $0x370] sm:$0xff] %v1363
      %1544 = vst [vmem:[%s212 + $0x378] sm:$0xff] %v1366
      %1545 = vst [vmem:[%s212 + $0x380] sm:$0xff] %v1371
      %1546 = vst [vmem:[%s212 + $0x388] sm:$0xff] %v1374
      %1547 = vst [vmem:[%s212 + $0x390] sm:$0xff] %v1379
      %1548 = vst [vmem:[%s212 + $0x398] sm:$0xff] %v1382
      %1549 = vst [vmem:[%s212 + $0x3a0] sm:$0xff] %v1387
      %1550 = vst [vmem:[%s212 + $0x3a8] sm:$0xff] %v1390
      %1551 = vst [vmem:[%s212 + $0x3b0] sm:$0xff] %v1395
      %1552 = vst [vmem:[%s212 + $0x3b8] sm:$0xff] %v1398
      %1553 = vst [vmem:[%s212 + $0x3c0] sm:$0xff] %v1403
      %1554 = vst [vmem:[%s212 + $0x3c8] sm:$0xff] %v1406
      %1555 = vst [vmem:[%s212 + $0x3d0] sm:$0xff] %v1411
      %1556 = vst [vmem:[%s212 + $0x3d8] sm:$0xff] %v1414
      %1557 = vst [vmem:[%s212 + $0x3e0] sm:$0xff] %v1419
      %1558 = vst [vmem:[%s212 + $0x3e8] sm:$0xff] %v1422
      %1559 = vst [vmem:[%s212 + $0x3f0] sm:$0xff] %v1427
      %1560 = vst [vmem:[%s212 + $0x3f8] sm:$0xff] %v1430
      %v1561 = vadd.f32 %v923, %v926
      %v1562 = vadd.f32 %v1561, %v931
      %v1563 = vadd.f32 %v1562, %v934
      %v1564 = vadd.f32 %v1563, %v939
      %v1565 = vadd.f32 %v1564, %v942
      %v1566 = vadd.f32 %v1565, %v947
      %v1567 = vadd.f32 %v1566, %v950
      %v1568 = vadd.f32 %v1567, %v955
      %v1569 = vadd.f32 %v1568, %v958
      %v1570 = vadd.f32 %v1569, %v963
      %v1571 = vadd.f32 %v1570, %v966
      %v1572 = vadd.f32 %v1571, %v971
      %v1573 = vadd.f32 %v1572, %v974
      %v1574 = vadd.f32 %v1573, %v979
      %v1575 = vadd.f32 %v1574, %v982
      %v1576 = vadd.f32 %v1575, %v987
      %v1577 = vadd.f32 %v1576, %v990
      %v1578 = vadd.f32 %v1577, %v995
      %v1579 = vadd.f32 %v1578, %v998
      %v1580 = vadd.f32 %v1579, %v1003
      %v1581 = vadd.f32 %v1580, %v1006
      %v1582 = vadd.f32 %v1581, %v1011
      %v1583 = vadd.f32 %v1582, %v1014
      %v1584 = vadd.f32 %v1583, %v1019
      %v1585 = vadd.f32 %v1584, %v1022
      %v1586 = vadd.f32 %v1585, %v1027
      %v1587 = vadd.f32 %v1586, %v1030
      %v1588 = vadd.f32 %v1587, %v1035
      %v1589 = vadd.f32 %v1588, %v1038
      %v1590 = vadd.f32 %v1589, %v1043
      %v1591 = vadd.f32 %v1590, %v1046
      %v1592 = vadd.f32 %v1591, %v1051
      %v1593 = vadd.f32 %v1592, %v1054
      %v1594 = vadd.f32 %v1593, %v1059
      %v1595 = vadd.f32 %v1594, %v1062
      %v1596 = vadd.f32 %v1595, %v1067
      %v1597 = vadd.f32 %v1596, %v1070
      %v1598 = vadd.f32 %v1597, %v1075
      %v1599 = vadd.f32 %v1598, %v1078
      %v1600 = vadd.f32 %v1599, %v1083
      %v1601 = vadd.f32 %v1600, %v1086
      %v1602 = vadd.f32 %v1601, %v1091
      %v1603 = vadd.f32 %v1602, %v1094
      %v1604 = vadd.f32 %v1603, %v1099
      %v1605 = vadd.f32 %v1604, %v1102
      %v1606 = vadd.f32 %v1605, %v1107
      %v1607 = vadd.f32 %v1606, %v1110
      %v1608 = vadd.f32 %v1607, %v1115
      %v1609 = vadd.f32 %v1608, %v1118
      %v1610 = vadd.f32 %v1609, %v1123
      %v1611 = vadd.f32 %v1610, %v1126
      %v1612 = vadd.f32 %v1611, %v1131
      %v1613 = vadd.f32 %v1612, %v1134
      %v1614 = vadd.f32 %v1613, %v1139
      %v1615 = vadd.f32 %v1614, %v1142
      %v1616 = vadd.f32 %v1615, %v1147
      %v1617 = vadd.f32 %v1616, %v1150
      %v1618 = vadd.f32 %v1617, %v1155
      %v1619 = vadd.f32 %v1618, %v1158
      %v1620 = vadd.f32 %v1619, %v1163
      %v1621 = vadd.f32 %v1620, %v1166
      %v1622 = vadd.f32 %v1621, %v1171
      %v1623 = vadd.f32 %v1622, %v1174
      %v1624 = vadd.f32 %v1623, %v1179
      %v1625 = vadd.f32 %v1624, %v1182
      %v1626 = vadd.f32 %v1625, %v1187
      %v1627 = vadd.f32 %v1626, %v1190
      %v1628 = vadd.f32 %v1627, %v1195
      %v1629 = vadd.f32 %v1628, %v1198
      %v1630 = vadd.f32 %v1629, %v1203
      %v1631 = vadd.f32 %v1630, %v1206
      %v1632 = vadd.f32 %v1631, %v1211
      %v1633 = vadd.f32 %v1632, %v1214
      %v1634 = vadd.f32 %v1633, %v1219
      %v1635 = vadd.f32 %v1634, %v1222
      %v1636 = vadd.f32 %v1635, %v1227
      %v1637 = vadd.f32 %v1636, %v1230
      %v1638 = vadd.f32 %v1637, %v1235
      %v1639 = vadd.f32 %v1638, %v1238
      %v1640 = vadd.f32 %v1639, %v1243
      %v1641 = vadd.f32 %v1640, %v1246
      %v1642 = vadd.f32 %v1641, %v1251
      %v1643 = vadd.f32 %v1642, %v1254
      %v1644 = vadd.f32 %v1643, %v1259
      %v1645 = vadd.f32 %v1644, %v1262
      %v1646 = vadd.f32 %v1645, %v1267
      %v1647 = vadd.f32 %v1646, %v1270
      %v1648 = vadd.f32 %v1647, %v1275
      %v1649 = vadd.f32 %v1648, %v1278
      %v1650 = vadd.f32 %v1649, %v1283
      %v1651 = vadd.f32 %v1650, %v1286
      %v1652 = vadd.f32 %v1651, %v1291
      %v1653 = vadd.f32 %v1652, %v1294
      %v1654 = vadd.f32 %v1653, %v1299
      %v1655 = vadd.f32 %v1654, %v1302
      %v1656 = vadd.f32 %v1655, %v1307
      %v1657 = vadd.f32 %v1656, %v1310
      %v1658 = vadd.f32 %v1657, %v1315
      %v1659 = vadd.f32 %v1658, %v1318
      %v1660 = vadd.f32 %v1659, %v1323
      %v1661 = vadd.f32 %v1660, %v1326
      %v1662 = vadd.f32 %v1661, %v1331
      %v1663 = vadd.f32 %v1662, %v1334
      %v1664 = vadd.f32 %v1663, %v1339
      %v1665 = vadd.f32 %v1664, %v1342
      %v1666 = vadd.f32 %v1665, %v1347
      %v1667 = vadd.f32 %v1666, %v1350
      %v1668 = vadd.f32 %v1667, %v1355
      %v1669 = vadd.f32 %v1668, %v1358
      %v1670 = vadd.f32 %v1669, %v1363
      %v1671 = vadd.f32 %v1670, %v1366
      %v1672 = vadd.f32 %v1671, %v1371
      %v1673 = vadd.f32 %v1672, %v1374
      %v1674 = vadd.f32 %v1673, %v1379
      %v1675 = vadd.f32 %v1674, %v1382
      %v1676 = vadd.f32 %v1675, %v1387
      %v1677 = vadd.f32 %v1676, %v1390
      %v1678 = vadd.f32 %v1677, %v1395
      %v1679 = vadd.f32 %v1678, %v1398
      %v1680 = vadd.f32 %v1679, %v1403
      %v1681 = vadd.f32 %v1680, %v1406
      %v1682 = vadd.f32 %v1681, %v1411
      %v1683 = vadd.f32 %v1682, %v1414
      %v1684 = vadd.f32 %v1683, %v1419
      %v1685 = vadd.f32 %v1684, %v1422
      %v1686 = vadd.f32 %v1685, %v1427
      %v1687 = vadd.f32 %v1686, %v1430
      %v1688 = vrot.slane %v1687, 4
      %v1689 = vadd.f32 %v1687, %v1688
      %v1690 = vrot.slane %v1689, 2
      %v1691 = vadd.f32 %v1689, %v1690
      %v1692 = vrot.slane %v1691, 1
      %v1693 = vadd.f32 %v1691, %v1692
      %v1694 = vmul.f32 %v923, %v923
      %v1695 = vmul.f32 %v926, %v926
      %v1696 = vmul.f32 %v931, %v931
      %v1697 = vmul.f32 %v934, %v934
      %v1698 = vmul.f32 %v939, %v939
      %v1699 = vmul.f32 %v942, %v942
      %v1700 = vmul.f32 %v947, %v947
      %v1701 = vmul.f32 %v950, %v950
      %v1702 = vmul.f32 %v955, %v955
      %v1703 = vmul.f32 %v958, %v958
      %v1704 = vmul.f32 %v963, %v963
      %v1705 = vmul.f32 %v966, %v966
      %v1706 = vmul.f32 %v971, %v971
      %v1707 = vmul.f32 %v974, %v974
      %v1708 = vmul.f32 %v979, %v979
      %v1709 = vmul.f32 %v982, %v982
      %v1710 = vmul.f32 %v987, %v987
      %v1711 = vmul.f32 %v990, %v990
      %v1712 = vmul.f32 %v995, %v995
      %v1713 = vmul.f32 %v998, %v998
      %v1714 = vmul.f32 %v1003, %v1003
      %v1715 = vmul.f32 %v1006, %v1006
      %v1716 = vmul.f32 %v1011, %v1011
      %v1717 = vmul.f32 %v1014, %v1014
      %v1718 = vmul.f32 %v1019, %v1019
      %v1719 = vmul.f32 %v1022, %v1022
      %v1720 = vmul.f32 %v1027, %v1027
      %v1721 = vmul.f32 %v1030, %v1030
      %v1722 = vmul.f32 %v1035, %v1035
      %v1723 = vmul.f32 %v1038, %v1038
      %v1724 = vmul.f32 %v1043, %v1043
      %v1725 = vmul.f32 %v1046, %v1046
      %v1726 = vmul.f32 %v1051, %v1051
      %v1727 = vmul.f32 %v1054, %v1054
      %v1728 = vmul.f32 %v1059, %v1059
      %v1729 = vmul.f32 %v1062, %v1062
      %v1730 = vmul.f32 %v1067, %v1067
      %v1731 = vmul.f32 %v1070, %v1070
      %v1732 = vmul.f32 %v1075, %v1075
      %v1733 = vmul.f32 %v1078, %v1078
      %v1734 = vmul.f32 %v1083, %v1083
      %v1735 = vmul.f32 %v1086, %v1086
      %v1736 = vmul.f32 %v1091, %v1091
      %v1737 = vmul.f32 %v1094, %v1094
      %v1738 = vmul.f32 %v1099, %v1099
      %v1739 = vmul.f32 %v1102, %v1102
      %v1740 = vmul.f32 %v1107, %v1107
      %v1741 = vmul.f32 %v1110, %v1110
      %v1742 = vmul.f32 %v1115, %v1115
      %v1743 = vmul.f32 %v1118, %v1118
      %v1744 = vmul.f32 %v1123, %v1123
      %v1745 = vmul.f32 %v1126, %v1126
      %v1746 = vmul.f32 %v1131, %v1131
      %v1747 = vmul.f32 %v1134, %v1134
      %v1748 = vmul.f32 %v1139, %v1139
      %v1749 = vmul.f32 %v1142, %v1142
      %v1750 = vmul.f32 %v1147, %v1147
      %v1751 = vmul.f32 %v1150, %v1150
      %v1752 = vmul.f32 %v1155, %v1155
      %v1753 = vmul.f32 %v1158, %v1158
      %v1754 = vmul.f32 %v1163, %v1163
      %v1755 = vmul.f32 %v1166, %v1166
      %v1756 = vmul.f32 %v1171, %v1171
      %v1757 = vmul.f32 %v1174, %v1174
      %v1758 = vmul.f32 %v1179, %v1179
      %v1759 = vmul.f32 %v1182, %v1182
      %v1760 = vmul.f32 %v1187, %v1187
      %v1761 = vmul.f32 %v1190, %v1190
      %v1762 = vmul.f32 %v1195, %v1195
      %v1763 = vmul.f32 %v1198, %v1198
      %v1764 = vmul.f32 %v1203, %v1203
      %v1765 = vmul.f32 %v1206, %v1206
      %v1766 = vmul.f32 %v1211, %v1211
      %v1767 = vmul.f32 %v1214, %v1214
      %v1768 = vmul.f32 %v1219, %v1219
      %v1769 = vmul.f32 %v1222, %v1222
      %v1770 = vmul.f32 %v1227, %v1227
      %v1771 = vmul.f32 %v1230, %v1230
      %v1772 = vmul.f32 %v1235, %v1235
      %v1773 = vmul.f32 %v1238, %v1238
      %v1774 = vmul.f32 %v1243, %v1243
      %v1775 = vmul.f32 %v1246, %v1246
      %v1776 = vmul.f32 %v1251, %v1251
      %v1777 = vmul.f32 %v1254, %v1254
      %v1778 = vmul.f32 %v1259, %v1259
      %v1779 = vmul.f32 %v1262, %v1262
      %v1780 = vmul.f32 %v1267, %v1267
      %v1781 = vmul.f32 %v1270, %v1270
      %v1782 = vmul.f32 %v1275, %v1275
      %v1783 = vmul.f32 %v1278, %v1278
      %v1784 = vmul.f32 %v1283, %v1283
      %v1785 = vmul.f32 %v1286, %v1286
      %v1786 = vmul.f32 %v1291, %v1291
      %v1787 = vmul.f32 %v1294, %v1294
      %v1788 = vmul.f32 %v1299, %v1299
      %v1789 = vmul.f32 %v1302, %v1302
      %v1790 = vmul.f32 %v1307, %v1307
      %v1791 = vmul.f32 %v1310, %v1310
      %v1792 = vmul.f32 %v1315, %v1315
      %v1793 = vmul.f32 %v1318, %v1318
      %v1794 = vmul.f32 %v1323, %v1323
      %v1795 = vmul.f32 %v1326, %v1326
      %v1796 = vmul.f32 %v1331, %v1331
      %v1797 = vmul.f32 %v1334, %v1334
      %v1798 = vmul.f32 %v1339, %v1339
      %v1799 = vmul.f32 %v1342, %v1342
      %v1800 = vmul.f32 %v1347, %v1347
      %v1801 = vmul.f32 %v1350, %v1350
      %v1802 = vmul.f32 %v1355, %v1355
      %v1803 = vmul.f32 %v1358, %v1358
      %v1804 = vmul.f32 %v1363, %v1363
      %v1805 = vmul.f32 %v1366, %v1366
      %v1806 = vmul.f32 %v1371, %v1371
      %v1807 = vmul.f32 %v1374, %v1374
      %v1808 = vmul.f32 %v1379, %v1379
      %v1809 = vmul.f32 %v1382, %v1382
      %v1810 = vmul.f32 %v1387, %v1387
      %v1811 = vmul.f32 %v1390, %v1390
      %v1812 = vmul.f32 %v1395, %v1395
      %v1813 = vmul.f32 %v1398, %v1398
      %v1814 = vmul.f32 %v1403, %v1403
      %v1815 = vmul.f32 %v1406, %v1406
      %v1816 = vmul.f32 %v1411, %v1411
      %v1817 = vmul.f32 %v1414, %v1414
      %v1818 = vmul.f32 %v1419, %v1419
      %v1819 = vmul.f32 %v1422, %v1422
      %v1820 = vmul.f32 %v1427, %v1427
      %v1821 = vmul.f32 %v1430, %v1430
      %v1822 = vadd.f32 %v1694, %v1695
      %v1823 = vadd.f32 %v1822, %v1696
      %v1824 = vadd.f32 %v1823, %v1697
      %v1825 = vadd.f32 %v1824, %v1698
      %v1826 = vadd.f32 %v1825, %v1699
      %v1827 = vadd.f32 %v1826, %v1700
      %v1828 = vadd.f32 %v1827, %v1701
      %v1829 = vadd.f32 %v1828, %v1702
      %v1830 = vadd.f32 %v1829, %v1703
      %v1831 = vadd.f32 %v1830, %v1704
      %v1832 = vadd.f32 %v1831, %v1705
      %v1833 = vadd.f32 %v1832, %v1706
      %v1834 = vadd.f32 %v1833, %v1707
      %v1835 = vadd.f32 %v1834, %v1708
      %v1836 = vadd.f32 %v1835, %v1709
      %v1837 = vadd.f32 %v1836, %v1710
      %v1838 = vadd.f32 %v1837, %v1711
      %v1839 = vadd.f32 %v1838, %v1712
      %v1840 = vadd.f32 %v1839, %v1713
      %v1841 = vadd.f32 %v1840, %v1714
      %v1842 = vadd.f32 %v1841, %v1715
      %v1843 = vadd.f32 %v1842, %v1716
      %v1844 = vadd.f32 %v1843, %v1717
      %v1845 = vadd.f32 %v1844, %v1718
      %v1846 = vadd.f32 %v1845, %v1719
      %v1847 = vadd.f32 %v1846, %v1720
      %v1848 = vadd.f32 %v1847, %v1721
      %v1849 = vadd.f32 %v1848, %v1722
      %v1850 = vadd.f32 %v1849, %v1723
      %v1851 = vadd.f32 %v1850, %v1724
      %v1852 = vadd.f32 %v1851, %v1725
      %v1853 = vadd.f32 %v1852, %v1726
      %v1854 = vadd.f32 %v1853, %v1727
      %v1855 = vadd.f32 %v1854, %v1728
      %v1856 = vadd.f32 %v1855, %v1729
      %v1857 = vadd.f32 %v1856, %v1730
      %v1858 = vadd.f32 %v1857, %v1731
      %v1859 = vadd.f32 %v1858, %v1732
      %v1860 = vadd.f32 %v1859, %v1733
      %v1861 = vadd.f32 %v1860, %v1734
      %v1862 = vadd.f32 %v1861, %v1735
      %v1863 = vadd.f32 %v1862, %v1736
      %v1864 = vadd.f32 %v1863, %v1737
      %v1865 = vadd.f32 %v1864, %v1738
      %v1866 = vadd.f32 %v1865, %v1739
      %v1867 = vadd.f32 %v1866, %v1740
      %v1868 = vadd.f32 %v1867, %v1741
      %v1869 = vadd.f32 %v1868, %v1742
      %v1870 = vadd.f32 %v1869, %v1743
      %v1871 = vadd.f32 %v1870, %v1744
      %v1872 = vadd.f32 %v1871, %v1745
      %v1873 = vadd.f32 %v1872, %v1746
      %v1874 = vadd.f32 %v1873, %v1747
      %v1875 = vadd.f32 %v1874, %v1748
      %v1876 = vadd.f32 %v1875, %v1749
      %v1877 = vadd.f32 %v1876, %v1750
      %v1878 = vadd.f32 %v1877, %v1751
      %v1879 = vadd.f32 %v1878, %v1752
      %v1880 = vadd.f32 %v1879, %v1753
      %v1881 = vadd.f32 %v1880, %v1754
      %v1882 = vadd.f32 %v1881, %v1755
      %v1883 = vadd.f32 %v1882, %v1756
      %v1884 = vadd.f32 %v1883, %v1757
      %v1885 = vadd.f32 %v1884, %v1758
      %v1886 = vadd.f32 %v1885, %v1759
      %v1887 = vadd.f32 %v1886, %v1760
      %v1888 = vadd.f32 %v1887, %v1761
      %v1889 = vadd.f32 %v1888, %v1762
      %v1890 = vadd.f32 %v1889, %v1763
      %v1891 = vadd.f32 %v1890, %v1764
      %v1892 = vadd.f32 %v1891, %v1765
      %v1893 = vadd.f32 %v1892, %v1766
      %v1894 = vadd.f32 %v1893, %v1767
      %v1895 = vadd.f32 %v1894, %v1768
      %v1896 = vadd.f32 %v1895, %v1769
      %v1897 = vadd.f32 %v1896, %v1770
      %v1898 = vadd.f32 %v1897, %v1771
      %v1899 = vadd.f32 %v1898, %v1772
      %v1900 = vadd.f32 %v1899, %v1773
      %v1901 = vadd.f32 %v1900, %v1774
      %v1902 = vadd.f32 %v1901, %v1775
      %v1903 = vadd.f32 %v1902, %v1776
      %v1904 = vadd.f32 %v1903, %v1777
      %v1905 = vadd.f32 %v1904, %v1778
      %v1906 = vadd.f32 %v1905, %v1779
      %v1907 = vadd.f32 %v1906, %v1780
      %v1908 = vadd.f32 %v1907, %v1781
      %v1909 = vadd.f32 %v1908, %v1782
      %v1910 = vadd.f32 %v1909, %v1783
      %v1911 = vadd.f32 %v1910, %v1784
      %v1912 = vadd.f32 %v1911, %v1785
      %v1913 = vadd.f32 %v1912, %v1786
      %v1914 = vadd.f32 %v1913, %v1787
      %v1915 = vadd.f32 %v1914, %v1788
      %v1916 = vadd.f32 %v1915, %v1789
      %v1917 = vadd.f32 %v1916, %v1790
      %v1918 = vadd.f32 %v1917, %v1791
      %v1919 = vadd.f32 %v1918, %v1792
      %v1920 = vadd.f32 %v1919, %v1793
      %v1921 = vadd.f32 %v1920, %v1794
      %v1922 = vadd.f32 %v1921, %v1795
      %v1923 = vadd.f32 %v1922, %v1796
      %v1924 = vadd.f32 %v1923, %v1797
      %v1925 = vadd.f32 %v1924, %v1798
      %v1926 = vadd.f32 %v1925, %v1799
      %v1927 = vadd.f32 %v1926, %v1800
      %v1928 = vadd.f32 %v1927, %v1801
      %v1929 = vadd.f32 %v1928, %v1802
      %v1930 = vadd.f32 %v1929, %v1803
      %v1931 = vadd.f32 %v1930, %v1804
      %v1932 = vadd.f32 %v1931, %v1805
      %v1933 = vadd.f32 %v1932, %v1806
      %v1934 = vadd.f32 %v1933, %v1807
      %v1935 = vadd.f32 %v1934, %v1808
      %v1936 = vadd.f32 %v1935, %v1809
      %v1937 = vadd.f32 %v1936, %v1810
      %v1938 = vadd.f32 %v1937, %v1811
      %v1939 = vadd.f32 %v1938, %v1812
      %v1940 = vadd.f32 %v1939, %v1813
      %v1941 = vadd.f32 %v1940, %v1814
      %v1942 = vadd.f32 %v1941, %v1815
      %v1943 = vadd.f32 %v1942, %v1816
      %v1944 = vadd.f32 %v1943, %v1817
      %v1945 = vadd.f32 %v1944, %v1818
      %v1946 = vadd.f32 %v1945, %v1819
      %v1947 = vadd.f32 %v1946, %v1820
      %v1948 = vadd.f32 %v1947, %v1821
      %v1949 = vrot.slane %v1948, 4
      %v1950 = vadd.f32 %v1948, %v1949
      %v1951 = vrot.slane %v1950, 2
      %v1952 = vadd.f32 %v1950, %v1951
      %v1953 = vrot.slane %v1952, 1
      %v1954 = vadd.f32 %v1952, %v1953
      %1955 = vst [vmem:[%s217] sm:$0xff] %v1693
      %1956 = vst [vmem:[%s221] sm:$0xff] %v1954
      %s1957 = smul.u32 128, %s16
      %p1958 = scmp.lt.s32.totalorder %s1957, 255
      %s1959 = scalar_select %p1958, %s1957, 255
      %s1960 = smul.addr %s1959, 8
      %s1961 = scalar_lea.vmem %s2, %s1960
      %p1962 = scmp.lt.s32.totalorder %s16, 1
      %s1963 = scalar_select %p1962, %s16, 1
      %s1964 = smul.addr %s1963, 8
      %s1965 = scalar_lea.vmem %s3, %s1964
      %p1966 = scmp.lt.s32.totalorder %s16, 1
      %s1967 = scalar_select %p1966, %s16, 1
      %s1968 = smul.addr %s1967, 8
      %s1969 = scalar_lea.vmem %s4, %s1968
      // Predicated region
      $region29: #{decoder_forward.8} parent=27 // pred_check
        %p1970 = pneg %p81
      $region30: #{decoder_forward.8} parent=27 // pred_check_branch
        %1972 = sbr.rel (%p1970) target = $region32
      $region31: #{decoder_forward.8} parent=27 // pred_region
        %s1973 = smul.u32 128, %s16
      $region32: #{decoder_forward.8} parent=27 // pred_fallthru
        _
      // Predicated region
      $region33: #{decoder_forward.8} parent=27 // pred_check
        %p1974 = pneg %p107
      $region34: #{decoder_forward.8} parent=27 // pred_check_branch
        %1976 = sbr.rel (%p1974) target = $region36
      $region35: #{decoder_forward.8} parent=27 // pred_region
        _
      $region36: #{decoder_forward.8} parent=27 // pred_fallthru
        _
      // Predicated region
      $region37: #{decoder_forward.8} parent=27 // pred_check
        %p1977 = pneg %p133
      $region38: #{decoder_forward.8} parent=27 // pred_check_branch
        %1979 = sbr.rel (%p1977) target = $region40
      $region39: #{decoder_forward.8} parent=27 // pred_region
        _
      $region40: #{decoder_forward.8} parent=27 // pred_fallthru
        _
    $region28: #{decoder_forward.8} parent=5 // pred_fallthru
      _
    %p1980 = scmp.le.s32.totalorder 2, %s11
    // Predicated region
    $region41: #{decoder_forward.8} parent=5 // pred_check
      %p1981 = pneg %p1980
    $region42: #{decoder_forward.8} parent=5 // pred_check_branch
      %1983 = sbr.rel (%p1981) target = $region44
    $region43: #{decoder_forward.8} parent=5 // pred_region
      %s1984 = ssub.s32 %s11, 2
      // Predicated region
      $region45: #{decoder_forward.8} parent=43 // pred_check
        %p1985 = pneg %p87
      $region46: #{decoder_forward.8} parent=43 // pred_check_branch
        %1987 = sbr.rel (%p1985) target = $region48
      $region47: #{decoder_forward.8} parent=43 // pred_region
        %s1988 = smul.u32 128, %s17
        %p1989 = scmp.lt.s32.totalorder %s1988, 255
        %s1990 = scalar_select %p1989, %s1988, 255
        %s1991 = smul.addr %s1990, 8
        %s1992 = scalar_lea.vmem %s2, %s1991
      $region48: #{decoder_forward.8} parent=43 // pred_fallthru
        _
      // Predicated region
      $region49: #{decoder_forward.8} parent=43 // pred_check
        %p1993 = pneg %p113
      $region50: #{decoder_forward.8} parent=43 // pred_check_branch
        %1995 = sbr.rel (%p1993) target = $region52
      $region51: #{decoder_forward.8} parent=43 // pred_region
        %p1996 = scmp.lt.s32.totalorder %s17, 1
        %s1997 = scalar_select %p1996, %s17, 1
        %s1998 = smul.addr %s1997, 8
        %s1999 = scalar_lea.vmem %s3, %s1998
      $region52: #{decoder_forward.8} parent=43 // pred_fallthru
        _
      // Predicated region
      $region53: #{decoder_forward.8} parent=43 // pred_check
        %p2000 = pneg %p139
      $region54: #{decoder_forward.8} parent=43 // pred_check_branch
        %2002 = sbr.rel (%p2000) target = $region56
      $region55: #{decoder_forward.8} parent=43 // pred_region
        %p2003 = scmp.lt.s32.totalorder %s17, 1
        %s2004 = scalar_select %p2003, %s17, 1
        %s2005 = smul.addr %s2004, 8
        %s2006 = scalar_lea.vmem %s4, %s2005
      $region56: #{decoder_forward.8} parent=43 // pred_fallthru
        _
    $region44: #{decoder_forward.8} parent=5 // pred_fallthru
      _
  $region6: #{decoder_forward.8} parent=0 // loop_footer
    %s15 = sadd.s32 1, %s11
  $region7: #{decoder_forward.8} parent=0 // loop_footer_branch
    %10 = sbr.rel target = $region3
  $region8: #{decoder_forward.8} parent=0 // loop_exit
    _

</llo_original>
